<compile_context>
chip_gen: v6e
topology: v6e:2x2x1
jax: 0.10.0
libtpu: 0.0.40
codegen_flags: <defaults>
</compile_context>

<pallas_src>
import numpy as np

import jax
import jax.numpy as jnp
from jax.experimental import pallas as pl
from jax.experimental.pallas import tpu as pltpu

# ---------------- small, shape-consistent config ----------------
IMG = 16          # img_size
PATCH = 8         # patch_size
IN_CHANS = 3
EMBED = 32        # embed_dim
DEPTH = 2
HEADS = 4
MLP_RATIO = 4.0
NUM_CLASSES = 10
BATCH = 2

N_PATCHES = (IMG // PATCH) * (IMG // PATCH)   # 4
SEQ = N_PATCHES + 1                           # 5 (cls token)
TOKENS = BATCH * SEQ                          # 10 (batch folded into token axis)
HEAD_DIM = EMBED // HEADS                     # 8
SCALE = HEAD_DIM ** (-0.5)
HIDDEN = int(EMBED * MLP_RATIO)               # 128
EPS = 1e-6
_HI = jax.lax.Precision.HIGHEST


# ---------------- in-kernel helpers ----------------
def _erf(x):
    # TODO(synk): lax.erf lowering is not guaranteed inside Mosaic kernels; use the
    # Abramowitz-Stegun 7.1.26 rational approximation (max abs err ~1.5e-7 ~= f32 eps)
    # so exact-erf GELU semantics are reproduced to float32 precision.
    a1, a2, a3, a4, a5 = (0.254829592, -0.284496736, 1.421413741,
                          -1.453152027, 1.061405429)
    p = 0.3275911
    sgn = jnp.where(x >= 0.0, 1.0, -1.0)
    ax = jnp.abs(x)
    t = 1.0 / (1.0 + p * ax)
    poly = ((((a5 * t + a4) * t + a3) * t + a2) * t + a1) * t
    y = 1.0 - poly * jnp.exp(-ax * ax)
    return sgn * y


def _gelu_exact(x):
    # matches torch.nn.functional.gelu (approximate='none'): 0.5*x*(1+erf(x/sqrt(2)))
    return 0.5 * x * (1.0 + _erf(x * 0.7071067811865476))


def _layernorm(v, w, b):
    mu = jnp.mean(v, axis=-1, keepdims=True)
    var = jnp.mean(jnp.square(v - mu), axis=-1, keepdims=True)
    return (v - mu) * jax.lax.rsqrt(var + EPS) * w + b


# ---------------- fused Pallas kernel ----------------
def _vit_fused_kernel(patches_ref, pew_ref, peb_ref, cls_ref, pos_ref, bias_ref,
                      b0_n1w, b0_n1b, b0_qkvw, b0_qkvb, b0_pw, b0_pb,
                      b0_n2w, b0_n2b, b0_f1w, b0_f1b, b0_f2w, b0_f2b,
                      b1_n1w, b1_n1b, b1_qkvw, b1_qkvb, b1_pw, b1_pb,
                      b1_n2w, b1_n2b, b1_f1w, b1_f1b, b1_f2w, b1_f2b,
                      nw_ref, nb_ref, hw_ref, hb_ref,
                      o_ref, tok_ref, ctx_ref):
    # TODO(synk): optional bf16 MXU inputs (f32 accumulation) on v6e/v7x was left out
    # to stay safely inside the 2e-3 tolerance vs the HIGHEST-precision reference.

    # ---- patch embed + token assembly: cls token, pos embed (all in VMEM) ----
    pe = (jnp.dot(patches_ref[...], pew_ref[...],
                  preferred_element_type=jnp.float32) + peb_ref[...])   # (B*P, EMBED)
    cls_row = cls_ref[...] + pos_ref[0:1, :]                            # (1, EMBED)
    pos_patch = pos_ref[1:SEQ, :]                                       # (P, EMBED)
    for b in range(BATCH):
        tok_ref[b * SEQ:b * SEQ + 1, :] = cls_row
        tok_ref[b * SEQ + 1:(b + 1) * SEQ, :] = (
            pe[b * N_PATCHES:(b + 1) * N_PATCHES, :] + pos_patch)
    x = tok_ref[...]                                                    # (TOKENS, EMBED)

    attn_bias = bias_ref[...]   # (TOKENS, TOKENS) block-diagonal: 0 in-batch, -1e30 cross

    blocks = (
        (b0_n1w, b0_n1b, b0_qkvw, b0_qkvb, b0_pw, b0_pb,
         b0_n2w, b0_n2b, b0_f1w, b0_f1b, b0_f2w, b0_f2b),
        (b1_n1w, b1_n1b, b1_qkvw, b1_qkvb, b1_pw, b1_pb,
         b1_n2w, b1_n2b, b1_f1w, b1_f1b, b1_f2w, b1_f2b),
    )

    for (n1w, n1b, qkvw, qkvb, pw, pb, n2w, n2b, f1w, f1b, f2w, f2b) in blocks:
        # ---- attention branch (batch folded into token axis, masked scores) ----
        xn = _layernorm(x, n1w[...], n1b[...])
        qkv = (jnp.dot(xn, qkvw[...], preferred_element_type=jnp.float32)
               + qkvb[...])                                             # (TOKENS, 3*EMBED)
        for h in range(HEADS):                                          # tiny static unroll
            qh = qkv[:, h * HEAD_DIM:(h + 1) * HEAD_DIM]
            kh = qkv[:, EMBED + h * HEAD_DIM:EMBED + (h + 1) * HEAD_DIM]
            vh = qkv[:, 2 * EMBED + h * HEAD_DIM:2 * EMBED + (h + 1) * HEAD_DIM]
            s = jax.lax.dot_general(qh, kh, (((1,), (1,)), ((), ())),
                                    preferred_element_type=jnp.float32) * SCALE
            s = s + attn_bias
            s = s - jnp.max(s, axis=-1, keepdims=True)
            p = jnp.exp(s)
            p = p * pl.reciprocal(jnp.sum(p, axis=-1, keepdims=True), approx=True)
            ctx_ref[:, h * HEAD_DIM:(h + 1) * HEAD_DIM] = jnp.dot(
                p, vh, preferred_element_type=jnp.float32)              # (TOKENS, HEAD_DIM)
        # single full-width projection of the concatenated heads
        x = x + (jnp.dot(ctx_ref[...], pw[...],
                         preferred_element_type=jnp.float32) + pb[...])

        # ---- MLP branch ----
        xn = _layernorm(x, n2w[...], n2b[...])
        h1 = (jnp.dot(xn, f1w[...], preferred_element_type=jnp.float32) + f1b[...])
        h1 = _gelu_exact(h1)
        x = x + (jnp.dot(h1, f2w[...], preferred_element_type=jnp.float32) + f2b[...])

    # ---- final norm + head (only cls rows are stored) ----
    xn = _layernorm(x, nw_ref[...], nb_ref[...])
    logits = (jnp.dot(xn, hw_ref[...], preferred_element_type=jnp.float32)
              + hb_ref[...])                                            # (TOKENS, NUM_CLASSES)
    for b in range(BATCH):
        o_ref[b:b + 1, :] = logits[b * SEQ:b * SEQ + 1, :]


# ---------------- wrapper (single pallas_call) ----------------
def _full_spec(arr):
    nd = arr.ndim
    return pl.BlockSpec(arr.shape, lambda *_: (0,) * nd)


def vit_forward_pallas(x, w):
    """training=False; all drop rates are 0.0 -> dropout / drop-path are identities."""
    B = x.shape[0]
    hp, wp = IMG // PATCH, IMG // PATCH
    # patch extraction is pure layout glue; all compute happens inside the fused kernel
    patches = x.reshape(B, IN_CHANS, hp, PATCH, wp, PATCH).transpose(0, 2, 4, 1, 3, 5)
    patches = patches.reshape(B * hp * wp, IN_CHANS * PATCH * PATCH)

    # static block-diagonal additive attention bias (batch b attends only to batch b)
    row = np.arange(B * SEQ) // SEQ
    attn_bias = jnp.asarray(
        np.where(row[:, None] == row[None, :], 0.0, -1e30).astype(np.float32))

    inputs = [
        patches,
        w['patch_embed.proj.weight'].reshape(EMBED, -1).T,   # (C*ps*ps, EMBED)
        w['patch_embed.proj.bias'].reshape(1, EMBED),
        w['cls_token'].reshape(1, EMBED),
        w['pos_embed'].reshape(SEQ, EMBED),
        attn_bias,
    ]
    for i in range(DEPTH):
        pre = f'blocks.{i}.'
        inputs += [
            w[pre + 'norm1.weight'].reshape(1, EMBED),
            w[pre + 'norm1.bias'].reshape(1, EMBED),
            w[pre + 'attn.qkv.weight'].T,                     # (EMBED, 3*EMBED)
            w[pre + 'attn.qkv.bias'].reshape(1, 3 * EMBED),
            w[pre + 'attn.proj.weight'].T,                    # (EMBED, EMBED)
            w[pre + 'attn.proj.bias'].reshape(1, EMBED),
            w[pre + 'norm2.weight'].reshape(1, EMBED),
            w[pre + 'norm2.bias'].reshape(1, EMBED),
            w[pre + 'mlp.fc1.weight'].T,                      # (EMBED, HIDDEN)
            w[pre + 'mlp.fc1.bias'].reshape(1, HIDDEN),
            w[pre + 'mlp.fc2.weight'].T,                      # (HIDDEN, EMBED)
            w[pre + 'mlp.fc2.bias'].reshape(1, EMBED),
        ]
    inputs += [
        w['norm.weight'].reshape(1, EMBED),
        w['norm.bias'].reshape(1, EMBED),
        w['head.weight'].T,                                   # (EMBED, NUM_CLASSES)
        w['head.bias'].reshape(1, NUM_CLASSES),
    ]

    return pl.pallas_call(
        _vit_fused_kernel,
        out_shape=jax.ShapeDtypeStruct((B, NUM_CLASSES), jnp.float32),
        grid=(1,),
        in_specs=[_full_spec(a) for a in inputs],
        out_specs=pl.BlockSpec((B, NUM_CLASSES), lambda *_: (0, 0)),
        scratch_shapes=[pltpu.VMEM((B * SEQ, EMBED), jnp.float32),   # assembled tokens
                        pltpu.VMEM((B * SEQ, EMBED), jnp.float32)],  # concatenated heads
    )(*inputs)


# ---------------- pure-JAX reference (mirrors the PyTorch code) ----------------
def _ln_ref(v, w, b):
    mu = jnp.mean(v, -1, keepdims=True)
    var = jnp.mean(jnp.square(v - mu), -1, keepdims=True)
    return (v - mu) / jnp.sqrt(var + EPS) * w + b


def vit_reference(x, w):
    B = x.shape[0]
    y = jax.lax.conv_general_dilated(
        x, w['patch_embed.proj.weight'], (PATCH, PATCH), 'VALID',
        dimension_numbers=('NCHW', 'OIHW', 'NCHW'), precision=_HI)
    y = y + w['patch_embed.proj.bias'][None, :, None, None]
    y = y.reshape(B, EMBED, -1).transpose(0, 2, 1)        # flatten(2).transpose(1,2)
    cls = jnp.broadcast_to(w['cls_token'], (B, 1, EMBED))
    y = jnp.concatenate([cls, y], axis=1) + w['pos_embed']
    for i in range(DEPTH):
        pre = f'blocks.{i}.'
        yn = _ln_ref(y, w[pre + 'norm1.weight'], w[pre + 'norm1.bias'])
        qkv = jnp.matmul(yn, w[pre + 'attn.qkv.weight'].T, precision=_HI) + w[pre + 'attn.qkv.bias']
        qkv = qkv.reshape(B, SEQ, 3, HEADS, HEAD_DIM).transpose(2, 0, 3, 1, 4)
        q, k, v = qkv[0], qkv[1], qkv[2]
        attn = jnp.einsum('bhnd,bhmd->bhnm', q, k, precision=_HI) * SCALE
        attn = jax.nn.softmax(attn, axis=-1)
        ctx = jnp.einsum('bhnm,bhmd->bhnd', attn, v, precision=_HI)
        ctx = ctx.transpose(0, 2, 1, 3).reshape(B, SEQ, EMBED)
        y = y + (jnp.matmul(ctx, w[pre + 'attn.proj.weight'].T, precision=_HI)
                 + w[pre + 'attn.proj.bias'])
        yn = _ln_ref(y, w[pre + 'norm2.weight'], w[pre + 'norm2.bias'])
        h = jnp.matmul(yn, w[pre + 'mlp.fc1.weight'].T, precision=_HI) + w[pre + 'mlp.fc1.bias']
        h = jax.nn.gelu(h, approximate=False)
        y = y + (jnp.matmul(h, w[pre + 'mlp.fc2.weight'].T, precision=_HI)
                 + w[pre + 'mlp.fc2.bias'])
    yn = _ln_ref(y, w['norm.weight'], w['norm.bias'])[:, 0]
    return jnp.matmul(yn, w['head.weight'].T, precision=_HI) + w['head.bias']


# ---------------- deterministic parameter init ----------------
def init_weights(key):
    keys = iter(jax.random.split(key, 256))

    def nrm(shape, scale=0.02):
        return scale * jax.random.normal(next(keys), shape, jnp.float32)

    w = {}
    w['patch_embed.proj.weight'] = nrm((EMBED, IN_CHANS, PATCH, PATCH))
    w['patch_embed.proj.bias'] = nrm((EMBED,))
    w['cls_token'] = nrm((1, 1, EMBED))
    w['pos_embed'] = nrm((1, SEQ, EMBED))
    for i in range(DEPTH):
        pre = f'blocks.{i}.'
        w[pre + 'norm1.weight'] = jnp.ones((EMBED,), jnp.float32)
        w[pre + 'norm1.bias'] = jnp.zeros((EMBED,), jnp.float32)
        w[pre + 'attn.qkv.weight'] = nrm((3 * EMBED, EMBED))
        w[pre + 'attn.qkv.bias'] = nrm((3 * EMBED,))
        w[pre + 'attn.proj.weight'] = nrm((EMBED, EMBED))
        w[pre + 'attn.proj.bias'] = nrm((EMBED,))
        w[pre + 'norm2.weight'] = jnp.ones((EMBED,), jnp.float32)
        w[pre + 'norm2.bias'] = jnp.zeros((EMBED,), jnp.float32)
        w[pre + 'mlp.fc1.weight'] = nrm((HIDDEN, EMBED))
        w[pre + 'mlp.fc1.bias'] = nrm((HIDDEN,))
        w[pre + 'mlp.fc2.weight'] = nrm((EMBED, HIDDEN))
        w[pre + 'mlp.fc2.bias'] = nrm((EMBED,))
    w['norm.weight'] = jnp.ones((EMBED,), jnp.float32)
    w['norm.bias'] = jnp.zeros((EMBED,), jnp.float32)
    w['head.weight'] = nrm((NUM_CLASSES, EMBED))
    w['head.bias'] = jnp.zeros((NUM_CLASSES,), jnp.float32)
    return w


if __name__ == "__main__":
    key = jax.random.PRNGKey(0)
    k_x, k_w = jax.random.split(key)
    x = jax.random.normal(k_x, (BATCH, IN_CHANS, IMG, IMG), jnp.float32)
    weights = init_weights(k_w)

    out = vit_forward_pallas(x, weights)
    out = jax.block_until_ready(out)

    assert out.shape == (BATCH, NUM_CLASSES)
    assert bool(jnp.all(jnp.isfinite(out)))

    ref = vit_reference(x, weights)
    err = float(jnp.max(jnp.abs(out - ref)))
    assert err < 2e-3, f"mismatch vs reference: max abs err {err}"

    print("KERNEL_OK")
</pallas_src>

<mosaic_0001>
module attributes {stable_mosaic.version = 11 : i64} {
  func.func @_vit_fused_kernel(%arg0: i32, %arg1: memref<8x192xf32, #tpu.memory_space<vmem>>, %arg2: memref<192x32xf32, #tpu.memory_space<vmem>>, %arg3: memref<1x32xf32, #tpu.memory_space<vmem>>, %arg4: memref<1x32xf32, #tpu.memory_space<vmem>>, %arg5: memref<5x32xf32, #tpu.memory_space<vmem>>, %arg6: memref<10x10xf32, #tpu.memory_space<vmem>>, %arg7: memref<1x32xf32, #tpu.memory_space<vmem>>, %arg8: memref<1x32xf32, #tpu.memory_space<vmem>>, %arg9: memref<32x96xf32, #tpu.memory_space<vmem>>, %arg10: memref<1x96xf32, #tpu.memory_space<vmem>>, %arg11: memref<32x32xf32, #tpu.memory_space<vmem>>, %arg12: memref<1x32xf32, #tpu.memory_space<vmem>>, %arg13: memref<1x32xf32, #tpu.memory_space<vmem>>, %arg14: memref<1x32xf32, #tpu.memory_space<vmem>>, %arg15: memref<32x128xf32, #tpu.memory_space<vmem>>, %arg16: memref<1x128xf32, #tpu.memory_space<vmem>>, %arg17: memref<128x32xf32, #tpu.memory_space<vmem>>, %arg18: memref<1x32xf32, #tpu.memory_space<vmem>>, %arg19: memref<1x32xf32, #tpu.memory_space<vmem>>, %arg20: memref<1x32xf32, #tpu.memory_space<vmem>>, %arg21: memref<32x96xf32, #tpu.memory_space<vmem>>, %arg22: memref<1x96xf32, #tpu.memory_space<vmem>>, %arg23: memref<32x32xf32, #tpu.memory_space<vmem>>, %arg24: memref<1x32xf32, #tpu.memory_space<vmem>>, %arg25: memref<1x32xf32, #tpu.memory_space<vmem>>, %arg26: memref<1x32xf32, #tpu.memory_space<vmem>>, %arg27: memref<32x128xf32, #tpu.memory_space<vmem>>, %arg28: memref<1x128xf32, #tpu.memory_space<vmem>>, %arg29: memref<128x32xf32, #tpu.memory_space<vmem>>, %arg30: memref<1x32xf32, #tpu.memory_space<vmem>>, %arg31: memref<1x32xf32, #tpu.memory_space<vmem>>, %arg32: memref<1x32xf32, #tpu.memory_space<vmem>>, %arg33: memref<32x10xf32, #tpu.memory_space<vmem>>, %arg34: memref<1x10xf32, #tpu.memory_space<vmem>>, %arg35: memref<2x10xf32, #tpu.memory_space<vmem>>, %arg36: memref<10x32xf32, #tpu.memory_space<vmem>>, %arg37: memref<10x32xf32, #tpu.memory_space<vmem>>) attributes {dimension_semantics = [#tpu.dimension_semantics<arbitrary>], iteration_bounds = array<i64: 1>, scalar_prefetch = 0 : i64, scratch_operands = 2 : i64, tpu.core_type = #tpu.core_type<tc>, window_params = [{pipeline_mode = #tpu.pipeline_mode<synchronous>, transform_indices = @transform_0, window_bounds = array<i64: 8, 192>}, {pipeline_mode = #tpu.pipeline_mode<synchronous>, transform_indices = @transform_1, window_bounds = array<i64: 192, 32>}, {pipeline_mode = #tpu.pipeline_mode<synchronous>, transform_indices = @transform_2, window_bounds = array<i64: 1, 32>}, {pipeline_mode = #tpu.pipeline_mode<synchronous>, transform_indices = @transform_3, window_bounds = array<i64: 1, 32>}, {pipeline_mode = #tpu.pipeline_mode<synchronous>, transform_indices = @transform_4, window_bounds = array<i64: 5, 32>}, {pipeline_mode = #tpu.pipeline_mode<synchronous>, transform_indices = @transform_5, window_bounds = array<i64: 10, 10>}, {pipeline_mode = #tpu.pipeline_mode<synchronous>, transform_indices = @transform_6, window_bounds = array<i64: 1, 32>}, {pipeline_mode = #tpu.pipeline_mode<synchronous>, transform_indices = @transform_7, window_bounds = array<i64: 1, 32>}, {pipeline_mode = #tpu.pipeline_mode<synchronous>, transform_indices = @transform_8, window_bounds = array<i64: 32, 96>}, {pipeline_mode = #tpu.pipeline_mode<synchronous>, transform_indices = @transform_9, window_bounds = array<i64: 1, 96>}, {pipeline_mode = #tpu.pipeline_mode<synchronous>, transform_indices = @transform_10, window_bounds = array<i64: 32, 32>}, {pipeline_mode = #tpu.pipeline_mode<synchronous>, transform_indices = @transform_11, window_bounds = array<i64: 1, 32>}, {pipeline_mode = #tpu.pipeline_mode<synchronous>, transform_indices = @transform_12, window_bounds = array<i64: 1, 32>}, {pipeline_mode = #tpu.pipeline_mode<synchronous>, transform_indices = @transform_13, window_bounds = array<i64: 1, 32>}, {pipeline_mode = #tpu.pipeline_mode<synchronous>, transform_indices = @transform_14, window_bounds = array<i64: 32, 128>}, {pipeline_mode = #tpu.pipeline_mode<synchronous>, transform_indices = @transform_15, window_bounds = array<i64: 1, 128>}, {pipeline_mode = #tpu.pipeline_mode<synchronous>, transform_indices = @transform_16, window_bounds = array<i64: 128, 32>}, {pipeline_mode = #tpu.pipeline_mode<synchronous>, transform_indices = @transform_17, window_bounds = array<i64: 1, 32>}, {pipeline_mode = #tpu.pipeline_mode<synchronous>, transform_indices = @transform_18, window_bounds = array<i64: 1, 32>}, {pipeline_mode = #tpu.pipeline_mode<synchronous>, transform_indices = @transform_19, window_bounds = array<i64: 1, 32>}, {pipeline_mode = #tpu.pipeline_mode<synchronous>, transform_indices = @transform_20, window_bounds = array<i64: 32, 96>}, {pipeline_mode = #tpu.pipeline_mode<synchronous>, transform_indices = @transform_21, window_bounds = array<i64: 1, 96>}, {pipeline_mode = #tpu.pipeline_mode<synchronous>, transform_indices = @transform_22, window_bounds = array<i64: 32, 32>}, {pipeline_mode = #tpu.pipeline_mode<synchronous>, transform_indices = @transform_23, window_bounds = array<i64: 1, 32>}, {pipeline_mode = #tpu.pipeline_mode<synchronous>, transform_indices = @transform_24, window_bounds = array<i64: 1, 32>}, {pipeline_mode = #tpu.pipeline_mode<synchronous>, transform_indices = @transform_25, window_bounds = array<i64: 1, 32>}, {pipeline_mode = #tpu.pipeline_mode<synchronous>, transform_indices = @transform_26, window_bounds = array<i64: 32, 128>}, {pipeline_mode = #tpu.pipeline_mode<synchronous>, transform_indices = @transform_27, window_bounds = array<i64: 1, 128>}, {pipeline_mode = #tpu.pipeline_mode<synchronous>, transform_indices = @transform_28, window_bounds = array<i64: 128, 32>}, {pipeline_mode = #tpu.pipeline_mode<synchronous>, transform_indices = @transform_29, window_bounds = array<i64: 1, 32>}, {pipeline_mode = #tpu.pipeline_mode<synchronous>, transform_indices = @transform_30, window_bounds = array<i64: 1, 32>}, {pipeline_mode = #tpu.pipeline_mode<synchronous>, transform_indices = @transform_31, window_bounds = array<i64: 1, 32>}, {pipeline_mode = #tpu.pipeline_mode<synchronous>, transform_indices = @transform_32, window_bounds = array<i64: 32, 10>}, {pipeline_mode = #tpu.pipeline_mode<synchronous>, transform_indices = @transform_33, window_bounds = array<i64: 1, 10>}, {pipeline_mode = #tpu.pipeline_mode<synchronous>, transform_indices = @transform_34, window_bounds = array<i64: 2, 10>}]} {
    %c0 = arith.constant 0 : index
    %c0_0 = arith.constant 0 : index
    %0 = vector.load %arg1[%c0, %c0_0] : memref<8x192xf32, #tpu.memory_space<vmem>>, vector<8x192xf32>
    %c0_1 = arith.constant 0 : index
    %c0_2 = arith.constant 0 : index
    %1 = vector.load %arg2[%c0_1, %c0_2] : memref<192x32xf32, #tpu.memory_space<vmem>>, vector<192x32xf32>
    %cst = arith.constant dense<0.000000e+00> : vector<8x32xf32>
    %2 = tpu.matmul %0, %1, %cst {dimension_numbers = #tpu.dot_dimension_numbers<[1], [0], [0], [1], [0, 0, 1, 1], [], []>} : vector<8x192xf32>, vector<192x32xf32>, vector<8x32xf32> -> vector<8x32xf32>
    %c0_3 = arith.constant 0 : index
    %c0_4 = arith.constant 0 : index
    %3 = vector.load %arg3[%c0_3, %c0_4] : memref<1x32xf32, #tpu.memory_space<vmem>>, vector<1x32xf32>
    %4 = vector.broadcast %3 : vector<1x32xf32> to vector<8x32xf32>
    %5 = arith.addf %2, %4 : vector<8x32xf32>
    %c0_5 = arith.constant 0 : index
    %c0_6 = arith.constant 0 : index
    %6 = vector.load %arg4[%c0_5, %c0_6] : memref<1x32xf32, #tpu.memory_space<vmem>>, vector<1x32xf32>
    %c0_7 = arith.constant 0 : index
    %c0_8 = arith.constant 0 : index
    %7 = vector.load %arg5[%c0_7, %c0_8] : memref<5x32xf32, #tpu.memory_space<vmem>>, vector<1x32xf32>
    %8 = arith.addf %6, %7 : vector<1x32xf32>
    %c1 = arith.constant 1 : index
    %c0_9 = arith.constant 0 : index
    %9 = vector.load %arg5[%c1, %c0_9] : memref<5x32xf32, #tpu.memory_space<vmem>>, vector<4x32xf32>
    %c0_10 = arith.constant 0 : index
    %c0_11 = arith.constant 0 : index
    %10 = vector.load %arg36[%c0_10, %c0_11] : memref<10x32xf32, #tpu.memory_space<vmem>>, vector<1x32xf32>
    tpu.vector_store %arg36[%c0_10, %c0_11], %8 {strides = array<i32>} : memref<10x32xf32, #tpu.memory_space<vmem>>, vector<1x32xf32>,
    %11 = vector.extract_strided_slice %5 {offsets = [0, 0], sizes = [4, 32], strides = [1, 1]} : vector<8x32xf32> to vector<4x32xf32>
    %12 = arith.addf %11, %9 : vector<4x32xf32>
    %c1_12 = arith.constant 1 : index
    %c0_13 = arith.constant 0 : index
    %13 = vector.load %arg36[%c1_12, %c0_13] : memref<10x32xf32, #tpu.memory_space<vmem>>, vector<4x32xf32>
    tpu.vector_store %arg36[%c1_12, %c0_13], %12 {strides = array<i32>} : memref<10x32xf32, #tpu.memory_space<vmem>>, vector<4x32xf32>,
    %c5 = arith.constant 5 : index
    %c0_14 = arith.constant 0 : index
    %14 = vector.load %arg36[%c5, %c0_14] : memref<10x32xf32, #tpu.memory_space<vmem>>, vector<1x32xf32>
    tpu.vector_store %arg36[%c5, %c0_14], %8 {strides = array<i32>} : memref<10x32xf32, #tpu.memory_space<vmem>>, vector<1x32xf32>,
    %15 = vector.extract_strided_slice %5 {offsets = [4, 0], sizes = [4, 32], strides = [1, 1]} : vector<8x32xf32> to vector<4x32xf32>
    %16 = arith.addf %15, %9 : vector<4x32xf32>
    %c6 = arith.constant 6 : index
    %c0_15 = arith.constant 0 : index
    %17 = vector.load %arg36[%c6, %c0_15] : memref<10x32xf32, #tpu.memory_space<vmem>>, vector<4x32xf32>
    tpu.vector_store %arg36[%c6, %c0_15], %16 {strides = array<i32>} : memref<10x32xf32, #tpu.memory_space<vmem>>, vector<4x32xf32>,
    %c0_16 = arith.constant 0 : index
    %c0_17 = arith.constant 0 : index
    %18 = vector.load %arg36[%c0_16, %c0_17] : memref<10x32xf32, #tpu.memory_space<vmem>>, vector<10x32xf32>
    %c0_18 = arith.constant 0 : index
    %c0_19 = arith.constant 0 : index
    %19 = vector.load %arg6[%c0_18, %c0_19] : memref<10x10xf32, #tpu.memory_space<vmem>>, vector<10x10xf32>
    %c0_20 = arith.constant 0 : index
    %c0_21 = arith.constant 0 : index
    %20 = vector.load %arg7[%c0_20, %c0_21] : memref<1x32xf32, #tpu.memory_space<vmem>>, vector<1x32xf32>
    %c0_22 = arith.constant 0 : index
    %c0_23 = arith.constant 0 : index
    %21 = vector.load %arg8[%c0_22, %c0_23] : memref<1x32xf32, #tpu.memory_space<vmem>>, vector<1x32xf32>
    %cst_24 = arith.constant dense<0.000000e+00> : vector<10xf32>
    %22 = vector.multi_reduction <add>, %18, %cst_24 [1] : vector<10x32xf32> to vector<10xf32>
    %23 = vector.shape_cast %22 : vector<10xf32> to vector<10x1xf32>
    %cst_25 = arith.constant 3.200000e+01 : f32
    %24 = vector.broadcast %cst_25 : f32 to vector<10x1xf32>
    %25 = arith.divf %23, %24 : vector<10x1xf32>
    %26 = vector.broadcast %25 : vector<10x1xf32> to vector<10x32xf32>
    %27 = arith.subf %18, %26 : vector<10x32xf32>
    %28 = arith.mulf %27, %27 : vector<10x32xf32>
    %cst_26 = arith.constant dense<0.000000e+00> : vector<10xf32>
    %29 = vector.multi_reduction <add>, %28, %cst_26 [1] : vector<10x32xf32> to vector<10xf32>
    %30 = vector.shape_cast %29 : vector<10xf32> to vector<10x1xf32>
    %cst_27 = arith.constant 3.200000e+01 : f32
    %31 = vector.broadcast %cst_27 : f32 to vector<10x1xf32>
    %32 = arith.divf %30, %31 : vector<10x1xf32>
    %33 = vector.broadcast %25 : vector<10x1xf32> to vector<10x32xf32>
    %34 = arith.subf %18, %33 : vector<10x32xf32>
    %cst_28 = arith.constant 9.99999997E-7 : f32
    %35 = vector.broadcast %cst_28 : f32 to vector<10x1xf32>
    %36 = arith.addf %32, %35 : vector<10x1xf32>
    %37 = math.rsqrt %36 : vector<10x1xf32>
    %38 = vector.broadcast %37 : vector<10x1xf32> to vector<10x32xf32>
    %39 = arith.mulf %34, %38 : vector<10x32xf32>
    %40 = vector.broadcast %20 : vector<1x32xf32> to vector<10x32xf32>
    %41 = arith.mulf %39, %40 : vector<10x32xf32>
    %42 = vector.broadcast %21 : vector<1x32xf32> to vector<10x32xf32>
    %43 = arith.addf %41, %42 : vector<10x32xf32>
    %c0_29 = arith.constant 0 : index
    %c0_30 = arith.constant 0 : index
    %44 = vector.load %arg9[%c0_29, %c0_30] : memref<32x96xf32, #tpu.memory_space<vmem>>, vector<32x96xf32>
    %cst_31 = arith.constant dense<0.000000e+00> : vector<10x96xf32>
    %45 = tpu.matmul %43, %44, %cst_31 {dimension_numbers = #tpu.dot_dimension_numbers<[1], [0], [0], [1], [0, 0, 1, 1], [], []>} : vector<10x32xf32>, vector<32x96xf32>, vector<10x96xf32> -> vector<10x96xf32>
    %c0_32 = arith.constant 0 : index
    %c0_33 = arith.constant 0 : index
    %46 = vector.load %arg10[%c0_32, %c0_33] : memref<1x96xf32, #tpu.memory_space<vmem>>, vector<1x96xf32>
    %47 = vector.broadcast %46 : vector<1x96xf32> to vector<10x96xf32>
    %48 = arith.addf %45, %47 : vector<10x96xf32>
    %49 = vector.extract_strided_slice %48 {offsets = [0, 0], sizes = [10, 8], strides = [1, 1]} : vector<10x96xf32> to vector<10x8xf32>
    %50 = vector.extract_strided_slice %48 {offsets = [0, 32], sizes = [10, 8], strides = [1, 1]} : vector<10x96xf32> to vector<10x8xf32>
    %51 = vector.extract_strided_slice %48 {offsets = [0, 64], sizes = [10, 8], strides = [1, 1]} : vector<10x96xf32> to vector<10x8xf32>
    %cst_34 = arith.constant dense<0.000000e+00> : vector<10x10xf32>
    %52 = tpu.matmul %49, %50, %cst_34 {dimension_numbers = #tpu.dot_dimension_numbers<[1], [1], [0], [0], [0, 0, 1, 0], [], []>} : vector<10x8xf32>, vector<10x8xf32>, vector<10x10xf32> -> vector<10x10xf32>
    %cst_35 = arith.constant 0.353553385 : f32
    %53 = vector.broadcast %cst_35 : f32 to vector<10x10xf32>
    %54 = arith.mulf %52, %53 : vector<10x10xf32>
    %55 = arith.addf %54, %19 : vector<10x10xf32>
    %cst_36 = arith.constant dense<0xFF800000> : vector<10xf32>
    %56 = vector.multi_reduction <maximumf>, %55, %cst_36 [1] : vector<10x10xf32> to vector<10xf32>
    %57 = vector.shape_cast %56 : vector<10xf32> to vector<10x1xf32>
    %58 = vector.broadcast %57 : vector<10x1xf32> to vector<10x10xf32>
    %59 = arith.subf %55, %58 : vector<10x10xf32>
    %60 = math.exp %59 : vector<10x10xf32>
    %cst_37 = arith.constant dense<0.000000e+00> : vector<10xf32>
    %61 = vector.multi_reduction <add>, %60, %cst_37 [1] : vector<10x10xf32> to vector<10xf32>
    %62 = vector.shape_cast %61 : vector<10xf32> to vector<10x1xf32>
    %63 = tpu.reciprocal %62 {approx = true} : vector<10x1xf32> -> vector<10x1xf32>
    %64 = vector.broadcast %63 : vector<10x1xf32> to vector<10x10xf32>
    %65 = arith.mulf %60, %64 : vector<10x10xf32>
    %cst_38 = arith.constant dense<0.000000e+00> : vector<10x8xf32>
    %66 = tpu.matmul %65, %51, %cst_38 {dimension_numbers = #tpu.dot_dimension_numbers<[1], [0], [0], [1], [0, 0, 1, 1], [], []>} : vector<10x10xf32>, vector<10x8xf32>, vector<10x8xf32> -> vector<10x8xf32>
    %c0_39 = arith.constant 0 : index
    %c0_40 = arith.constant 0 : index
    %67 = vector.load %arg37[%c0_39, %c0_40] : memref<10x32xf32, #tpu.memory_space<vmem>>, vector<10x8xf32>
    tpu.vector_store %arg37[%c0_39, %c0_40], %66 {strides = array<i32>} : memref<10x32xf32, #tpu.memory_space<vmem>>, vector<10x8xf32>,
    %68 = vector.extract_strided_slice %48 {offsets = [0, 8], sizes = [10, 8], strides = [1, 1]} : vector<10x96xf32> to vector<10x8xf32>
    %69 = vector.extract_strided_slice %48 {offsets = [0, 40], sizes = [10, 8], strides = [1, 1]} : vector<10x96xf32> to vector<10x8xf32>
    %70 = vector.extract_strided_slice %48 {offsets = [0, 72], sizes = [10, 8], strides = [1, 1]} : vector<10x96xf32> to vector<10x8xf32>
    %cst_41 = arith.constant dense<0.000000e+00> : vector<10x10xf32>
    %71 = tpu.matmul %68, %69, %cst_41 {dimension_numbers = #tpu.dot_dimension_numbers<[1], [1], [0], [0], [0, 0, 1, 0], [], []>} : vector<10x8xf32>, vector<10x8xf32>, vector<10x10xf32> -> vector<10x10xf32>
    %cst_42 = arith.constant 0.353553385 : f32
    %72 = vector.broadcast %cst_42 : f32 to vector<10x10xf32>
    %73 = arith.mulf %71, %72 : vector<10x10xf32>
    %74 = arith.addf %73, %19 : vector<10x10xf32>
    %cst_43 = arith.constant dense<0xFF800000> : vector<10xf32>
    %75 = vector.multi_reduction <maximumf>, %74, %cst_43 [1] : vector<10x10xf32> to vector<10xf32>
    %76 = vector.shape_cast %75 : vector<10xf32> to vector<10x1xf32>
    %77 = vector.broadcast %76 : vector<10x1xf32> to vector<10x10xf32>
    %78 = arith.subf %74, %77 : vector<10x10xf32>
    %79 = math.exp %78 : vector<10x10xf32>
    %cst_44 = arith.constant dense<0.000000e+00> : vector<10xf32>
    %80 = vector.multi_reduction <add>, %79, %cst_44 [1] : vector<10x10xf32> to vector<10xf32>
    %81 = vector.shape_cast %80 : vector<10xf32> to vector<10x1xf32>
    %82 = tpu.reciprocal %81 {approx = true} : vector<10x1xf32> -> vector<10x1xf32>
    %83 = vector.broadcast %82 : vector<10x1xf32> to vector<10x10xf32>
    %84 = arith.mulf %79, %83 : vector<10x10xf32>
    %cst_45 = arith.constant dense<0.000000e+00> : vector<10x8xf32>
    %85 = tpu.matmul %84, %70, %cst_45 {dimension_numbers = #tpu.dot_dimension_numbers<[1], [0], [0], [1], [0, 0, 1, 1], [], []>} : vector<10x10xf32>, vector<10x8xf32>, vector<10x8xf32> -> vector<10x8xf32>
    %c0_46 = arith.constant 0 : index
    %c8 = arith.constant 8 : index
    %86 = vector.load %arg37[%c0_46, %c8] : memref<10x32xf32, #tpu.memory_space<vmem>>, vector<10x8xf32>
    tpu.vector_store %arg37[%c0_46, %c8], %85 {strides = array<i32>} : memref<10x32xf32, #tpu.memory_space<vmem>>, vector<10x8xf32>,
    %87 = vector.extract_strided_slice %48 {offsets = [0, 16], sizes = [10, 8], strides = [1, 1]} : vector<10x96xf32> to vector<10x8xf32>
    %88 = vector.extract_strided_slice %48 {offsets = [0, 48], sizes = [10, 8], strides = [1, 1]} : vector<10x96xf32> to vector<10x8xf32>
    %89 = vector.extract_strided_slice %48 {offsets = [0, 80], sizes = [10, 8], strides = [1, 1]} : vector<10x96xf32> to vector<10x8xf32>
    %cst_47 = arith.constant dense<0.000000e+00> : vector<10x10xf32>
    %90 = tpu.matmul %87, %88, %cst_47 {dimension_numbers = #tpu.dot_dimension_numbers<[1], [1], [0], [0], [0, 0, 1, 0], [], []>} : vector<10x8xf32>, vector<10x8xf32>, vector<10x10xf32> -> vector<10x10xf32>
    %cst_48 = arith.constant 0.353553385 : f32
    %91 = vector.broadcast %cst_48 : f32 to vector<10x10xf32>
    %92 = arith.mulf %90, %91 : vector<10x10xf32>
    %93 = arith.addf %92, %19 : vector<10x10xf32>
    %cst_49 = arith.constant dense<0xFF800000> : vector<10xf32>
    %94 = vector.multi_reduction <maximumf>, %93, %cst_49 [1] : vector<10x10xf32> to vector<10xf32>
    %95 = vector.shape_cast %94 : vector<10xf32> to vector<10x1xf32>
    %96 = vector.broadcast %95 : vector<10x1xf32> to vector<10x10xf32>
    %97 = arith.subf %93, %96 : vector<10x10xf32>
    %98 = math.exp %97 : vector<10x10xf32>
    %cst_50 = arith.constant dense<0.000000e+00> : vector<10xf32>
    %99 = vector.multi_reduction <add>, %98, %cst_50 [1] : vector<10x10xf32> to vector<10xf32>
    %100 = vector.shape_cast %99 : vector<10xf32> to vector<10x1xf32>
    %101 = tpu.reciprocal %100 {approx = true} : vector<10x1xf32> -> vector<10x1xf32>
    %102 = vector.broadcast %101 : vector<10x1xf32> to vector<10x10xf32>
    %103 = arith.mulf %98, %102 : vector<10x10xf32>
    %cst_51 = arith.constant dense<0.000000e+00> : vector<10x8xf32>
    %104 = tpu.matmul %103, %89, %cst_51 {dimension_numbers = #tpu.dot_dimension_numbers<[1], [0], [0], [1], [0, 0, 1, 1], [], []>} : vector<10x10xf32>, vector<10x8xf32>, vector<10x8xf32> -> vector<10x8xf32>
    %c0_52 = arith.constant 0 : index
    %c16 = arith.constant 16 : index
    %105 = vector.load %arg37[%c0_52, %c16] : memref<10x32xf32, #tpu.memory_space<vmem>>, vector<10x8xf32>
    tpu.vector_store %arg37[%c0_52, %c16], %104 {strides = array<i32>} : memref<10x32xf32, #tpu.memory_space<vmem>>, vector<10x8xf32>,
    %106 = vector.extract_strided_slice %48 {offsets = [0, 24], sizes = [10, 8], strides = [1, 1]} : vector<10x96xf32> to vector<10x8xf32>
    %107 = vector.extract_strided_slice %48 {offsets = [0, 56], sizes = [10, 8], strides = [1, 1]} : vector<10x96xf32> to vector<10x8xf32>
    %108 = vector.extract_strided_slice %48 {offsets = [0, 88], sizes = [10, 8], strides = [1, 1]} : vector<10x96xf32> to vector<10x8xf32>
    %cst_53 = arith.constant dense<0.000000e+00> : vector<10x10xf32>
    %109 = tpu.matmul %106, %107, %cst_53 {dimension_numbers = #tpu.dot_dimension_numbers<[1], [1], [0], [0], [0, 0, 1, 0], [], []>} : vector<10x8xf32>, vector<10x8xf32>, vector<10x10xf32> -> vector<10x10xf32>
    %cst_54 = arith.constant 0.353553385 : f32
    %110 = vector.broadcast %cst_54 : f32 to vector<10x10xf32>
    %111 = arith.mulf %109, %110 : vector<10x10xf32>
    %112 = arith.addf %111, %19 : vector<10x10xf32>
    %cst_55 = arith.constant dense<0xFF800000> : vector<10xf32>
    %113 = vector.multi_reduction <maximumf>, %112, %cst_55 [1] : vector<10x10xf32> to vector<10xf32>
    %114 = vector.shape_cast %113 : vector<10xf32> to vector<10x1xf32>
    %115 = vector.broadcast %114 : vector<10x1xf32> to vector<10x10xf32>
    %116 = arith.subf %112, %115 : vector<10x10xf32>
    %117 = math.exp %116 : vector<10x10xf32>
    %cst_56 = arith.constant dense<0.000000e+00> : vector<10xf32>
    %118 = vector.multi_reduction <add>, %117, %cst_56 [1] : vector<10x10xf32> to vector<10xf32>
    %119 = vector.shape_cast %118 : vector<10xf32> to vector<10x1xf32>
    %120 = tpu.reciprocal %119 {approx = true} : vector<10x1xf32> -> vector<10x1xf32>
    %121 = vector.broadcast %120 : vector<10x1xf32> to vector<10x10xf32>
    %122 = arith.mulf %117, %121 : vector<10x10xf32>
    %cst_57 = arith.constant dense<0.000000e+00> : vector<10x8xf32>
    %123 = tpu.matmul %122, %108, %cst_57 {dimension_numbers = #tpu.dot_dimension_numbers<[1], [0], [0], [1], [0, 0, 1, 1], [], []>} : vector<10x10xf32>, vector<10x8xf32>, vector<10x8xf32> -> vector<10x8xf32>
    %c0_58 = arith.constant 0 : index
    %c24 = arith.constant 24 : index
    %124 = vector.load %arg37[%c0_58, %c24] : memref<10x32xf32, #tpu.memory_space<vmem>>, vector<10x8xf32>
    tpu.vector_store %arg37[%c0_58, %c24], %123 {strides = array<i32>} : memref<10x32xf32, #tpu.memory_space<vmem>>, vector<10x8xf32>,
    %c0_59 = arith.constant 0 : index
    %c0_60 = arith.constant 0 : index
    %125 = vector.load %arg37[%c0_59, %c0_60] : memref<10x32xf32, #tpu.memory_space<vmem>>, vector<10x32xf32>
    %c0_61 = arith.constant 0 : index
    %c0_62 = arith.constant 0 : index
    %126 = vector.load %arg11[%c0_61, %c0_62] : memref<32x32xf32, #tpu.memory_space<vmem>>, vector<32x32xf32>
    %cst_63 = arith.constant dense<0.000000e+00> : vector<10x32xf32>
    %127 = tpu.matmul %125, %126, %cst_63 {dimension_numbers = #tpu.dot_dimension_numbers<[1], [0], [0], [1], [0, 0, 1, 1], [], []>} : vector<10x32xf32>, vector<32x32xf32>, vector<10x32xf32> -> vector<10x32xf32>
    %c0_64 = arith.constant 0 : index
    %c0_65 = arith.constant 0 : index
    %128 = vector.load %arg12[%c0_64, %c0_65] : memref<1x32xf32, #tpu.memory_space<vmem>>, vector<1x32xf32>
    %129 = vector.broadcast %128 : vector<1x32xf32> to vector<10x32xf32>
    %130 = arith.addf %127, %129 : vector<10x32xf32>
    %131 = arith.addf %18, %130 : vector<10x32xf32>
    %c0_66 = arith.constant 0 : index
    %c0_67 = arith.constant 0 : index
    %132 = vector.load %arg13[%c0_66, %c0_67] : memref<1x32xf32, #tpu.memory_space<vmem>>, vector<1x32xf32>
    %c0_68 = arith.constant 0 : index
    %c0_69 = arith.constant 0 : index
    %133 = vector.load %arg14[%c0_68, %c0_69] : memref<1x32xf32, #tpu.memory_space<vmem>>, vector<1x32xf32>
    %cst_70 = arith.constant dense<0.000000e+00> : vector<10xf32>
    %134 = vector.multi_reduction <add>, %131, %cst_70 [1] : vector<10x32xf32> to vector<10xf32>
    %135 = vector.shape_cast %134 : vector<10xf32> to vector<10x1xf32>
    %cst_71 = arith.constant 3.200000e+01 : f32
    %136 = vector.broadcast %cst_71 : f32 to vector<10x1xf32>
    %137 = arith.divf %135, %136 : vector<10x1xf32>
    %138 = vector.broadcast %137 : vector<10x1xf32> to vector<10x32xf32>
    %139 = arith.subf %131, %138 : vector<10x32xf32>
    %140 = arith.mulf %139, %139 : vector<10x32xf32>
    %cst_72 = arith.constant dense<0.000000e+00> : vector<10xf32>
    %141 = vector.multi_reduction <add>, %140, %cst_72 [1] : vector<10x32xf32> to vector<10xf32>
    %142 = vector.shape_cast %141 : vector<10xf32> to vector<10x1xf32>
    %cst_73 = arith.constant 3.200000e+01 : f32
    %143 = vector.broadcast %cst_73 : f32 to vector<10x1xf32>
    %144 = arith.divf %142, %143 : vector<10x1xf32>
    %145 = vector.broadcast %137 : vector<10x1xf32> to vector<10x32xf32>
    %146 = arith.subf %131, %145 : vector<10x32xf32>
    %cst_74 = arith.constant 9.99999997E-7 : f32
    %147 = vector.broadcast %cst_74 : f32 to vector<10x1xf32>
    %148 = arith.addf %144, %147 : vector<10x1xf32>
    %149 = math.rsqrt %148 : vector<10x1xf32>
    %150 = vector.broadcast %149 : vector<10x1xf32> to vector<10x32xf32>
    %151 = arith.mulf %146, %150 : vector<10x32xf32>
    %152 = vector.broadcast %132 : vector<1x32xf32> to vector<10x32xf32>
    %153 = arith.mulf %151, %152 : vector<10x32xf32>
    %154 = vector.broadcast %133 : vector<1x32xf32> to vector<10x32xf32>
    %155 = arith.addf %153, %154 : vector<10x32xf32>
    %c0_75 = arith.constant 0 : index
    %c0_76 = arith.constant 0 : index
    %156 = vector.load %arg15[%c0_75, %c0_76] : memref<32x128xf32, #tpu.memory_space<vmem>>, vector<32x128xf32>
    %cst_77 = arith.constant dense<0.000000e+00> : vector<10x128xf32>
    %157 = tpu.matmul %155, %156, %cst_77 {dimension_numbers = #tpu.dot_dimension_numbers<[1], [0], [0], [1], [0, 0, 1, 1], [], []>} : vector<10x32xf32>, vector<32x128xf32>, vector<10x128xf32> -> vector<10x128xf32>
    %c0_78 = arith.constant 0 : index
    %c0_79 = arith.constant 0 : index
    %158 = vector.load %arg16[%c0_78, %c0_79] : memref<1x128xf32, #tpu.memory_space<vmem>>, vector<1x128xf32>
    %159 = vector.broadcast %158 : vector<1x128xf32> to vector<10x128xf32>
    %160 = arith.addf %157, %159 : vector<10x128xf32>
    %cst_80 = arith.constant 5.000000e-01 : f32
    %161 = vector.broadcast %cst_80 : f32 to vector<10x128xf32>
    %162 = arith.mulf %161, %160 : vector<10x128xf32>
    %cst_81 = arith.constant 0.707106769 : f32
    %163 = vector.broadcast %cst_81 : f32 to vector<10x128xf32>
    %164 = arith.mulf %160, %163 : vector<10x128xf32>
    %cst_82 = arith.constant 0.000000e+00 : f32
    %165 = vector.broadcast %cst_82 : f32 to vector<10x128xf32>
    %166 = arith.cmpf oge, %164, %165 : vector<10x128xf32>
    %cst_83 = arith.constant 1.000000e+00 : f32
    %cst_84 = arith.constant -1.000000e+00 : f32
    %167 = vector.broadcast %cst_83 : f32 to vector<10x128xf32>
    %168 = vector.broadcast %cst_84 : f32 to vector<10x128xf32>
    %169 = arith.select %166, %167, %168 : vector<10x128xi1>, vector<10x128xf32>
    %170 = math.absf %164 : vector<10x128xf32>
    %cst_85 = arith.constant 0.327591091 : f32
    %171 = vector.broadcast %cst_85 : f32 to vector<10x128xf32>
    %172 = arith.mulf %171, %170 : vector<10x128xf32>
    %cst_86 = arith.constant 1.000000e+00 : f32
    %173 = vector.broadcast %cst_86 : f32 to vector<10x128xf32>
    %174 = arith.addf %173, %172 : vector<10x128xf32>
    %cst_87 = arith.constant 1.000000e+00 : f32
    %175 = vector.broadcast %cst_87 : f32 to vector<10x128xf32>
    %176 = arith.divf %175, %174 : vector<10x128xf32>
    %cst_88 = arith.constant 1.06140542 : f32
    %177 = vector.broadcast %cst_88 : f32 to vector<10x128xf32>
    %178 = arith.mulf %177, %176 : vector<10x128xf32>
    %cst_89 = arith.constant -1.45315206 : f32
    %179 = vector.broadcast %cst_89 : f32 to vector<10x128xf32>
    %180 = arith.addf %178, %179 : vector<10x128xf32>
    %181 = arith.mulf %180, %176 : vector<10x128xf32>
    %cst_90 = arith.constant 1.42141378 : f32
    %182 = vector.broadcast %cst_90 : f32 to vector<10x128xf32>
    %183 = arith.addf %181, %182 : vector<10x128xf32>
    %184 = arith.mulf %183, %176 : vector<10x128xf32>
    %cst_91 = arith.constant -0.284496725 : f32
    %185 = vector.broadcast %cst_91 : f32 to vector<10x128xf32>
    %186 = arith.addf %184, %185 : vector<10x128xf32>
    %187 = arith.mulf %186, %176 : vector<10x128xf32>
    %cst_92 = arith.constant 0.254829586 : f32
    %188 = vector.broadcast %cst_92 : f32 to vector<10x128xf32>
    %189 = arith.addf %187, %188 : vector<10x128xf32>
    %190 = arith.mulf %189, %176 : vector<10x128xf32>
    %cst_93 = arith.constant 0.000000e+00 : f32
    %191 = vector.broadcast %cst_93 : f32 to vector<10x128xf32>
    %192 = arith.subf %191, %170 : vector<10x128xf32>
    %193 = arith.mulf %192, %170 : vector<10x128xf32>
    %194 = math.exp %193 : vector<10x128xf32>
    %195 = arith.mulf %190, %194 : vector<10x128xf32>
    %cst_94 = arith.constant 1.000000e+00 : f32
    %196 = vector.broadcast %cst_94 : f32 to vector<10x128xf32>
    %197 = arith.subf %196, %195 : vector<10x128xf32>
    %198 = arith.mulf %169, %197 : vector<10x128xf32>
    %cst_95 = arith.constant 1.000000e+00 : f32
    %199 = vector.broadcast %cst_95 : f32 to vector<10x128xf32>
    %200 = arith.addf %199, %198 : vector<10x128xf32>
    %201 = arith.mulf %162, %200 : vector<10x128xf32>
    %c0_96 = arith.constant 0 : index
    %c0_97 = arith.constant 0 : index
    %202 = vector.load %arg17[%c0_96, %c0_97] : memref<128x32xf32, #tpu.memory_space<vmem>>, vector<128x32xf32>
    %cst_98 = arith.constant dense<0.000000e+00> : vector<10x32xf32>
    %203 = tpu.matmul %201, %202, %cst_98 {dimension_numbers = #tpu.dot_dimension_numbers<[1], [0], [0], [1], [0, 0, 1, 1], [], []>} : vector<10x128xf32>, vector<128x32xf32>, vector<10x32xf32> -> vector<10x32xf32>
    %c0_99 = arith.constant 0 : index
    %c0_100 = arith.constant 0 : index
    %204 = vector.load %arg18[%c0_99, %c0_100] : memref<1x32xf32, #tpu.memory_space<vmem>>, vector<1x32xf32>
    %205 = vector.broadcast %204 : vector<1x32xf32> to vector<10x32xf32>
    %206 = arith.addf %203, %205 : vector<10x32xf32>
    %207 = arith.addf %131, %206 : vector<10x32xf32>
    %c0_101 = arith.constant 0 : index
    %c0_102 = arith.constant 0 : index
    %208 = vector.load %arg19[%c0_101, %c0_102] : memref<1x32xf32, #tpu.memory_space<vmem>>, vector<1x32xf32>
    %c0_103 = arith.constant 0 : index
    %c0_104 = arith.constant 0 : index
    %209 = vector.load %arg20[%c0_103, %c0_104] : memref<1x32xf32, #tpu.memory_space<vmem>>, vector<1x32xf32>
    %cst_105 = arith.constant dense<0.000000e+00> : vector<10xf32>
    %210 = vector.multi_reduction <add>, %207, %cst_105 [1] : vector<10x32xf32> to vector<10xf32>
    %211 = vector.shape_cast %210 : vector<10xf32> to vector<10x1xf32>
    %cst_106 = arith.constant 3.200000e+01 : f32
    %212 = vector.broadcast %cst_106 : f32 to vector<10x1xf32>
    %213 = arith.divf %211, %212 : vector<10x1xf32>
    %214 = vector.broadcast %213 : vector<10x1xf32> to vector<10x32xf32>
    %215 = arith.subf %207, %214 : vector<10x32xf32>
    %216 = arith.mulf %215, %215 : vector<10x32xf32>
    %cst_107 = arith.constant dense<0.000000e+00> : vector<10xf32>
    %217 = vector.multi_reduction <add>, %216, %cst_107 [1] : vector<10x32xf32> to vector<10xf32>
    %218 = vector.shape_cast %217 : vector<10xf32> to vector<10x1xf32>
    %cst_108 = arith.constant 3.200000e+01 : f32
    %219 = vector.broadcast %cst_108 : f32 to vector<10x1xf32>
    %220 = arith.divf %218, %219 : vector<10x1xf32>
    %221 = vector.broadcast %213 : vector<10x1xf32> to vector<10x32xf32>
    %222 = arith.subf %207, %221 : vector<10x32xf32>
    %cst_109 = arith.constant 9.99999997E-7 : f32
    %223 = vector.broadcast %cst_109 : f32 to vector<10x1xf32>
    %224 = arith.addf %220, %223 : vector<10x1xf32>
    %225 = math.rsqrt %224 : vector<10x1xf32>
    %226 = vector.broadcast %225 : vector<10x1xf32> to vector<10x32xf32>
    %227 = arith.mulf %222, %226 : vector<10x32xf32>
    %228 = vector.broadcast %208 : vector<1x32xf32> to vector<10x32xf32>
    %229 = arith.mulf %227, %228 : vector<10x32xf32>
    %230 = vector.broadcast %209 : vector<1x32xf32> to vector<10x32xf32>
    %231 = arith.addf %229, %230 : vector<10x32xf32>
    %c0_110 = arith.constant 0 : index
    %c0_111 = arith.constant 0 : index
    %232 = vector.load %arg21[%c0_110, %c0_111] : memref<32x96xf32, #tpu.memory_space<vmem>>, vector<32x96xf32>
    %cst_112 = arith.constant dense<0.000000e+00> : vector<10x96xf32>
    %233 = tpu.matmul %231, %232, %cst_112 {dimension_numbers = #tpu.dot_dimension_numbers<[1], [0], [0], [1], [0, 0, 1, 1], [], []>} : vector<10x32xf32>, vector<32x96xf32>, vector<10x96xf32> -> vector<10x96xf32>
    %c0_113 = arith.constant 0 : index
    %c0_114 = arith.constant 0 : index
    %234 = vector.load %arg22[%c0_113, %c0_114] : memref<1x96xf32, #tpu.memory_space<vmem>>, vector<1x96xf32>
    %235 = vector.broadcast %234 : vector<1x96xf32> to vector<10x96xf32>
    %236 = arith.addf %233, %235 : vector<10x96xf32>
    %237 = vector.extract_strided_slice %236 {offsets = [0, 0], sizes = [10, 8], strides = [1, 1]} : vector<10x96xf32> to vector<10x8xf32>
    %238 = vector.extract_strided_slice %236 {offsets = [0, 32], sizes = [10, 8], strides = [1, 1]} : vector<10x96xf32> to vector<10x8xf32>
    %239 = vector.extract_strided_slice %236 {offsets = [0, 64], sizes = [10, 8], strides = [1, 1]} : vector<10x96xf32> to vector<10x8xf32>
    %cst_115 = arith.constant dense<0.000000e+00> : vector<10x10xf32>
    %240 = tpu.matmul %237, %238, %cst_115 {dimension_numbers = #tpu.dot_dimension_numbers<[1], [1], [0], [0], [0, 0, 1, 0], [], []>} : vector<10x8xf32>, vector<10x8xf32>, vector<10x10xf32> -> vector<10x10xf32>
    %cst_116 = arith.constant 0.353553385 : f32
    %241 = vector.broadcast %cst_116 : f32 to vector<10x10xf32>
    %242 = arith.mulf %240, %241 : vector<10x10xf32>
    %243 = arith.addf %242, %19 : vector<10x10xf32>
    %cst_117 = arith.constant dense<0xFF800000> : vector<10xf32>
    %244 = vector.multi_reduction <maximumf>, %243, %cst_117 [1] : vector<10x10xf32> to vector<10xf32>
    %245 = vector.shape_cast %244 : vector<10xf32> to vector<10x1xf32>
    %246 = vector.broadcast %245 : vector<10x1xf32> to vector<10x10xf32>
    %247 = arith.subf %243, %246 : vector<10x10xf32>
    %248 = math.exp %247 : vector<10x10xf32>
    %cst_118 = arith.constant dense<0.000000e+00> : vector<10xf32>
    %249 = vector.multi_reduction <add>, %248, %cst_118 [1] : vector<10x10xf32> to vector<10xf32>
    %250 = vector.shape_cast %249 : vector<10xf32> to vector<10x1xf32>
    %251 = tpu.reciprocal %250 {approx = true} : vector<10x1xf32> -> vector<10x1xf32>
    %252 = vector.broadcast %251 : vector<10x1xf32> to vector<10x10xf32>
    %253 = arith.mulf %248, %252 : vector<10x10xf32>
    %cst_119 = arith.constant dense<0.000000e+00> : vector<10x8xf32>
    %254 = tpu.matmul %253, %239, %cst_119 {dimension_numbers = #tpu.dot_dimension_numbers<[1], [0], [0], [1], [0, 0, 1, 1], [], []>} : vector<10x10xf32>, vector<10x8xf32>, vector<10x8xf32> -> vector<10x8xf32>
    %c0_120 = arith.constant 0 : index
    %c0_121 = arith.constant 0 : index
    %255 = vector.load %arg37[%c0_120, %c0_121] : memref<10x32xf32, #tpu.memory_space<vmem>>, vector<10x8xf32>
    tpu.vector_store %arg37[%c0_120, %c0_121], %254 {strides = array<i32>} : memref<10x32xf32, #tpu.memory_space<vmem>>, vector<10x8xf32>,
    %256 = vector.extract_strided_slice %236 {offsets = [0, 8], sizes = [10, 8], strides = [1, 1]} : vector<10x96xf32> to vector<10x8xf32>
    %257 = vector.extract_strided_slice %236 {offsets = [0, 40], sizes = [10, 8], strides = [1, 1]} : vector<10x96xf32> to vector<10x8xf32>
    %258 = vector.extract_strided_slice %236 {offsets = [0, 72], sizes = [10, 8], strides = [1, 1]} : vector<10x96xf32> to vector<10x8xf32>
    %cst_122 = arith.constant dense<0.000000e+00> : vector<10x10xf32>
    %259 = tpu.matmul %256, %257, %cst_122 {dimension_numbers = #tpu.dot_dimension_numbers<[1], [1], [0], [0], [0, 0, 1, 0], [], []>} : vector<10x8xf32>, vector<10x8xf32>, vector<10x10xf32> -> vector<10x10xf32>
    %cst_123 = arith.constant 0.353553385 : f32
    %260 = vector.broadcast %cst_123 : f32 to vector<10x10xf32>
    %261 = arith.mulf %259, %260 : vector<10x10xf32>
    %262 = arith.addf %261, %19 : vector<10x10xf32>
    %cst_124 = arith.constant dense<0xFF800000> : vector<10xf32>
    %263 = vector.multi_reduction <maximumf>, %262, %cst_124 [1] : vector<10x10xf32> to vector<10xf32>
    %264 = vector.shape_cast %263 : vector<10xf32> to vector<10x1xf32>
    %265 = vector.broadcast %264 : vector<10x1xf32> to vector<10x10xf32>
    %266 = arith.subf %262, %265 : vector<10x10xf32>
    %267 = math.exp %266 : vector<10x10xf32>
    %cst_125 = arith.constant dense<0.000000e+00> : vector<10xf32>
    %268 = vector.multi_reduction <add>, %267, %cst_125 [1] : vector<10x10xf32> to vector<10xf32>
    %269 = vector.shape_cast %268 : vector<10xf32> to vector<10x1xf32>
    %270 = tpu.reciprocal %269 {approx = true} : vector<10x1xf32> -> vector<10x1xf32>
    %271 = vector.broadcast %270 : vector<10x1xf32> to vector<10x10xf32>
    %272 = arith.mulf %267, %271 : vector<10x10xf32>
    %cst_126 = arith.constant dense<0.000000e+00> : vector<10x8xf32>
    %273 = tpu.matmul %272, %258, %cst_126 {dimension_numbers = #tpu.dot_dimension_numbers<[1], [0], [0], [1], [0, 0, 1, 1], [], []>} : vector<10x10xf32>, vector<10x8xf32>, vector<10x8xf32> -> vector<10x8xf32>
    %c0_127 = arith.constant 0 : index
    %c8_128 = arith.constant 8 : index
    %274 = vector.load %arg37[%c0_127, %c8_128] : memref<10x32xf32, #tpu.memory_space<vmem>>, vector<10x8xf32>
    tpu.vector_store %arg37[%c0_127, %c8_128], %273 {strides = array<i32>} : memref<10x32xf32, #tpu.memory_space<vmem>>, vector<10x8xf32>,
    %275 = vector.extract_strided_slice %236 {offsets = [0, 16], sizes = [10, 8], strides = [1, 1]} : vector<10x96xf32> to vector<10x8xf32>
    %276 = vector.extract_strided_slice %236 {offsets = [0, 48], sizes = [10, 8], strides = [1, 1]} : vector<10x96xf32> to vector<10x8xf32>
    %277 = vector.extract_strided_slice %236 {offsets = [0, 80], sizes = [10, 8], strides = [1, 1]} : vector<10x96xf32> to vector<10x8xf32>
    %cst_129 = arith.constant dense<0.000000e+00> : vector<10x10xf32>
    %278 = tpu.matmul %275, %276, %cst_129 {dimension_numbers = #tpu.dot_dimension_numbers<[1], [1], [0], [0], [0, 0, 1, 0], [], []>} : vector<10x8xf32>, vector<10x8xf32>, vector<10x10xf32> -> vector<10x10xf32>
    %cst_130 = arith.constant 0.353553385 : f32
    %279 = vector.broadcast %cst_130 : f32 to vector<10x10xf32>
    %280 = arith.mulf %278, %279 : vector<10x10xf32>
    %281 = arith.addf %280, %19 : vector<10x10xf32>
    %cst_131 = arith.constant dense<0xFF800000> : vector<10xf32>
    %282 = vector.multi_reduction <maximumf>, %281, %cst_131 [1] : vector<10x10xf32> to vector<10xf32>
    %283 = vector.shape_cast %282 : vector<10xf32> to vector<10x1xf32>
    %284 = vector.broadcast %283 : vector<10x1xf32> to vector<10x10xf32>
    %285 = arith.subf %281, %284 : vector<10x10xf32>
    %286 = math.exp %285 : vector<10x10xf32>
    %cst_132 = arith.constant dense<0.000000e+00> : vector<10xf32>
    %287 = vector.multi_reduction <add>, %286, %cst_132 [1] : vector<10x10xf32> to vector<10xf32>
    %288 = vector.shape_cast %287 : vector<10xf32> to vector<10x1xf32>
    %289 = tpu.reciprocal %288 {approx = true} : vector<10x1xf32> -> vector<10x1xf32>
    %290 = vector.broadcast %289 : vector<10x1xf32> to vector<10x10xf32>
    %291 = arith.mulf %286, %290 : vector<10x10xf32>
    %cst_133 = arith.constant dense<0.000000e+00> : vector<10x8xf32>
    %292 = tpu.matmul %291, %277, %cst_133 {dimension_numbers = #tpu.dot_dimension_numbers<[1], [0], [0], [1], [0, 0, 1, 1], [], []>} : vector<10x10xf32>, vector<10x8xf32>, vector<10x8xf32> -> vector<10x8xf32>
    %c0_134 = arith.constant 0 : index
    %c16_135 = arith.constant 16 : index
    %293 = vector.load %arg37[%c0_134, %c16_135] : memref<10x32xf32, #tpu.memory_space<vmem>>, vector<10x8xf32>
    tpu.vector_store %arg37[%c0_134, %c16_135], %292 {strides = array<i32>} : memref<10x32xf32, #tpu.memory_space<vmem>>, vector<10x8xf32>,
    %294 = vector.extract_strided_slice %236 {offsets = [0, 24], sizes = [10, 8], strides = [1, 1]} : vector<10x96xf32> to vector<10x8xf32>
    %295 = vector.extract_strided_slice %236 {offsets = [0, 56], sizes = [10, 8], strides = [1, 1]} : vector<10x96xf32> to vector<10x8xf32>
    %296 = vector.extract_strided_slice %236 {offsets = [0, 88], sizes = [10, 8], strides = [1, 1]} : vector<10x96xf32> to vector<10x8xf32>
    %cst_136 = arith.constant dense<0.000000e+00> : vector<10x10xf32>
    %297 = tpu.matmul %294, %295, %cst_136 {dimension_numbers = #tpu.dot_dimension_numbers<[1], [1], [0], [0], [0, 0, 1, 0], [], []>} : vector<10x8xf32>, vector<10x8xf32>, vector<10x10xf32> -> vector<10x10xf32>
    %cst_137 = arith.constant 0.353553385 : f32
    %298 = vector.broadcast %cst_137 : f32 to vector<10x10xf32>
    %299 = arith.mulf %297, %298 : vector<10x10xf32>
    %300 = arith.addf %299, %19 : vector<10x10xf32>
    %cst_138 = arith.constant dense<0xFF800000> : vector<10xf32>
    %301 = vector.multi_reduction <maximumf>, %300, %cst_138 [1] : vector<10x10xf32> to vector<10xf32>
    %302 = vector.shape_cast %301 : vector<10xf32> to vector<10x1xf32>
    %303 = vector.broadcast %302 : vector<10x1xf32> to vector<10x10xf32>
    %304 = arith.subf %300, %303 : vector<10x10xf32>
    %305 = math.exp %304 : vector<10x10xf32>
    %cst_139 = arith.constant dense<0.000000e+00> : vector<10xf32>
    %306 = vector.multi_reduction <add>, %305, %cst_139 [1] : vector<10x10xf32> to vector<10xf32>
    %307 = vector.shape_cast %306 : vector<10xf32> to vector<10x1xf32>
    %308 = tpu.reciprocal %307 {approx = true} : vector<10x1xf32> -> vector<10x1xf32>
    %309 = vector.broadcast %308 : vector<10x1xf32> to vector<10x10xf32>
    %310 = arith.mulf %305, %309 : vector<10x10xf32>
    %cst_140 = arith.constant dense<0.000000e+00> : vector<10x8xf32>
    %311 = tpu.matmul %310, %296, %cst_140 {dimension_numbers = #tpu.dot_dimension_numbers<[1], [0], [0], [1], [0, 0, 1, 1], [], []>} : vector<10x10xf32>, vector<10x8xf32>, vector<10x8xf32> -> vector<10x8xf32>
    %c0_141 = arith.constant 0 : index
    %c24_142 = arith.constant 24 : index
    %312 = vector.load %arg37[%c0_141, %c24_142] : memref<10x32xf32, #tpu.memory_space<vmem>>, vector<10x8xf32>
    tpu.vector_store %arg37[%c0_141, %c24_142], %311 {strides = array<i32>} : memref<10x32xf32, #tpu.memory_space<vmem>>, vector<10x8xf32>,
    %c0_143 = arith.constant 0 : index
    %c0_144 = arith.constant 0 : index
    %313 = vector.load %arg37[%c0_143, %c0_144] : memref<10x32xf32, #tpu.memory_space<vmem>>, vector<10x32xf32>
    %c0_145 = arith.constant 0 : index
    %c0_146 = arith.constant 0 : index
    %314 = vector.load %arg23[%c0_145, %c0_146] : memref<32x32xf32, #tpu.memory_space<vmem>>, vector<32x32xf32>
    %cst_147 = arith.constant dense<0.000000e+00> : vector<10x32xf32>
    %315 = tpu.matmul %313, %314, %cst_147 {dimension_numbers = #tpu.dot_dimension_numbers<[1], [0], [0], [1], [0, 0, 1, 1], [], []>} : vector<10x32xf32>, vector<32x32xf32>, vector<10x32xf32> -> vector<10x32xf32>
    %c0_148 = arith.constant 0 : index
    %c0_149 = arith.constant 0 : index
    %316 = vector.load %arg24[%c0_148, %c0_149] : memref<1x32xf32, #tpu.memory_space<vmem>>, vector<1x32xf32>
    %317 = vector.broadcast %316 : vector<1x32xf32> to vector<10x32xf32>
    %318 = arith.addf %315, %317 : vector<10x32xf32>
    %319 = arith.addf %207, %318 : vector<10x32xf32>
    %c0_150 = arith.constant 0 : index
    %c0_151 = arith.constant 0 : index
    %320 = vector.load %arg25[%c0_150, %c0_151] : memref<1x32xf32, #tpu.memory_space<vmem>>, vector<1x32xf32>
    %c0_152 = arith.constant 0 : index
    %c0_153 = arith.constant 0 : index
    %321 = vector.load %arg26[%c0_152, %c0_153] : memref<1x32xf32, #tpu.memory_space<vmem>>, vector<1x32xf32>
    %cst_154 = arith.constant dense<0.000000e+00> : vector<10xf32>
    %322 = vector.multi_reduction <add>, %319, %cst_154 [1] : vector<10x32xf32> to vector<10xf32>
    %323 = vector.shape_cast %322 : vector<10xf32> to vector<10x1xf32>
    %cst_155 = arith.constant 3.200000e+01 : f32
    %324 = vector.broadcast %cst_155 : f32 to vector<10x1xf32>
    %325 = arith.divf %323, %324 : vector<10x1xf32>
    %326 = vector.broadcast %325 : vector<10x1xf32> to vector<10x32xf32>
    %327 = arith.subf %319, %326 : vector<10x32xf32>
    %328 = arith.mulf %327, %327 : vector<10x32xf32>
    %cst_156 = arith.constant dense<0.000000e+00> : vector<10xf32>
    %329 = vector.multi_reduction <add>, %328, %cst_156 [1] : vector<10x32xf32> to vector<10xf32>
    %330 = vector.shape_cast %329 : vector<10xf32> to vector<10x1xf32>
    %cst_157 = arith.constant 3.200000e+01 : f32
    %331 = vector.broadcast %cst_157 : f32 to vector<10x1xf32>
    %332 = arith.divf %330, %331 : vector<10x1xf32>
    %333 = vector.broadcast %325 : vector<10x1xf32> to vector<10x32xf32>
    %334 = arith.subf %319, %333 : vector<10x32xf32>
    %cst_158 = arith.constant 9.99999997E-7 : f32
    %335 = vector.broadcast %cst_158 : f32 to vector<10x1xf32>
    %336 = arith.addf %332, %335 : vector<10x1xf32>
    %337 = math.rsqrt %336 : vector<10x1xf32>
    %338 = vector.broadcast %337 : vector<10x1xf32> to vector<10x32xf32>
    %339 = arith.mulf %334, %338 : vector<10x32xf32>
    %340 = vector.broadcast %320 : vector<1x32xf32> to vector<10x32xf32>
    %341 = arith.mulf %339, %340 : vector<10x32xf32>
    %342 = vector.broadcast %321 : vector<1x32xf32> to vector<10x32xf32>
    %343 = arith.addf %341, %342 : vector<10x32xf32>
    %c0_159 = arith.constant 0 : index
    %c0_160 = arith.constant 0 : index
    %344 = vector.load %arg27[%c0_159, %c0_160] : memref<32x128xf32, #tpu.memory_space<vmem>>, vector<32x128xf32>
    %cst_161 = arith.constant dense<0.000000e+00> : vector<10x128xf32>
    %345 = tpu.matmul %343, %344, %cst_161 {dimension_numbers = #tpu.dot_dimension_numbers<[1], [0], [0], [1], [0, 0, 1, 1], [], []>} : vector<10x32xf32>, vector<32x128xf32>, vector<10x128xf32> -> vector<10x128xf32>
    %c0_162 = arith.constant 0 : index
    %c0_163 = arith.constant 0 : index
    %346 = vector.load %arg28[%c0_162, %c0_163] : memref<1x128xf32, #tpu.memory_space<vmem>>, vector<1x128xf32>
    %347 = vector.broadcast %346 : vector<1x128xf32> to vector<10x128xf32>
    %348 = arith.addf %345, %347 : vector<10x128xf32>
    %cst_164 = arith.constant 5.000000e-01 : f32
    %349 = vector.broadcast %cst_164 : f32 to vector<10x128xf32>
    %350 = arith.mulf %349, %348 : vector<10x128xf32>
    %cst_165 = arith.constant 0.707106769 : f32
    %351 = vector.broadcast %cst_165 : f32 to vector<10x128xf32>
    %352 = arith.mulf %348, %351 : vector<10x128xf32>
    %cst_166 = arith.constant 0.000000e+00 : f32
    %353 = vector.broadcast %cst_166 : f32 to vector<10x128xf32>
    %354 = arith.cmpf oge, %352, %353 : vector<10x128xf32>
    %cst_167 = arith.constant 1.000000e+00 : f32
    %cst_168 = arith.constant -1.000000e+00 : f32
    %355 = vector.broadcast %cst_167 : f32 to vector<10x128xf32>
    %356 = vector.broadcast %cst_168 : f32 to vector<10x128xf32>
    %357 = arith.select %354, %355, %356 : vector<10x128xi1>, vector<10x128xf32>
    %358 = math.absf %352 : vector<10x128xf32>
    %cst_169 = arith.constant 0.327591091 : f32
    %359 = vector.broadcast %cst_169 : f32 to vector<10x128xf32>
    %360 = arith.mulf %359, %358 : vector<10x128xf32>
    %cst_170 = arith.constant 1.000000e+00 : f32
    %361 = vector.broadcast %cst_170 : f32 to vector<10x128xf32>
    %362 = arith.addf %361, %360 : vector<10x128xf32>
    %cst_171 = arith.constant 1.000000e+00 : f32
    %363 = vector.broadcast %cst_171 : f32 to vector<10x128xf32>
    %364 = arith.divf %363, %362 : vector<10x128xf32>
    %cst_172 = arith.constant 1.06140542 : f32
    %365 = vector.broadcast %cst_172 : f32 to vector<10x128xf32>
    %366 = arith.mulf %365, %364 : vector<10x128xf32>
    %cst_173 = arith.constant -1.45315206 : f32
    %367 = vector.broadcast %cst_173 : f32 to vector<10x128xf32>
    %368 = arith.addf %366, %367 : vector<10x128xf32>
    %369 = arith.mulf %368, %364 : vector<10x128xf32>
    %cst_174 = arith.constant 1.42141378 : f32
    %370 = vector.broadcast %cst_174 : f32 to vector<10x128xf32>
    %371 = arith.addf %369, %370 : vector<10x128xf32>
    %372 = arith.mulf %371, %364 : vector<10x128xf32>
    %cst_175 = arith.constant -0.284496725 : f32
    %373 = vector.broadcast %cst_175 : f32 to vector<10x128xf32>
    %374 = arith.addf %372, %373 : vector<10x128xf32>
    %375 = arith.mulf %374, %364 : vector<10x128xf32>
    %cst_176 = arith.constant 0.254829586 : f32
    %376 = vector.broadcast %cst_176 : f32 to vector<10x128xf32>
    %377 = arith.addf %375, %376 : vector<10x128xf32>
    %378 = arith.mulf %377, %364 : vector<10x128xf32>
    %cst_177 = arith.constant 0.000000e+00 : f32
    %379 = vector.broadcast %cst_177 : f32 to vector<10x128xf32>
    %380 = arith.subf %379, %358 : vector<10x128xf32>
    %381 = arith.mulf %380, %358 : vector<10x128xf32>
    %382 = math.exp %381 : vector<10x128xf32>
    %383 = arith.mulf %378, %382 : vector<10x128xf32>
    %cst_178 = arith.constant 1.000000e+00 : f32
    %384 = vector.broadcast %cst_178 : f32 to vector<10x128xf32>
    %385 = arith.subf %384, %383 : vector<10x128xf32>
    %386 = arith.mulf %357, %385 : vector<10x128xf32>
    %cst_179 = arith.constant 1.000000e+00 : f32
    %387 = vector.broadcast %cst_179 : f32 to vector<10x128xf32>
    %388 = arith.addf %387, %386 : vector<10x128xf32>
    %389 = arith.mulf %350, %388 : vector<10x128xf32>
    %c0_180 = arith.constant 0 : index
    %c0_181 = arith.constant 0 : index
    %390 = vector.load %arg29[%c0_180, %c0_181] : memref<128x32xf32, #tpu.memory_space<vmem>>, vector<128x32xf32>
    %cst_182 = arith.constant dense<0.000000e+00> : vector<10x32xf32>
    %391 = tpu.matmul %389, %390, %cst_182 {dimension_numbers = #tpu.dot_dimension_numbers<[1], [0], [0], [1], [0, 0, 1, 1], [], []>} : vector<10x128xf32>, vector<128x32xf32>, vector<10x32xf32> -> vector<10x32xf32>
    %c0_183 = arith.constant 0 : index
    %c0_184 = arith.constant 0 : index
    %392 = vector.load %arg30[%c0_183, %c0_184] : memref<1x32xf32, #tpu.memory_space<vmem>>, vector<1x32xf32>
    %393 = vector.broadcast %392 : vector<1x32xf32> to vector<10x32xf32>
    %394 = arith.addf %391, %393 : vector<10x32xf32>
    %395 = arith.addf %319, %394 : vector<10x32xf32>
    %c0_185 = arith.constant 0 : index
    %c0_186 = arith.constant 0 : index
    %396 = vector.load %arg31[%c0_185, %c0_186] : memref<1x32xf32, #tpu.memory_space<vmem>>, vector<1x32xf32>
    %c0_187 = arith.constant 0 : index
    %c0_188 = arith.constant 0 : index
    %397 = vector.load %arg32[%c0_187, %c0_188] : memref<1x32xf32, #tpu.memory_space<vmem>>, vector<1x32xf32>
    %cst_189 = arith.constant dense<0.000000e+00> : vector<10xf32>
    %398 = vector.multi_reduction <add>, %395, %cst_189 [1] : vector<10x32xf32> to vector<10xf32>
    %399 = vector.shape_cast %398 : vector<10xf32> to vector<10x1xf32>
    %cst_190 = arith.constant 3.200000e+01 : f32
    %400 = vector.broadcast %cst_190 : f32 to vector<10x1xf32>
    %401 = arith.divf %399, %400 : vector<10x1xf32>
    %402 = vector.broadcast %401 : vector<10x1xf32> to vector<10x32xf32>
    %403 = arith.subf %395, %402 : vector<10x32xf32>
    %404 = arith.mulf %403, %403 : vector<10x32xf32>
    %cst_191 = arith.constant dense<0.000000e+00> : vector<10xf32>
    %405 = vector.multi_reduction <add>, %404, %cst_191 [1] : vector<10x32xf32> to vector<10xf32>
    %406 = vector.shape_cast %405 : vector<10xf32> to vector<10x1xf32>
    %cst_192 = arith.constant 3.200000e+01 : f32
    %407 = vector.broadcast %cst_192 : f32 to vector<10x1xf32>
    %408 = arith.divf %406, %407 : vector<10x1xf32>
    %409 = vector.broadcast %401 : vector<10x1xf32> to vector<10x32xf32>
    %410 = arith.subf %395, %409 : vector<10x32xf32>
    %cst_193 = arith.constant 9.99999997E-7 : f32
    %411 = vector.broadcast %cst_193 : f32 to vector<10x1xf32>
    %412 = arith.addf %408, %411 : vector<10x1xf32>
    %413 = math.rsqrt %412 : vector<10x1xf32>
    %414 = vector.broadcast %413 : vector<10x1xf32> to vector<10x32xf32>
    %415 = arith.mulf %410, %414 : vector<10x32xf32>
    %416 = vector.broadcast %396 : vector<1x32xf32> to vector<10x32xf32>
    %417 = arith.mulf %415, %416 : vector<10x32xf32>
    %418 = vector.broadcast %397 : vector<1x32xf32> to vector<10x32xf32>
    %419 = arith.addf %417, %418 : vector<10x32xf32>
    %c0_194 = arith.constant 0 : index
    %c0_195 = arith.constant 0 : index
    %420 = vector.load %arg33[%c0_194, %c0_195] : memref<32x10xf32, #tpu.memory_space<vmem>>, vector<32x10xf32>
    %cst_196 = arith.constant dense<0.000000e+00> : vector<10x10xf32>
    %421 = tpu.matmul %419, %420, %cst_196 {dimension_numbers = #tpu.dot_dimension_numbers<[1], [0], [0], [1], [0, 0, 1, 1], [], []>} : vector<10x32xf32>, vector<32x10xf32>, vector<10x10xf32> -> vector<10x10xf32>
    %c0_197 = arith.constant 0 : index
    %c0_198 = arith.constant 0 : index
    %422 = vector.load %arg34[%c0_197, %c0_198] : memref<1x10xf32, #tpu.memory_space<vmem>>, vector<1x10xf32>
    %423 = vector.broadcast %422 : vector<1x10xf32> to vector<10x10xf32>
    %424 = arith.addf %421, %423 : vector<10x10xf32>
    %425 = vector.extract_strided_slice %424 {offsets = [0, 0], sizes = [1, 10], strides = [1, 1]} : vector<10x10xf32> to vector<1x10xf32>
    %c0_199 = arith.constant 0 : index
    %c0_200 = arith.constant 0 : index
    %426 = vector.load %arg35[%c0_199, %c0_200] : memref<2x10xf32, #tpu.memory_space<vmem>>, vector<1x10xf32>
    tpu.vector_store %arg35[%c0_199, %c0_200], %425 {strides = array<i32>} : memref<2x10xf32, #tpu.memory_space<vmem>>, vector<1x10xf32>,
    %427 = vector.extract_strided_slice %424 {offsets = [5, 0], sizes = [1, 10], strides = [1, 1]} : vector<10x10xf32> to vector<1x10xf32>
    %c1_201 = arith.constant 1 : index
    %c0_202 = arith.constant 0 : index
    %428 = vector.load %arg35[%c1_201, %c0_202] : memref<2x10xf32, #tpu.memory_space<vmem>>, vector<1x10xf32>
    tpu.vector_store %arg35[%c1_201, %c0_202], %427 {strides = array<i32>} : memref<2x10xf32, #tpu.memory_space<vmem>>, vector<1x10xf32>,
    return
  }
  func.func @transform_0(%arg0: i32) -> (i32, i32) {
    %c0_i32 = arith.constant 0 : i32
    %c0_i32_0 = arith.constant 0 : i32
    %c0_i32_1 = arith.constant 0 : i32
    return %c0_i32, %c0_i32_0 : i32, i32
  }
  func.func @transform_1(%arg0: i32) -> (i32, i32) {
    %c0_i32 = arith.constant 0 : i32
    %c0_i32_0 = arith.constant 0 : i32
    %c0_i32_1 = arith.constant 0 : i32
    return %c0_i32, %c0_i32_0 : i32, i32
  }
  func.func @transform_2(%arg0: i32) -> (i32, i32) {
    %c0_i32 = arith.constant 0 : i32
    %c0_i32_0 = arith.constant 0 : i32
    %c0_i32_1 = arith.constant 0 : i32
    return %c0_i32, %c0_i32_0 : i32, i32
  }
  func.func @transform_3(%arg0: i32) -> (i32, i32) {
    %c0_i32 = arith.constant 0 : i32
    %c0_i32_0 = arith.constant 0 : i32
    %c0_i32_1 = arith.constant 0 : i32
    return %c0_i32, %c0_i32_0 : i32, i32
  }
  func.func @transform_4(%arg0: i32) -> (i32, i32) {
    %c0_i32 = arith.constant 0 : i32
    %c0_i32_0 = arith.constant 0 : i32
    %c0_i32_1 = arith.constant 0 : i32
    return %c0_i32, %c0_i32_0 : i32, i32
  }
  func.func @transform_5(%arg0: i32) -> (i32, i32) {
    %c0_i32 = arith.constant 0 : i32
    %c0_i32_0 = arith.constant 0 : i32
    %c0_i32_1 = arith.constant 0 : i32
    return %c0_i32, %c0_i32_0 : i32, i32
  }
  func.func @transform_6(%arg0: i32) -> (i32, i32) {
    %c0_i32 = arith.constant 0 : i32
    %c0_i32_0 = arith.constant 0 : i32
    %c0_i32_1 = arith.constant 0 : i32
    return %c0_i32, %c0_i32_0 : i32, i32
  }
  func.func @transform_7(%arg0: i32) -> (i32, i32) {
    %c0_i32 = arith.constant 0 : i32
    %c0_i32_0 = arith.constant 0 : i32
    %c0_i32_1 = arith.constant 0 : i32
    return %c0_i32, %c0_i32_0 : i32, i32
  }
  func.func @transform_8(%arg0: i32) -> (i32, i32) {
    %c0_i32 = arith.constant 0 : i32
    %c0_i32_0 = arith.constant 0 : i32
    %c0_i32_1 = arith.constant 0 : i32
    return %c0_i32, %c0_i32_0 : i32, i32
  }
  func.func @transform_9(%arg0: i32) -> (i32, i32) {
    %c0_i32 = arith.constant 0 : i32
    %c0_i32_0 = arith.constant 0 : i32
    %c0_i32_1 = arith.constant 0 : i32
    return %c0_i32, %c0_i32_0 : i32, i32
  }
  func.func @transform_10(%arg0: i32) -> (i32, i32) {
    %c0_i32 = arith.constant 0 : i32
    %c0_i32_0 = arith.constant 0 : i32
    %c0_i32_1 = arith.constant 0 : i32
    return %c0_i32, %c0_i32_0 : i32, i32
  }
  func.func @transform_11(%arg0: i32) -> (i32, i32) {
    %c0_i32 = arith.constant 0 : i32
    %c0_i32_0 = arith.constant 0 : i32
    %c0_i32_1 = arith.constant 0 : i32
    return %c0_i32, %c0_i32_0 : i32, i32
  }
  func.func @transform_12(%arg0: i32) -> (i32, i32) {
    %c0_i32 = arith.constant 0 : i32
    %c0_i32_0 = arith.constant 0 : i32
    %c0_i32_1 = arith.constant 0 : i32
    return %c0_i32, %c0_i32_0 : i32, i32
  }
  func.func @transform_13(%arg0: i32) -> (i32, i32) {
    %c0_i32 = arith.constant 0 : i32
    %c0_i32_0 = arith.constant 0 : i32
    %c0_i32_1 = arith.constant 0 : i32
    return %c0_i32, %c0_i32_0 : i32, i32
  }
  func.func @transform_14(%arg0: i32) -> (i32, i32) {
    %c0_i32 = arith.constant 0 : i32
    %c0_i32_0 = arith.constant 0 : i32
    %c0_i32_1 = arith.constant 0 : i32
    return %c0_i32, %c0_i32_0 : i32, i32
  }
  func.func @transform_15(%arg0: i32) -> (i32, i32) {
    %c0_i32 = arith.constant 0 : i32
    %c0_i32_0 = arith.constant 0 : i32
    %c0_i32_1 = arith.constant 0 : i32
    return %c0_i32, %c0_i32_0 : i32, i32
  }
  func.func @transform_16(%arg0: i32) -> (i32, i32) {
    %c0_i32 = arith.constant 0 : i32
    %c0_i32_0 = arith.constant 0 : i32
    %c0_i32_1 = arith.constant 0 : i32
    return %c0_i32, %c0_i32_0 : i32, i32
  }
  func.func @transform_17(%arg0: i32) -> (i32, i32) {
    %c0_i32 = arith.constant 0 : i32
    %c0_i32_0 = arith.constant 0 : i32
    %c0_i32_1 = arith.constant 0 : i32
    return %c0_i32, %c0_i32_0 : i32, i32
  }
  func.func @transform_18(%arg0: i32) -> (i32, i32) {
    %c0_i32 = arith.constant 0 : i32
    %c0_i32_0 = arith.constant 0 : i32
    %c0_i32_1 = arith.constant 0 : i32
    return %c0_i32, %c0_i32_0 : i32, i32
  }
  func.func @transform_19(%arg0: i32) -> (i32, i32) {
    %c0_i32 = arith.constant 0 : i32
    %c0_i32_0 = arith.constant 0 : i32
    %c0_i32_1 = arith.constant 0 : i32
    return %c0_i32, %c0_i32_0 : i32, i32
  }
  func.func @transform_20(%arg0: i32) -> (i32, i32) {
    %c0_i32 = arith.constant 0 : i32
    %c0_i32_0 = arith.constant 0 : i32
    %c0_i32_1 = arith.constant 0 : i32
    return %c0_i32, %c0_i32_0 : i32, i32
  }
  func.func @transform_21(%arg0: i32) -> (i32, i32) {
    %c0_i32 = arith.constant 0 : i32
    %c0_i32_0 = arith.constant 0 : i32
    %c0_i32_1 = arith.constant 0 : i32
    return %c0_i32, %c0_i32_0 : i32, i32
  }
  func.func @transform_22(%arg0: i32) -> (i32, i32) {
    %c0_i32 = arith.constant 0 : i32
    %c0_i32_0 = arith.constant 0 : i32
    %c0_i32_1 = arith.constant 0 : i32
    return %c0_i32, %c0_i32_0 : i32, i32
  }
  func.func @transform_23(%arg0: i32) -> (i32, i32) {
    %c0_i32 = arith.constant 0 : i32
    %c0_i32_0 = arith.constant 0 : i32
    %c0_i32_1 = arith.constant 0 : i32
    return %c0_i32, %c0_i32_0 : i32, i32
  }
  func.func @transform_24(%arg0: i32) -> (i32, i32) {
    %c0_i32 = arith.constant 0 : i32
    %c0_i32_0 = arith.constant 0 : i32
    %c0_i32_1 = arith.constant 0 : i32
    return %c0_i32, %c0_i32_0 : i32, i32
  }
  func.func @transform_25(%arg0: i32) -> (i32, i32) {
    %c0_i32 = arith.constant 0 : i32
    %c0_i32_0 = arith.constant 0 : i32
    %c0_i32_1 = arith.constant 0 : i32
    return %c0_i32, %c0_i32_0 : i32, i32
  }
  func.func @transform_26(%arg0: i32) -> (i32, i32) {
    %c0_i32 = arith.constant 0 : i32
    %c0_i32_0 = arith.constant 0 : i32
    %c0_i32_1 = arith.constant 0 : i32
    return %c0_i32, %c0_i32_0 : i32, i32
  }
  func.func @transform_27(%arg0: i32) -> (i32, i32) {
    %c0_i32 = arith.constant 0 : i32
    %c0_i32_0 = arith.constant 0 : i32
    %c0_i32_1 = arith.constant 0 : i32
    return %c0_i32, %c0_i32_0 : i32, i32
  }
  func.func @transform_28(%arg0: i32) -> (i32, i32) {
    %c0_i32 = arith.constant 0 : i32
    %c0_i32_0 = arith.constant 0 : i32
    %c0_i32_1 = arith.constant 0 : i32
    return %c0_i32, %c0_i32_0 : i32, i32
  }
  func.func @transform_29(%arg0: i32) -> (i32, i32) {
    %c0_i32 = arith.constant 0 : i32
    %c0_i32_0 = arith.constant 0 : i32
    %c0_i32_1 = arith.constant 0 : i32
    return %c0_i32, %c0_i32_0 : i32, i32
  }
  func.func @transform_30(%arg0: i32) -> (i32, i32) {
    %c0_i32 = arith.constant 0 : i32
    %c0_i32_0 = arith.constant 0 : i32
    %c0_i32_1 = arith.constant 0 : i32
    return %c0_i32, %c0_i32_0 : i32, i32
  }
  func.func @transform_31(%arg0: i32) -> (i32, i32) {
    %c0_i32 = arith.constant 0 : i32
    %c0_i32_0 = arith.constant 0 : i32
    %c0_i32_1 = arith.constant 0 : i32
    return %c0_i32, %c0_i32_0 : i32, i32
  }
  func.func @transform_32(%arg0: i32) -> (i32, i32) {
    %c0_i32 = arith.constant 0 : i32
    %c0_i32_0 = arith.constant 0 : i32
    %c0_i32_1 = arith.constant 0 : i32
    return %c0_i32, %c0_i32_0 : i32, i32
  }
  func.func @transform_33(%arg0: i32) -> (i32, i32) {
    %c0_i32 = arith.constant 0 : i32
    %c0_i32_0 = arith.constant 0 : i32
    %c0_i32_1 = arith.constant 0 : i32
    return %c0_i32, %c0_i32_0 : i32, i32
  }
  func.func @transform_34(%arg0: i32) -> (i32, i32) {
    %c0_i32 = arith.constant 0 : i32
    %c0_i32_0 = arith.constant 0 : i32
    %c0_i32_1 = arith.constant 0 : i32
    return %c0_i32, %c0_i32_0 : i32, i32
  }
}

</mosaic_0001>

<llo_original>
// kernel: tpu_custom_call.1
$region0: #{tpu_custom_call.1}
  #allocation0 [shape = 'u32[]', space=smem, size = 0x4, offset = 0x4, fixed_abs, tag = 'smem constant byte address 0x4 - core index']
  #allocation1 [shape = 'u32[144,128]{1,0:T(1,128)}', space=vmem, size = 0x12000, scoped, tag = 'internal scratch']
  #allocation2 [shape = 'f32[10,32]{1,0:T(8,128)}', space=vmem, size = 0x2000, scoped, tag = 'scratch operand']
  #allocation3 [shape = 'f32[10,32]{1,0:T(8,128)}', space=vmem, size = 0x2000, scoped, tag = 'scratch operand']
  %s0 = inlined_call_operand.smem [shape: u32[35], index: -1, kind: input, shape index: {}]
  %s1 = sld [smem:[%s0]]
  %s2 = scalar_lea.smem %s0, 1
  %s3 = sld [smem:[%s2]]
  %s4 = scalar_lea.smem %s0, 2
  %s5 = sld [smem:[%s4]]
  %s6 = scalar_lea.smem %s0, 3
  %s7 = sld [smem:[%s6]]
  %s8 = scalar_lea.smem %s0, 4
  %s9 = sld [smem:[%s8]]
  %s10 = scalar_lea.smem %s0, 5
  %s11 = sld [smem:[%s10]]
  %s12 = scalar_lea.smem %s0, 6
  %s13 = sld [smem:[%s12]]
  %s14 = scalar_lea.smem %s0, 7
  %s15 = sld [smem:[%s14]]
  %s16 = scalar_lea.smem %s0, 8
  %s17 = sld [smem:[%s16]]
  %s18 = scalar_lea.smem %s0, 9
  %s19 = sld [smem:[%s18]]
  %s20 = scalar_lea.smem %s0, 10
  %s21 = sld [smem:[%s20]]
  %s22 = scalar_lea.smem %s0, 11
  %s23 = sld [smem:[%s22]]
  %s24 = scalar_lea.smem %s0, 12
  %s25 = sld [smem:[%s24]]
  %s26 = scalar_lea.smem %s0, 13
  %s27 = sld [smem:[%s26]]
  %s28 = scalar_lea.smem %s0, 14
  %s29 = sld [smem:[%s28]]
  %s30 = scalar_lea.smem %s0, 15
  %s31 = sld [smem:[%s30]]
  %s32 = scalar_lea.smem %s0, 16
  %s33 = sld [smem:[%s32]]
  %s34 = scalar_lea.smem %s0, 17
  %s35 = sld [smem:[%s34]]
  %s36 = scalar_lea.smem %s0, 18
  %s37 = sld [smem:[%s36]]
  %s38 = scalar_lea.smem %s0, 19
  %s39 = sld [smem:[%s38]]
  %s40 = scalar_lea.smem %s0, 20
  %s41 = sld [smem:[%s40]]
  %s42 = scalar_lea.smem %s0, 21
  %s43 = sld [smem:[%s42]]
  %s44 = scalar_lea.smem %s0, 22
  %s45 = sld [smem:[%s44]]
  %s46 = scalar_lea.smem %s0, 23
  %s47 = sld [smem:[%s46]]
  %s48 = scalar_lea.smem %s0, 24
  %s49 = sld [smem:[%s48]]
  %s50 = scalar_lea.smem %s0, 25
  %s51 = sld [smem:[%s50]]
  %s52 = scalar_lea.smem %s0, 26
  %s53 = sld [smem:[%s52]]
  %s54 = scalar_lea.smem %s0, 27
  %s55 = sld [smem:[%s54]]
  %s56 = scalar_lea.smem %s0, 28
  %s57 = sld [smem:[%s56]]
  %s58 = scalar_lea.smem %s0, 29
  %s59 = sld [smem:[%s58]]
  %s60 = scalar_lea.smem %s0, 30
  %s61 = sld [smem:[%s60]]
  %s62 = scalar_lea.smem %s0, 31
  %s63 = sld [smem:[%s62]]
  %s64 = scalar_lea.smem %s0, 32
  %s65 = sld [smem:[%s64]]
  %s66 = scalar_lea.smem %s0, 33
  %s67 = sld [smem:[%s66]]
  %s68 = scalar_lea.smem %s0, 34
  %s69 = sld [smem:[%s68]]
  %s70 = sld [smem:[#allocation0]]
  $region146: #{tpu_custom_call.1} parent=0
    _
  %s72 = ssub.s32 1, %s70
  %s73 = scalar_select 0, %s72, %s70
  $region1: #{tpu_custom_call.1} parent=0
    #allocation4 [shape = 'u8[1024]{0}', space=vmem, size = 0x400, scoped, tag = 'output window, operand 0, single buffered']
    #allocation5 [shape = 's32[1]{0}', space=sflag, size = 0x4, scoped, tag = 'scoped memory for tpu_custom_call.1']
    %74 = vsyncpa [#allocation5], 0
    // Predicated region
    $region2: #{tpu_custom_call.1} parent=1 // pred_check
      _
    $region3: #{tpu_custom_call.1} parent=1 // pred_check_branch
      %76 = sbr.rel (0) target = $region5
    $region4: #{tpu_custom_call.1} parent=1 // pred_region
      _
    $region5: #{tpu_custom_call.1} parent=1 // pred_fallthru
      _
    // Predicated region
    $region6: #{tpu_custom_call.1} parent=1 // pred_check
      _
    $region7: #{tpu_custom_call.1} parent=1 // pred_check_branch
      %78 = sbr.rel (0) target = $region9
    $region8: #{tpu_custom_call.1} parent=1 // pred_region
      _
    $region9: #{tpu_custom_call.1} parent=1 // pred_fallthru
      _
    // Predicated region
    $region10: #{tpu_custom_call.1} parent=1 // pred_check
      _
    $region11: #{tpu_custom_call.1} parent=1 // pred_check_branch
      %80 = sbr.rel (0) target = $region13
    $region12: #{tpu_custom_call.1} parent=1 // pred_region
      _
    $region13: #{tpu_custom_call.1} parent=1 // pred_fallthru
      _
    // Predicated region
    $region14: #{tpu_custom_call.1} parent=1 // pred_check
      _
    $region15: #{tpu_custom_call.1} parent=1 // pred_check_branch
      %82 = sbr.rel (0) target = $region17
    $region16: #{tpu_custom_call.1} parent=1 // pred_region
      _
    $region17: #{tpu_custom_call.1} parent=1 // pred_fallthru
      _
    // Predicated region
    $region18: #{tpu_custom_call.1} parent=1 // pred_check
      _
    $region19: #{tpu_custom_call.1} parent=1 // pred_check_branch
      %84 = sbr.rel (0) target = $region21
    $region20: #{tpu_custom_call.1} parent=1 // pred_region
      _
    $region21: #{tpu_custom_call.1} parent=1 // pred_fallthru
      _
    // Predicated region
    $region22: #{tpu_custom_call.1} parent=1 // pred_check
      _
    $region23: #{tpu_custom_call.1} parent=1 // pred_check_branch
      %86 = sbr.rel (0) target = $region25
    $region24: #{tpu_custom_call.1} parent=1 // pred_region
      _
    $region25: #{tpu_custom_call.1} parent=1 // pred_fallthru
      _
    // Predicated region
    $region26: #{tpu_custom_call.1} parent=1 // pred_check
      _
    $region27: #{tpu_custom_call.1} parent=1 // pred_check_branch
      %88 = sbr.rel (0) target = $region29
    $region28: #{tpu_custom_call.1} parent=1 // pred_region
      _
    $region29: #{tpu_custom_call.1} parent=1 // pred_fallthru
      _
    // Predicated region
    $region30: #{tpu_custom_call.1} parent=1 // pred_check
      _
    $region31: #{tpu_custom_call.1} parent=1 // pred_check_branch
      %90 = sbr.rel (0) target = $region33
    $region32: #{tpu_custom_call.1} parent=1 // pred_region
      _
    $region33: #{tpu_custom_call.1} parent=1 // pred_fallthru
      _
    // Predicated region
    $region34: #{tpu_custom_call.1} parent=1 // pred_check
      _
    $region35: #{tpu_custom_call.1} parent=1 // pred_check_branch
      %92 = sbr.rel (0) target = $region37
    $region36: #{tpu_custom_call.1} parent=1 // pred_region
      _
    $region37: #{tpu_custom_call.1} parent=1 // pred_fallthru
      _
    // Predicated region
    $region38: #{tpu_custom_call.1} parent=1 // pred_check
      _
    $region39: #{tpu_custom_call.1} parent=1 // pred_check_branch
      %94 = sbr.rel (0) target = $region41
    $region40: #{tpu_custom_call.1} parent=1 // pred_region
      _
    $region41: #{tpu_custom_call.1} parent=1 // pred_fallthru
      _
    // Predicated region
    $region42: #{tpu_custom_call.1} parent=1 // pred_check
      _
    $region43: #{tpu_custom_call.1} parent=1 // pred_check_branch
      %96 = sbr.rel (0) target = $region45
    $region44: #{tpu_custom_call.1} parent=1 // pred_region
      _
    $region45: #{tpu_custom_call.1} parent=1 // pred_fallthru
      _
    // Predicated region
    $region46: #{tpu_custom_call.1} parent=1 // pred_check
      _
    $region47: #{tpu_custom_call.1} parent=1 // pred_check_branch
      %98 = sbr.rel (0) target = $region49
    $region48: #{tpu_custom_call.1} parent=1 // pred_region
      _
    $region49: #{tpu_custom_call.1} parent=1 // pred_fallthru
      _
    // Predicated region
    $region50: #{tpu_custom_call.1} parent=1 // pred_check
      _
    $region51: #{tpu_custom_call.1} parent=1 // pred_check_branch
      %100 = sbr.rel (0) target = $region53
    $region52: #{tpu_custom_call.1} parent=1 // pred_region
      _
    $region53: #{tpu_custom_call.1} parent=1 // pred_fallthru
      _
    // Predicated region
    $region54: #{tpu_custom_call.1} parent=1 // pred_check
      _
    $region55: #{tpu_custom_call.1} parent=1 // pred_check_branch
      %102 = sbr.rel (0) target = $region57
    $region56: #{tpu_custom_call.1} parent=1 // pred_region
      _
    $region57: #{tpu_custom_call.1} parent=1 // pred_fallthru
      _
    // Predicated region
    $region58: #{tpu_custom_call.1} parent=1 // pred_check
      _
    $region59: #{tpu_custom_call.1} parent=1 // pred_check_branch
      %104 = sbr.rel (0) target = $region61
    $region60: #{tpu_custom_call.1} parent=1 // pred_region
      _
    $region61: #{tpu_custom_call.1} parent=1 // pred_fallthru
      _
    // Predicated region
    $region62: #{tpu_custom_call.1} parent=1 // pred_check
      _
    $region63: #{tpu_custom_call.1} parent=1 // pred_check_branch
      %106 = sbr.rel (0) target = $region65
    $region64: #{tpu_custom_call.1} parent=1 // pred_region
      _
    $region65: #{tpu_custom_call.1} parent=1 // pred_fallthru
      _
    // Predicated region
    $region66: #{tpu_custom_call.1} parent=1 // pred_check
      _
    $region67: #{tpu_custom_call.1} parent=1 // pred_check_branch
      %108 = sbr.rel (0) target = $region69
    $region68: #{tpu_custom_call.1} parent=1 // pred_region
      _
    $region69: #{tpu_custom_call.1} parent=1 // pred_fallthru
      _
    // Predicated region
    $region70: #{tpu_custom_call.1} parent=1 // pred_check
      _
    $region71: #{tpu_custom_call.1} parent=1 // pred_check_branch
      %110 = sbr.rel (0) target = $region73
    $region72: #{tpu_custom_call.1} parent=1 // pred_region
      _
    $region73: #{tpu_custom_call.1} parent=1 // pred_fallthru
      _
    // Predicated region
    $region74: #{tpu_custom_call.1} parent=1 // pred_check
      _
    $region75: #{tpu_custom_call.1} parent=1 // pred_check_branch
      %112 = sbr.rel (0) target = $region77
    $region76: #{tpu_custom_call.1} parent=1 // pred_region
      _
    $region77: #{tpu_custom_call.1} parent=1 // pred_fallthru
      _
    // Predicated region
    $region78: #{tpu_custom_call.1} parent=1 // pred_check
      _
    $region79: #{tpu_custom_call.1} parent=1 // pred_check_branch
      %114 = sbr.rel (0) target = $region81
    $region80: #{tpu_custom_call.1} parent=1 // pred_region
      _
    $region81: #{tpu_custom_call.1} parent=1 // pred_fallthru
      _
    // Predicated region
    $region82: #{tpu_custom_call.1} parent=1 // pred_check
      _
    $region83: #{tpu_custom_call.1} parent=1 // pred_check_branch
      %116 = sbr.rel (0) target = $region85
    $region84: #{tpu_custom_call.1} parent=1 // pred_region
      _
    $region85: #{tpu_custom_call.1} parent=1 // pred_fallthru
      _
    // Predicated region
    $region86: #{tpu_custom_call.1} parent=1 // pred_check
      _
    $region87: #{tpu_custom_call.1} parent=1 // pred_check_branch
      %118 = sbr.rel (0) target = $region89
    $region88: #{tpu_custom_call.1} parent=1 // pred_region
      _
    $region89: #{tpu_custom_call.1} parent=1 // pred_fallthru
      _
    // Predicated region
    $region90: #{tpu_custom_call.1} parent=1 // pred_check
      _
    $region91: #{tpu_custom_call.1} parent=1 // pred_check_branch
      %120 = sbr.rel (0) target = $region93
    $region92: #{tpu_custom_call.1} parent=1 // pred_region
      _
    $region93: #{tpu_custom_call.1} parent=1 // pred_fallthru
      _
    // Predicated region
    $region94: #{tpu_custom_call.1} parent=1 // pred_check
      _
    $region95: #{tpu_custom_call.1} parent=1 // pred_check_branch
      %122 = sbr.rel (0) target = $region97
    $region96: #{tpu_custom_call.1} parent=1 // pred_region
      _
    $region97: #{tpu_custom_call.1} parent=1 // pred_fallthru
      _
    // Predicated region
    $region98: #{tpu_custom_call.1} parent=1 // pred_check
      _
    $region99: #{tpu_custom_call.1} parent=1 // pred_check_branch
      %124 = sbr.rel (0) target = $region101
    $region100: #{tpu_custom_call.1} parent=1 // pred_region
      _
    $region101: #{tpu_custom_call.1} parent=1 // pred_fallthru
      _
    // Predicated region
    $region102: #{tpu_custom_call.1} parent=1 // pred_check
      _
    $region103: #{tpu_custom_call.1} parent=1 // pred_check_branch
      %126 = sbr.rel (0) target = $region105
    $region104: #{tpu_custom_call.1} parent=1 // pred_region
      _
    $region105: #{tpu_custom_call.1} parent=1 // pred_fallthru
      _
    // Predicated region
    $region106: #{tpu_custom_call.1} parent=1 // pred_check
      _
    $region107: #{tpu_custom_call.1} parent=1 // pred_check_branch
      %128 = sbr.rel (0) target = $region109
    $region108: #{tpu_custom_call.1} parent=1 // pred_region
      _
    $region109: #{tpu_custom_call.1} parent=1 // pred_fallthru
      _
    // Predicated region
    $region110: #{tpu_custom_call.1} parent=1 // pred_check
      _
    $region111: #{tpu_custom_call.1} parent=1 // pred_check_branch
      %130 = sbr.rel (0) target = $region113
    $region112: #{tpu_custom_call.1} parent=1 // pred_region
      _
    $region113: #{tpu_custom_call.1} parent=1 // pred_fallthru
      _
    // Predicated region
    $region114: #{tpu_custom_call.1} parent=1 // pred_check
      _
    $region115: #{tpu_custom_call.1} parent=1 // pred_check_branch
      %132 = sbr.rel (0) target = $region117
    $region116: #{tpu_custom_call.1} parent=1 // pred_region
      _
    $region117: #{tpu_custom_call.1} parent=1 // pred_fallthru
      _
    // Predicated region
    $region118: #{tpu_custom_call.1} parent=1 // pred_check
      _
    $region119: #{tpu_custom_call.1} parent=1 // pred_check_branch
      %134 = sbr.rel (0) target = $region121
    $region120: #{tpu_custom_call.1} parent=1 // pred_region
      _
    $region121: #{tpu_custom_call.1} parent=1 // pred_fallthru
      _
    // Predicated region
    $region122: #{tpu_custom_call.1} parent=1 // pred_check
      _
    $region123: #{tpu_custom_call.1} parent=1 // pred_check_branch
      %136 = sbr.rel (0) target = $region125
    $region124: #{tpu_custom_call.1} parent=1 // pred_region
      _
    $region125: #{tpu_custom_call.1} parent=1 // pred_fallthru
      _
    // Predicated region
    $region126: #{tpu_custom_call.1} parent=1 // pred_check
      _
    $region127: #{tpu_custom_call.1} parent=1 // pred_check_branch
      %138 = sbr.rel (0) target = $region129
    $region128: #{tpu_custom_call.1} parent=1 // pred_region
      _
    $region129: #{tpu_custom_call.1} parent=1 // pred_fallthru
      _
    // Predicated region
    $region130: #{tpu_custom_call.1} parent=1 // pred_check
      _
    $region131: #{tpu_custom_call.1} parent=1 // pred_check_branch
      %140 = sbr.rel (0) target = $region133
    $region132: #{tpu_custom_call.1} parent=1 // pred_region
      _
    $region133: #{tpu_custom_call.1} parent=1 // pred_fallthru
      _
    // Predicated region
    $region134: #{tpu_custom_call.1} parent=1 // pred_check
      _
    $region135: #{tpu_custom_call.1} parent=1 // pred_check_branch
      %142 = sbr.rel (0) target = $region137
    $region136: #{tpu_custom_call.1} parent=1 // pred_region
      _
    $region137: #{tpu_custom_call.1} parent=1 // pred_fallthru
      _
    %v143 = vld [vmem:[%s1] sm:$0xff]
    %v144 = vld [vmem:[%s1 + $0x8] sm:$0xff]
    %v145 = vld [vmem:[%s3] sm:$0xff]
    %v146 = vld [vmem:[%s3 + $0x8] sm:$0xff]
    %v147 = vld [vmem:[%s3 + $0x10] sm:$0xff]
    %v148 = vld [vmem:[%s3 + $0x18] sm:$0xff]
    %v149 = vld [vmem:[%s3 + $0x20] sm:$0xff]
    %v150 = vld [vmem:[%s3 + $0x28] sm:$0xff]
    %v151 = vld [vmem:[%s3 + $0x30] sm:$0xff]
    %v152 = vld [vmem:[%s3 + $0x38] sm:$0xff]
    %v153 = vld [vmem:[%s3 + $0x40] sm:$0xff]
    %v154 = vld [vmem:[%s3 + $0x48] sm:$0xff]
    %v155 = vld [vmem:[%s3 + $0x50] sm:$0xff]
    %v156 = vld [vmem:[%s3 + $0x58] sm:$0xff]
    %v157 = vld [vmem:[%s3 + $0x60] sm:$0xff]
    %v158 = vld [vmem:[%s3 + $0x68] sm:$0xff]
    %v159 = vld [vmem:[%s3 + $0x70] sm:$0xff]
    %v160 = vld [vmem:[%s3 + $0x78] sm:$0xff]
    %v161 = vld [vmem:[%s3 + $0x80] sm:$0xff]
    %v162 = vld [vmem:[%s3 + $0x88] sm:$0xff]
    %v163 = vld [vmem:[%s3 + $0x90] sm:$0xff]
    %v164 = vld [vmem:[%s3 + $0x98] sm:$0xff]
    %v165 = vld [vmem:[%s3 + $0xa0] sm:$0xff]
    %v166 = vld [vmem:[%s3 + $0xa8] sm:$0xff]
    %v167 = vld [vmem:[%s3 + $0xb0] sm:$0xff]
    %v168 = vld [vmem:[%s3 + $0xb8] sm:$0xff]
    %v169 = vld [vmem:[%s5] sm:$0x1]
    %v171 = vlaneseq
    %v172 = vshrl.u32 %v171, 7
    %v173 = vsub.s32 0, %v172
    %v174 = vrot.slane %v169, %v173
    %vm176 = vcmask 523264
    %v178 = vsel %vm176, %v144, 0
    %180 = vmatprep.subr.mxu0 0.0
    %181 = vmatpush1.msra.mxu0 %v160
    %182 = vmatprep.subr.mxu0 0.0
    %183 = vmatpush1.msra.mxu0 %v159
    %184 = vmatprep.subr.mxu0 0.0
    %185 = vmatpush1.msra.mxu0 %v158
    %186 = vmatprep.subr.mxu0 0.0
    %187 = vmatpush1.msra.mxu0 %v157
    %188 = vmatprep.subr.mxu0 0.0
    %189 = vmatpush1.msra.mxu0 %v156
    %190 = vmatprep.subr.mxu0 0.0
    %191 = vmatpush1.msra.mxu0 %v155
    %192 = vmatprep.subr.mxu0 0.0
    %193 = vmatpush1.msra.mxu0 %v154
    %194 = vmatprep.subr.mxu0 0.0
    %195 = vmatpush1.msra.mxu0 %v153
    %196 = vmatprep.subr.mxu0 0.0
    %197 = vmatpush1.msra.mxu0 %v152
    %198 = vmatprep.subr.mxu0 0.0
    %199 = vmatpush1.msra.mxu0 %v151
    %200 = vmatprep.subr.mxu0 0.0
    %201 = vmatpush1.msra.mxu0 %v150
    %202 = vmatprep.subr.mxu0 0.0
    %203 = vmatpush1.msra.mxu0 %v149
    %204 = vmatprep.subr.mxu0 0.0
    %205 = vmatpush1.msra.mxu0 %v148
    %206 = vmatprep.subr.mxu0 0.0
    %207 = vmatpush1.msra.mxu0 %v147
    %208 = vmatprep.subr.mxu0 0.0
    %209 = vmatpush1.msra.mxu0 %v146
    %210 = vmatprep.subr.mxu0 0.0
    %211 = vmatpush1.msra.mxu0 %v145
    %212 = vmatprep.subr.mxu0 0.0
    %213 = vmatpush2.msra.mxu0 0.0
    %214 = vmatprep.subr.mxu0 0.0
    %215 = vmatpush2.msra.mxu0 0.0
    %216 = vmatprep.subr.mxu0 0.0
    %217 = vmatpush2.msra.mxu0 0.0
    %218 = vmatprep.subr.mxu0 0.0
    %219 = vmatpush2.msra.mxu0 0.0
    %220 = vmatprep.subr.mxu0 0.0
    %221 = vmatpush2.msra.mxu0 0.0
    %222 = vmatprep.subr.mxu0 0.0
    %223 = vmatpush2.msra.mxu0 0.0
    %224 = vmatprep.subr.mxu0 0.0
    %225 = vmatpush2.msra.mxu0 0.0
    %226 = vmatprep.subr.mxu0 0.0
    %227 = vmatpush2.msra.mxu0 0.0
    %228 = vmatprep.subr.mxu0 0.0
    %229 = vmatpush2.msra.mxu0 %v168
    %230 = vmatprep.subr.mxu0 0.0
    %231 = vmatpush2.msra.mxu0 %v167
    %232 = vmatprep.subr.mxu0 0.0
    %233 = vmatpush2.msra.mxu0 %v166
    %234 = vmatprep.subr.mxu0 0.0
    %235 = vmatpush2.msra.mxu0 %v165
    %236 = vmatprep.subr.mxu0 0.0
    %237 = vmatpush2.msra.mxu0 %v164
    %238 = vmatprep.subr.mxu0 0.0
    %239 = vmatpush2.msra.mxu0 %v163
    %240 = vmatprep.subr.mxu0 0.0
    %241 = vmatpush2.msra.mxu0 %v162
    %242 = vmatprep.subr.mxu0 0.0
    %243 = vmatpush2.msra.mxu0 %v161
    %244 = vmatprep.mubr.f32.mxu0 %v178
    %245 = vmatmul.mubr.f32.gmra.mxu0 %v143
    %v246 = vpop.f32.mrf.mxu0
    %v247 = vadd.f32 %v174, %v246
    %v248 = vpop.f32.mrf.mxu0
    %249 = vdwg.mxu0
    %v250 = vld [vmem:[%s7] sm:$0x1]
    %v251 = vld [vmem:[%s9] sm:$0x1]
    %v252 = vadd.f32 %v250, %v251
    %v253 = vld [vmem:[%s9 + $0x1] sm:$0xf]
    %vm254 = vcmask 253952
    %255 = vst.msk [vmem:[#allocation2] sm:$0x1] %vm254, %v252
    %v256 = vadd.f32 %v247, %v253
    %vm257 = vcmask 257024
    %258 = vst.msk [vmem:[#allocation2 + $0x1] sm:$0xf] %vm257, %v256
    %259 = vst.msk [vmem:[#allocation2 + $0x5] sm:$0x1] %vm254, %v252
    %v261 = vrot.slane %v253, 4
    %v263 = vadd.f32 %v247, %v261
    %vm264 = vcmask 261124
    %265 = vst.msk [vmem:[#allocation2 + $0x2] sm:$0xf0] %vm264, %v263
    %v266 = vld [vmem:[#allocation2] sm:$0xff]
    %v267 = vld [vmem:[#allocation2 + $0x8] sm:$0x3]
    %v268 = vld [vmem:[%s11] sm:$0xff]
    %v269 = vld [vmem:[%s11 + $0x8] sm:$0x3]
    %v270 = vld [vmem:[%s13] sm:$0x1]
    %v271 = vld [vmem:[%s15] sm:$0x1]
    %vm272 = vcmask 261120
    %v273 = vsel %vm272, %v266, 0.0
    %274 = vadd.xlane.f32.xlu0 %v273
    %v275 = vpop.xlane.xlu0 %274
    %vm276 = vcmask 254976
    %v277 = vsel %vm276, %v267, 0.0
    %278 = vadd.xlane.f32.xlu0 %v277
    %v279 = vpop.xlane.xlu0 %278
    %v280 = vrcp.pop 32.0
    %v281 = vmul.f32 %v275, %v280
    %v282 = vmul.f32 %v279, %v280
    %v283 = vsub.f32 %v266, %v281
    %v284 = vsub.f32 %v267, %v282
    %v285 = vmul.f32 %v283, %v283
    %v286 = vmul.f32 %v284, %v284
    %v287 = vsel %vm272, %v285, 0.0
    %288 = vadd.xlane.f32.xlu0 %v287
    %v289 = vpop.xlane.xlu0 %288
    %v290 = vsel %vm276, %v286, 0.0
    %291 = vadd.xlane.f32.xlu0 %v290
    %v292 = vpop.xlane.xlu0 %291
    %v293 = vmul.f32 %v289, %v280
    %v294 = vmul.f32 %v292, %v280
    %v295 = vadd.f32 %v293, 1e-06
    %v296 = vadd.f32 %v294, 1e-06
    %v297 = vrsqrt.pop %v295
    %v298 = vrsqrt.pop %v296
    %v299 = vmul.f32 %v283, %v297
    %v300 = vmul.f32 %v284, %v298
    %v302 = vlaneseq
    %v303 = vshrl.u32 %v302, 7
    %v304 = vsub.s32 0, %v303
    %v305 = vrot.slane %v270, %v304
    %v307 = vmul.f32 %v299, %v305
    %v308 = vmul.f32 %v300, %v305
    %v310 = vlaneseq
    %v311 = vshrl.u32 %v310, 7
    %v312 = vsub.s32 0, %v311
    %v313 = vrot.slane %v271, %v312
    %v315 = vadd.f32 %v307, %v313
    %v316 = vadd.f32 %v308, %v313
    %v317 = vld [vmem:[%s17] sm:$0xff]
    %v318 = vld [vmem:[%s17 + $0x8] sm:$0xff]
    %v319 = vld [vmem:[%s17 + $0x10] sm:$0xff]
    %v320 = vld [vmem:[%s17 + $0x18] sm:$0xff]
    %v321 = vld [vmem:[%s19] sm:$0x1]
    %v323 = vlaneseq
    %v324 = vshrl.u32 %v323, 7
    %v325 = vsub.s32 0, %v324
    %v326 = vrot.slane %v321, %v325
    %v329 = vsel %vm272, %v315, 0
    %v332 = vsel %vm272, %v316, 0
    %334 = vmatprep.subr.mxu0 0.0
    %335 = vmatpush1.msra.mxu0 0.0
    %336 = vmatprep.subr.mxu0 0.0
    %337 = vmatpush1.msra.mxu0 0.0
    %338 = vmatprep.subr.mxu0 0.0
    %339 = vmatpush1.msra.mxu0 0.0
    %340 = vmatprep.subr.mxu0 0.0
    %341 = vmatpush1.msra.mxu0 0.0
    %342 = vmatprep.subr.mxu0 0.0
    %343 = vmatpush1.msra.mxu0 0.0
    %344 = vmatprep.subr.mxu0 0.0
    %345 = vmatpush1.msra.mxu0 0.0
    %346 = vmatprep.subr.mxu0 0.0
    %347 = vmatpush1.msra.mxu0 0.0
    %348 = vmatprep.subr.mxu0 0.0
    %349 = vmatpush1.msra.mxu0 0.0
    %350 = vmatprep.subr.mxu0 0.0
    %351 = vmatpush1.msra.mxu0 0.0
    %352 = vmatprep.subr.mxu0 0.0
    %353 = vmatpush1.msra.mxu0 0.0
    %354 = vmatprep.subr.mxu0 0.0
    %355 = vmatpush1.msra.mxu0 0.0
    %356 = vmatprep.subr.mxu0 0.0
    %357 = vmatpush1.msra.mxu0 0.0
    %358 = vmatprep.subr.mxu0 0.0
    %359 = vmatpush1.msra.mxu0 %v320
    %360 = vmatprep.subr.mxu0 0.0
    %361 = vmatpush1.msra.mxu0 %v319
    %362 = vmatprep.subr.mxu0 0.0
    %363 = vmatpush1.msra.mxu0 %v318
    %364 = vmatprep.subr.mxu0 0.0
    %365 = vmatpush1.msra.mxu0 %v317
    %366 = vmatprep.subr.mxu0 0.0
    %367 = vmatpush2.msra.mxu0 0.0
    %368 = vmatprep.subr.mxu0 0.0
    %369 = vmatpush2.msra.mxu0 0.0
    %370 = vmatprep.subr.mxu0 0.0
    %371 = vmatpush2.msra.mxu0 0.0
    %372 = vmatprep.subr.mxu0 0.0
    %373 = vmatpush2.msra.mxu0 0.0
    %374 = vmatprep.subr.mxu0 0.0
    %375 = vmatpush2.msra.mxu0 0.0
    %376 = vmatprep.subr.mxu0 0.0
    %377 = vmatpush2.msra.mxu0 0.0
    %378 = vmatprep.subr.mxu0 0.0
    %379 = vmatpush2.msra.mxu0 0.0
    %380 = vmatprep.subr.mxu0 0.0
    %381 = vmatpush2.msra.mxu0 0.0
    %382 = vmatprep.subr.mxu0 0.0
    %383 = vmatpush2.msra.mxu0 0.0
    %384 = vmatprep.subr.mxu0 0.0
    %385 = vmatpush2.msra.mxu0 0.0
    %386 = vmatprep.subr.mxu0 0.0
    %387 = vmatpush2.msra.mxu0 0.0
    %388 = vmatprep.subr.mxu0 0.0
    %389 = vmatpush2.msra.mxu0 0.0
    %390 = vmatprep.subr.mxu0 0.0
    %391 = vmatpush2.msra.mxu0 0.0
    %392 = vmatprep.subr.mxu0 0.0
    %393 = vmatpush2.msra.mxu0 0.0
    %394 = vmatprep.subr.mxu0 0.0
    %395 = vmatpush2.msra.mxu0 0.0
    %396 = vmatprep.subr.mxu0 0.0
    %397 = vmatpush2.msra.mxu0 0.0
    %398 = vmatprep.mubr.f32.mxu0 0.0
    %399 = vmatmul.mubr.f32.gmra.mxu0 %v329
    %v400 = vpop.f32.mrf.mxu0
    %v401 = vadd.f32 %v326, %v400
    %v402 = vpop.f32.mrf.mxu0
    %403 = vmatprep.mubr.f32.mxu0 0.0
    %404 = vmatmul.mubr.f32.gmra.mxu0 %v332
    %v405 = vpop.f32.mrf.mxu0
    %v406 = vadd.f32 %v326, %v405
    %v407 = vpop.f32.mrf.mxu0
    %408 = vdwg.mxu0
    %411 = vrot.lane.b32.xlu0 %v401, 96
    %v412 = vpop.permute.xlu0 %411
    %413 = vrot.lane.b32.xlu0 %v406, 96
    %v414 = vpop.permute.xlu0 %413
    %vm415 = vcmask 64512
    %v416 = vsel %vm415, %v401, 0
    %v418 = vsel %vm415, %v406, 0
    %v420 = vsel %vm415, %v412, 0
    %v422 = vsel %vm415, %v414, 0
    %424 = vmatprep.subr.mxu0 0.0
    %425 = vmatpush1.xpose.msra.mxu0 0.0
    %426 = vmatprep.subr.mxu0 0.0
    %427 = vmatpush1.xpose.msra.mxu0 0.0
    %428 = vmatprep.subr.mxu0 0.0
    %429 = vmatpush1.xpose.msra.mxu0 0.0
    %430 = vmatprep.subr.mxu0 0.0
    %431 = vmatpush1.xpose.msra.mxu0 0.0
    %432 = vmatprep.subr.mxu0 0.0
    %433 = vmatpush1.xpose.msra.mxu0 0.0
    %434 = vmatprep.subr.mxu0 0.0
    %435 = vmatpush1.xpose.msra.mxu0 0.0
    %436 = vmatprep.subr.mxu0 0.0
    %437 = vmatpush1.xpose.msra.mxu0 0.0
    %438 = vmatprep.subr.mxu0 0.0
    %439 = vmatpush1.xpose.msra.mxu0 0.0
    %440 = vmatprep.subr.mxu0 0.0
    %441 = vmatpush1.xpose.msra.mxu0 0.0
    %442 = vmatprep.subr.mxu0 0.0
    %443 = vmatpush1.xpose.msra.mxu0 0.0
    %444 = vmatprep.subr.mxu0 0.0
    %445 = vmatpush1.xpose.msra.mxu0 0.0
    %446 = vmatprep.subr.mxu0 0.0
    %447 = vmatpush1.xpose.msra.mxu0 0.0
    %448 = vmatprep.subr.mxu0 0.0
    %449 = vmatpush1.xpose.msra.mxu0 0.0
    %450 = vmatprep.subr.mxu0 0.0
    %451 = vmatpush1.xpose.msra.mxu0 0.0
    %452 = vmatprep.subr.mxu0 0.0
    %453 = vmatpush1.xpose.msra.mxu0 %v422
    %454 = vmatprep.subr.mxu0 0.0
    %455 = vmatpush1.xpose.msra.mxu0 %v420
    %456 = vmatprep.subr.mxu0 0.0
    %457 = vmatpush2.xpose.msra.mxu0 0.0
    %458 = vmatprep.subr.mxu0 0.0
    %459 = vmatpush2.xpose.msra.mxu0 0.0
    %460 = vmatprep.subr.mxu0 0.0
    %461 = vmatpush2.xpose.msra.mxu0 0.0
    %462 = vmatprep.subr.mxu0 0.0
    %463 = vmatpush2.xpose.msra.mxu0 0.0
    %464 = vmatprep.subr.mxu0 0.0
    %465 = vmatpush2.xpose.msra.mxu0 0.0
    %466 = vmatprep.subr.mxu0 0.0
    %467 = vmatpush2.xpose.msra.mxu0 0.0
    %468 = vmatprep.subr.mxu0 0.0
    %469 = vmatpush2.xpose.msra.mxu0 0.0
    %470 = vmatprep.subr.mxu0 0.0
    %471 = vmatpush2.xpose.msra.mxu0 0.0
    %472 = vmatprep.subr.mxu0 0.0
    %473 = vmatpush2.xpose.msra.mxu0 0.0
    %474 = vmatprep.subr.mxu0 0.0
    %475 = vmatpush2.xpose.msra.mxu0 0.0
    %476 = vmatprep.subr.mxu0 0.0
    %477 = vmatpush2.xpose.msra.mxu0 0.0
    %478 = vmatprep.subr.mxu0 0.0
    %479 = vmatpush2.xpose.msra.mxu0 0.0
    %480 = vmatprep.subr.mxu0 0.0
    %481 = vmatpush2.xpose.msra.mxu0 0.0
    %482 = vmatprep.subr.mxu0 0.0
    %483 = vmatpush2.xpose.msra.mxu0 0.0
    %484 = vmatprep.subr.mxu0 0.0
    %485 = vmatpush2.xpose.msra.mxu0 0.0
    %486 = vmatprep.subr.mxu0 0.0
    %487 = vmatpush2.xpose.msra.mxu0 0.0
    %488 = vmatprep.mubr.f32.mxu0 0.0
    %489 = vmatmul.mubr.f32.gmra.mxu0 %v416
    %v490 = vpop.f32.mrf.mxu0
    %v491 = vadd.f32 0.0, %v490
    %v492 = vpop.f32.mrf.mxu0
    %493 = vmatprep.mubr.f32.mxu0 0.0
    %494 = vmatmul.mubr.f32.gmra.mxu0 %v418
    %v495 = vpop.f32.mrf.mxu0
    %v496 = vadd.f32 0.0, %v495
    %v497 = vpop.f32.mrf.mxu0
    %498 = vdwg.mxu0
    %v499 = vmul.f32 %v491, 0.35355338
    %v500 = vmul.f32 %v496, 0.35355338
    %v501 = vadd.f32 %v499, %v268
    %v502 = vadd.f32 %v500, %v269
    %vm503 = vcmask 80896
    %v504 = vsel %vm503, %v501, -inf
    %505 = vmax.xlane.f32.xlu0 %v504
    %v506 = vpop.xlane.xlu0 %505
    %vm507 = vcmask 74752
    %v508 = vsel %vm507, %v502, -inf
    %509 = vmax.xlane.f32.xlu0 %v508
    %v510 = vpop.xlane.xlu0 %509
    %v511 = vsub.f32 %v501, %v506
    %v512 = vsub.f32 %v502, %v510
    %v513 = vmul.f32 %v511, 1.442695
    %v514 = vpow.pop %v513
    %v515 = vmul.f32 %v512, 1.442695
    %v516 = vpow.pop %v515
    %v517 = vsel %vm503, %v514, 0.0
    %518 = vadd.xlane.f32.xlu0 %v517
    %v519 = vpop.xlane.xlu0 %518
    %v520 = vsel %vm507, %v516, 0.0
    %521 = vadd.xlane.f32.xlu0 %v520
    %v522 = vpop.xlane.xlu0 %521
    %v523 = vrcp.pop %v519
    %v524 = vrcp.pop %v522
    %v525 = vmul.f32 %v514, %v523
    %v526 = vmul.f32 %v516, %v524
    %527 = vrot.lane.b32.xlu0 %v401, 64
    %v528 = vpop.permute.xlu0 %527
    %529 = vrot.lane.b32.xlu0 %v406, 64
    %v530 = vpop.permute.xlu0 %529
    %v533 = vsel %vm503, %v525, 0
    %v536 = vsel %vm503, %v526, 0
    %vm538 = vcmask 1041408
    %v539 = vsel %vm538, %v530, 0
    %541 = vmatprep.subr.mxu0 0.0
    %542 = vmatpush1.msra.mxu0 0.0
    %543 = vmatprep.subr.mxu0 0.0
    %544 = vmatpush1.msra.mxu0 0.0
    %545 = vmatprep.subr.mxu0 0.0
    %546 = vmatpush1.msra.mxu0 0.0
    %547 = vmatprep.subr.mxu0 0.0
    %548 = vmatpush1.msra.mxu0 0.0
    %549 = vmatprep.subr.mxu0 0.0
    %550 = vmatpush1.msra.mxu0 0.0
    %551 = vmatprep.subr.mxu0 0.0
    %552 = vmatpush1.msra.mxu0 0.0
    %553 = vmatprep.subr.mxu0 0.0
    %554 = vmatpush1.msra.mxu0 0.0
    %555 = vmatprep.subr.mxu0 0.0
    %556 = vmatpush1.msra.mxu0 0.0
    %557 = vmatprep.subr.mxu0 0.0
    %558 = vmatpush1.msra.mxu0 0.0
    %559 = vmatprep.subr.mxu0 0.0
    %560 = vmatpush1.msra.mxu0 0.0
    %561 = vmatprep.subr.mxu0 0.0
    %562 = vmatpush1.msra.mxu0 0.0
    %563 = vmatprep.subr.mxu0 0.0
    %564 = vmatpush1.msra.mxu0 0.0
    %565 = vmatprep.subr.mxu0 0.0
    %566 = vmatpush1.msra.mxu0 0.0
    %567 = vmatprep.subr.mxu0 0.0
    %568 = vmatpush1.msra.mxu0 0.0
    %569 = vmatprep.subr.mxu0 0.0
    %570 = vmatpush1.msra.mxu0 %v539
    %571 = vmatprep.subr.mxu0 0.0
    %572 = vmatpush1.msra.mxu0 %v528
    %573 = vmatprep.subr.mxu0 0.0
    %574 = vmatpush2.msra.mxu0 0.0
    %575 = vmatprep.subr.mxu0 0.0
    %576 = vmatpush2.msra.mxu0 0.0
    %577 = vmatprep.subr.mxu0 0.0
    %578 = vmatpush2.msra.mxu0 0.0
    %579 = vmatprep.subr.mxu0 0.0
    %580 = vmatpush2.msra.mxu0 0.0
    %581 = vmatprep.subr.mxu0 0.0
    %582 = vmatpush2.msra.mxu0 0.0
    %583 = vmatprep.subr.mxu0 0.0
    %584 = vmatpush2.msra.mxu0 0.0
    %585 = vmatprep.subr.mxu0 0.0
    %586 = vmatpush2.msra.mxu0 0.0
    %587 = vmatprep.subr.mxu0 0.0
    %588 = vmatpush2.msra.mxu0 0.0
    %589 = vmatprep.subr.mxu0 0.0
    %590 = vmatpush2.msra.mxu0 0.0
    %591 = vmatprep.subr.mxu0 0.0
    %592 = vmatpush2.msra.mxu0 0.0
    %593 = vmatprep.subr.mxu0 0.0
    %594 = vmatpush2.msra.mxu0 0.0
    %595 = vmatprep.subr.mxu0 0.0
    %596 = vmatpush2.msra.mxu0 0.0
    %597 = vmatprep.subr.mxu0 0.0
    %598 = vmatpush2.msra.mxu0 0.0
    %599 = vmatprep.subr.mxu0 0.0
    %600 = vmatpush2.msra.mxu0 0.0
    %601 = vmatprep.subr.mxu0 0.0
    %602 = vmatpush2.msra.mxu0 0.0
    %603 = vmatprep.subr.mxu0 0.0
    %604 = vmatpush2.msra.mxu0 0.0
    %605 = vmatprep.mubr.f32.mxu0 0.0
    %606 = vmatmul.mubr.f32.gmra.mxu0 %v533
    %v607 = vpop.f32.mrf.mxu0
    %v608 = vadd.f32 0.0, %v607
    %v609 = vpop.f32.mrf.mxu0
    %610 = vmatprep.mubr.f32.mxu0 0.0
    %611 = vmatmul.mubr.f32.gmra.mxu0 %v536
    %v612 = vpop.f32.mrf.mxu0
    %v613 = vadd.f32 0.0, %v612
    %v614 = vpop.f32.mrf.mxu0
    %615 = vdwg.mxu0
    %616 = vst.msk [vmem:[#allocation3] sm:$0xff] %vm415, %v608
    %vm617 = vcmask 58368
    %618 = vst.msk [vmem:[#allocation3 + $0x8] sm:$0x3] %vm617, %v613
    %619 = vrot.lane.b32.xlu0 %v401, 120
    %v620 = vpop.permute.xlu0 %619
    %621 = vrot.lane.b32.xlu0 %v406, 120
    %v622 = vpop.permute.xlu0 %621
    %623 = vrot.lane.b32.xlu0 %v401, 88
    %v624 = vpop.permute.xlu0 %623
    %625 = vrot.lane.b32.xlu0 %v406, 88
    %v626 = vpop.permute.xlu0 %625
    %v627 = vsel %vm415, %v620, 0
    %v629 = vsel %vm415, %v622, 0
    %v631 = vsel %vm415, %v624, 0
    %v633 = vsel %vm415, %v626, 0
    %635 = vmatprep.subr.mxu0 0.0
    %636 = vmatpush1.xpose.msra.mxu0 0.0
    %637 = vmatprep.subr.mxu0 0.0
    %638 = vmatpush1.xpose.msra.mxu0 0.0
    %639 = vmatprep.subr.mxu0 0.0
    %640 = vmatpush1.xpose.msra.mxu0 0.0
    %641 = vmatprep.subr.mxu0 0.0
    %642 = vmatpush1.xpose.msra.mxu0 0.0
    %643 = vmatprep.subr.mxu0 0.0
    %644 = vmatpush1.xpose.msra.mxu0 0.0
    %645 = vmatprep.subr.mxu0 0.0
    %646 = vmatpush1.xpose.msra.mxu0 0.0
    %647 = vmatprep.subr.mxu0 0.0
    %648 = vmatpush1.xpose.msra.mxu0 0.0
    %649 = vmatprep.subr.mxu0 0.0
    %650 = vmatpush1.xpose.msra.mxu0 0.0
    %651 = vmatprep.subr.mxu0 0.0
    %652 = vmatpush1.xpose.msra.mxu0 0.0
    %653 = vmatprep.subr.mxu0 0.0
    %654 = vmatpush1.xpose.msra.mxu0 0.0
    %655 = vmatprep.subr.mxu0 0.0
    %656 = vmatpush1.xpose.msra.mxu0 0.0
    %657 = vmatprep.subr.mxu0 0.0
    %658 = vmatpush1.xpose.msra.mxu0 0.0
    %659 = vmatprep.subr.mxu0 0.0
    %660 = vmatpush1.xpose.msra.mxu0 0.0
    %661 = vmatprep.subr.mxu0 0.0
    %662 = vmatpush1.xpose.msra.mxu0 0.0
    %663 = vmatprep.subr.mxu0 0.0
    %664 = vmatpush1.xpose.msra.mxu0 %v633
    %665 = vmatprep.subr.mxu0 0.0
    %666 = vmatpush1.xpose.msra.mxu0 %v631
    %667 = vmatprep.subr.mxu0 0.0
    %668 = vmatpush2.xpose.msra.mxu0 0.0
    %669 = vmatprep.subr.mxu0 0.0
    %670 = vmatpush2.xpose.msra.mxu0 0.0
    %671 = vmatprep.subr.mxu0 0.0
    %672 = vmatpush2.xpose.msra.mxu0 0.0
    %673 = vmatprep.subr.mxu0 0.0
    %674 = vmatpush2.xpose.msra.mxu0 0.0
    %675 = vmatprep.subr.mxu0 0.0
    %676 = vmatpush2.xpose.msra.mxu0 0.0
    %677 = vmatprep.subr.mxu0 0.0
    %678 = vmatpush2.xpose.msra.mxu0 0.0
    %679 = vmatprep.subr.mxu0 0.0
    %680 = vmatpush2.xpose.msra.mxu0 0.0
    %681 = vmatprep.subr.mxu0 0.0
    %682 = vmatpush2.xpose.msra.mxu0 0.0
    %683 = vmatprep.subr.mxu0 0.0
    %684 = vmatpush2.xpose.msra.mxu0 0.0
    %685 = vmatprep.subr.mxu0 0.0
    %686 = vmatpush2.xpose.msra.mxu0 0.0
    %687 = vmatprep.subr.mxu0 0.0
    %688 = vmatpush2.xpose.msra.mxu0 0.0
    %689 = vmatprep.subr.mxu0 0.0
    %690 = vmatpush2.xpose.msra.mxu0 0.0
    %691 = vmatprep.subr.mxu0 0.0
    %692 = vmatpush2.xpose.msra.mxu0 0.0
    %693 = vmatprep.subr.mxu0 0.0
    %694 = vmatpush2.xpose.msra.mxu0 0.0
    %695 = vmatprep.subr.mxu0 0.0
    %696 = vmatpush2.xpose.msra.mxu0 0.0
    %697 = vmatprep.subr.mxu0 0.0
    %698 = vmatpush2.xpose.msra.mxu0 0.0
    %699 = vmatprep.mubr.f32.mxu0 0.0
    %700 = vmatmul.mubr.f32.gmra.mxu0 %v627
    %v701 = vpop.f32.mrf.mxu0
    %v702 = vadd.f32 0.0, %v701
    %v703 = vpop.f32.mrf.mxu0
    %704 = vmatprep.mubr.f32.mxu0 0.0
    %705 = vmatmul.mubr.f32.gmra.mxu0 %v629
    %v706 = vpop.f32.mrf.mxu0
    %v707 = vadd.f32 0.0, %v706
    %v708 = vpop.f32.mrf.mxu0
    %709 = vdwg.mxu0
    %v710 = vmul.f32 %v702, 0.35355338
    %v711 = vmul.f32 %v707, 0.35355338
    %v712 = vadd.f32 %v710, %v268
    %v713 = vadd.f32 %v711, %v269
    %v714 = vsel %vm503, %v712, -inf
    %715 = vmax.xlane.f32.xlu0 %v714
    %v716 = vpop.xlane.xlu0 %715
    %v717 = vsel %vm507, %v713, -inf
    %718 = vmax.xlane.f32.xlu0 %v717
    %v719 = vpop.xlane.xlu0 %718
    %v720 = vsub.f32 %v712, %v716
    %v721 = vsub.f32 %v713, %v719
    %v722 = vmul.f32 %v720, 1.442695
    %v723 = vpow.pop %v722
    %v724 = vmul.f32 %v721, 1.442695
    %v725 = vpow.pop %v724
    %v726 = vsel %vm503, %v723, 0.0
    %727 = vadd.xlane.f32.xlu0 %v726
    %v728 = vpop.xlane.xlu0 %727
    %v729 = vsel %vm507, %v725, 0.0
    %730 = vadd.xlane.f32.xlu0 %v729
    %v731 = vpop.xlane.xlu0 %730
    %v732 = vrcp.pop %v728
    %v733 = vrcp.pop %v731
    %v734 = vmul.f32 %v723, %v732
    %v735 = vmul.f32 %v725, %v733
    %736 = vrot.lane.b32.xlu0 %v401, 56
    %v737 = vpop.permute.xlu0 %736
    %738 = vrot.lane.b32.xlu0 %v406, 56
    %v739 = vpop.permute.xlu0 %738
    %v742 = vsel %vm503, %v734, 0
    %v745 = vsel %vm503, %v735, 0
    %v747 = vsel %vm538, %v739, 0
    %749 = vmatprep.subr.mxu0 0.0
    %750 = vmatpush1.msra.mxu0 0.0
    %751 = vmatprep.subr.mxu0 0.0
    %752 = vmatpush1.msra.mxu0 0.0
    %753 = vmatprep.subr.mxu0 0.0
    %754 = vmatpush1.msra.mxu0 0.0
    %755 = vmatprep.subr.mxu0 0.0
    %756 = vmatpush1.msra.mxu0 0.0
    %757 = vmatprep.subr.mxu0 0.0
    %758 = vmatpush1.msra.mxu0 0.0
    %759 = vmatprep.subr.mxu0 0.0
    %760 = vmatpush1.msra.mxu0 0.0
    %761 = vmatprep.subr.mxu0 0.0
    %762 = vmatpush1.msra.mxu0 0.0
    %763 = vmatprep.subr.mxu0 0.0
    %764 = vmatpush1.msra.mxu0 0.0
    %765 = vmatprep.subr.mxu0 0.0
    %766 = vmatpush1.msra.mxu0 0.0
    %767 = vmatprep.subr.mxu0 0.0
    %768 = vmatpush1.msra.mxu0 0.0
    %769 = vmatprep.subr.mxu0 0.0
    %770 = vmatpush1.msra.mxu0 0.0
    %771 = vmatprep.subr.mxu0 0.0
    %772 = vmatpush1.msra.mxu0 0.0
    %773 = vmatprep.subr.mxu0 0.0
    %774 = vmatpush1.msra.mxu0 0.0
    %775 = vmatprep.subr.mxu0 0.0
    %776 = vmatpush1.msra.mxu0 0.0
    %777 = vmatprep.subr.mxu0 0.0
    %778 = vmatpush1.msra.mxu0 %v747
    %779 = vmatprep.subr.mxu0 0.0
    %780 = vmatpush1.msra.mxu0 %v737
    %781 = vmatprep.subr.mxu0 0.0
    %782 = vmatpush2.msra.mxu0 0.0
    %783 = vmatprep.subr.mxu0 0.0
    %784 = vmatpush2.msra.mxu0 0.0
    %785 = vmatprep.subr.mxu0 0.0
    %786 = vmatpush2.msra.mxu0 0.0
    %787 = vmatprep.subr.mxu0 0.0
    %788 = vmatpush2.msra.mxu0 0.0
    %789 = vmatprep.subr.mxu0 0.0
    %790 = vmatpush2.msra.mxu0 0.0
    %791 = vmatprep.subr.mxu0 0.0
    %792 = vmatpush2.msra.mxu0 0.0
    %793 = vmatprep.subr.mxu0 0.0
    %794 = vmatpush2.msra.mxu0 0.0
    %795 = vmatprep.subr.mxu0 0.0
    %796 = vmatpush2.msra.mxu0 0.0
    %797 = vmatprep.subr.mxu0 0.0
    %798 = vmatpush2.msra.mxu0 0.0
    %799 = vmatprep.subr.mxu0 0.0
    %800 = vmatpush2.msra.mxu0 0.0
    %801 = vmatprep.subr.mxu0 0.0
    %802 = vmatpush2.msra.mxu0 0.0
    %803 = vmatprep.subr.mxu0 0.0
    %804 = vmatpush2.msra.mxu0 0.0
    %805 = vmatprep.subr.mxu0 0.0
    %806 = vmatpush2.msra.mxu0 0.0
    %807 = vmatprep.subr.mxu0 0.0
    %808 = vmatpush2.msra.mxu0 0.0
    %809 = vmatprep.subr.mxu0 0.0
    %810 = vmatpush2.msra.mxu0 0.0
    %811 = vmatprep.subr.mxu0 0.0
    %812 = vmatpush2.msra.mxu0 0.0
    %813 = vmatprep.mubr.f32.mxu0 0.0
    %814 = vmatmul.mubr.f32.gmra.mxu0 %v742
    %v815 = vpop.f32.mrf.mxu0
    %v816 = vadd.f32 0.0, %v815
    %v817 = vpop.f32.mrf.mxu0
    %818 = vmatprep.mubr.f32.mxu0 0.0
    %819 = vmatmul.mubr.f32.gmra.mxu0 %v745
    %v820 = vpop.f32.mrf.mxu0
    %v821 = vadd.f32 0.0, %v820
    %v822 = vpop.f32.mrf.mxu0
    %823 = vdwg.mxu0
    %826 = vrot.lane.b32.xlu0 %v816, 8
    %v827 = vpop.permute.xlu0 %826
    %828 = vrot.lane.b32.xlu0 %v821, 8
    %v829 = vpop.permute.xlu0 %828
    %vm832 = vcmask 130112
    %833 = vst.msk [vmem:[#allocation3] sm:$0xff] %vm832, %v827
    %vm834 = vcmask 123968
    %835 = vst.msk [vmem:[#allocation3 + $0x8] sm:$0x3] %vm834, %v829
    %836 = vrot.lane.b32.xlu0 %v401, 112
    %v837 = vpop.permute.xlu0 %836
    %838 = vrot.lane.b32.xlu0 %v406, 112
    %v839 = vpop.permute.xlu0 %838
    %840 = vrot.lane.b32.xlu0 %v401, 80
    %v841 = vpop.permute.xlu0 %840
    %842 = vrot.lane.b32.xlu0 %v406, 80
    %v843 = vpop.permute.xlu0 %842
    %v844 = vsel %vm415, %v837, 0
    %v846 = vsel %vm415, %v839, 0
    %v848 = vsel %vm415, %v841, 0
    %v850 = vsel %vm415, %v843, 0
    %852 = vmatprep.subr.mxu0 0.0
    %853 = vmatpush1.xpose.msra.mxu0 0.0
    %854 = vmatprep.subr.mxu0 0.0
    %855 = vmatpush1.xpose.msra.mxu0 0.0
    %856 = vmatprep.subr.mxu0 0.0
    %857 = vmatpush1.xpose.msra.mxu0 0.0
    %858 = vmatprep.subr.mxu0 0.0
    %859 = vmatpush1.xpose.msra.mxu0 0.0
    %860 = vmatprep.subr.mxu0 0.0
    %861 = vmatpush1.xpose.msra.mxu0 0.0
    %862 = vmatprep.subr.mxu0 0.0
    %863 = vmatpush1.xpose.msra.mxu0 0.0
    %864 = vmatprep.subr.mxu0 0.0
    %865 = vmatpush1.xpose.msra.mxu0 0.0
    %866 = vmatprep.subr.mxu0 0.0
    %867 = vmatpush1.xpose.msra.mxu0 0.0
    %868 = vmatprep.subr.mxu0 0.0
    %869 = vmatpush1.xpose.msra.mxu0 0.0
    %870 = vmatprep.subr.mxu0 0.0
    %871 = vmatpush1.xpose.msra.mxu0 0.0
    %872 = vmatprep.subr.mxu0 0.0
    %873 = vmatpush1.xpose.msra.mxu0 0.0
    %874 = vmatprep.subr.mxu0 0.0
    %875 = vmatpush1.xpose.msra.mxu0 0.0
    %876 = vmatprep.subr.mxu0 0.0
    %877 = vmatpush1.xpose.msra.mxu0 0.0
    %878 = vmatprep.subr.mxu0 0.0
    %879 = vmatpush1.xpose.msra.mxu0 0.0
    %880 = vmatprep.subr.mxu0 0.0
    %881 = vmatpush1.xpose.msra.mxu0 %v850
    %882 = vmatprep.subr.mxu0 0.0
    %883 = vmatpush1.xpose.msra.mxu0 %v848
    %884 = vmatprep.subr.mxu0 0.0
    %885 = vmatpush2.xpose.msra.mxu0 0.0
    %886 = vmatprep.subr.mxu0 0.0
    %887 = vmatpush2.xpose.msra.mxu0 0.0
    %888 = vmatprep.subr.mxu0 0.0
    %889 = vmatpush2.xpose.msra.mxu0 0.0
    %890 = vmatprep.subr.mxu0 0.0
    %891 = vmatpush2.xpose.msra.mxu0 0.0
    %892 = vmatprep.subr.mxu0 0.0
    %893 = vmatpush2.xpose.msra.mxu0 0.0
    %894 = vmatprep.subr.mxu0 0.0
    %895 = vmatpush2.xpose.msra.mxu0 0.0
    %896 = vmatprep.subr.mxu0 0.0
    %897 = vmatpush2.xpose.msra.mxu0 0.0
    %898 = vmatprep.subr.mxu0 0.0
    %899 = vmatpush2.xpose.msra.mxu0 0.0
    %900 = vmatprep.subr.mxu0 0.0
    %901 = vmatpush2.xpose.msra.mxu0 0.0
    %902 = vmatprep.subr.mxu0 0.0
    %903 = vmatpush2.xpose.msra.mxu0 0.0
    %904 = vmatprep.subr.mxu0 0.0
    %905 = vmatpush2.xpose.msra.mxu0 0.0
    %906 = vmatprep.subr.mxu0 0.0
    %907 = vmatpush2.xpose.msra.mxu0 0.0
    %908 = vmatprep.subr.mxu0 0.0
    %909 = vmatpush2.xpose.msra.mxu0 0.0
    %910 = vmatprep.subr.mxu0 0.0
    %911 = vmatpush2.xpose.msra.mxu0 0.0
    %912 = vmatprep.subr.mxu0 0.0
    %913 = vmatpush2.xpose.msra.mxu0 0.0
    %914 = vmatprep.subr.mxu0 0.0
    %915 = vmatpush2.xpose.msra.mxu0 0.0
    %916 = vmatprep.mubr.f32.mxu0 0.0
    %917 = vmatmul.mubr.f32.gmra.mxu0 %v844
    %v918 = vpop.f32.mrf.mxu0
    %v919 = vadd.f32 0.0, %v918
    %v920 = vpop.f32.mrf.mxu0
    %921 = vmatprep.mubr.f32.mxu0 0.0
    %922 = vmatmul.mubr.f32.gmra.mxu0 %v846
    %v923 = vpop.f32.mrf.mxu0
    %v924 = vadd.f32 0.0, %v923
    %v925 = vpop.f32.mrf.mxu0
    %926 = vdwg.mxu0
    %v927 = vmul.f32 %v919, 0.35355338
    %v928 = vmul.f32 %v924, 0.35355338
    %v929 = vadd.f32 %v927, %v268
    %v930 = vadd.f32 %v928, %v269
    %v931 = vsel %vm503, %v929, -inf
    %932 = vmax.xlane.f32.xlu0 %v931
    %v933 = vpop.xlane.xlu0 %932
    %v934 = vsel %vm507, %v930, -inf
    %935 = vmax.xlane.f32.xlu0 %v934
    %v936 = vpop.xlane.xlu0 %935
    %v937 = vsub.f32 %v929, %v933
    %v938 = vsub.f32 %v930, %v936
    %v939 = vmul.f32 %v937, 1.442695
    %v940 = vpow.pop %v939
    %v941 = vmul.f32 %v938, 1.442695
    %v942 = vpow.pop %v941
    %v943 = vsel %vm503, %v940, 0.0
    %944 = vadd.xlane.f32.xlu0 %v943
    %v945 = vpop.xlane.xlu0 %944
    %v946 = vsel %vm507, %v942, 0.0
    %947 = vadd.xlane.f32.xlu0 %v946
    %v948 = vpop.xlane.xlu0 %947
    %v949 = vrcp.pop %v945
    %v950 = vrcp.pop %v948
    %v951 = vmul.f32 %v940, %v949
    %v952 = vmul.f32 %v942, %v950
    %953 = vrot.lane.b32.xlu0 %v401, 48
    %v954 = vpop.permute.xlu0 %953
    %955 = vrot.lane.b32.xlu0 %v406, 48
    %v956 = vpop.permute.xlu0 %955
    %v959 = vsel %vm503, %v951, 0
    %v962 = vsel %vm503, %v952, 0
    %v964 = vsel %vm538, %v956, 0
    %966 = vmatprep.subr.mxu0 0.0
    %967 = vmatpush1.msra.mxu0 0.0
    %968 = vmatprep.subr.mxu0 0.0
    %969 = vmatpush1.msra.mxu0 0.0
    %970 = vmatprep.subr.mxu0 0.0
    %971 = vmatpush1.msra.mxu0 0.0
    %972 = vmatprep.subr.mxu0 0.0
    %973 = vmatpush1.msra.mxu0 0.0
    %974 = vmatprep.subr.mxu0 0.0
    %975 = vmatpush1.msra.mxu0 0.0
    %976 = vmatprep.subr.mxu0 0.0
    %977 = vmatpush1.msra.mxu0 0.0
    %978 = vmatprep.subr.mxu0 0.0
    %979 = vmatpush1.msra.mxu0 0.0
    %980 = vmatprep.subr.mxu0 0.0
    %981 = vmatpush1.msra.mxu0 0.0
    %982 = vmatprep.subr.mxu0 0.0
    %983 = vmatpush1.msra.mxu0 0.0
    %984 = vmatprep.subr.mxu0 0.0
    %985 = vmatpush1.msra.mxu0 0.0
    %986 = vmatprep.subr.mxu0 0.0
    %987 = vmatpush1.msra.mxu0 0.0
    %988 = vmatprep.subr.mxu0 0.0
    %989 = vmatpush1.msra.mxu0 0.0
    %990 = vmatprep.subr.mxu0 0.0
    %991 = vmatpush1.msra.mxu0 0.0
    %992 = vmatprep.subr.mxu0 0.0
    %993 = vmatpush1.msra.mxu0 0.0
    %994 = vmatprep.subr.mxu0 0.0
    %995 = vmatpush1.msra.mxu0 %v964
    %996 = vmatprep.subr.mxu0 0.0
    %997 = vmatpush1.msra.mxu0 %v954
    %998 = vmatprep.subr.mxu0 0.0
    %999 = vmatpush2.msra.mxu0 0.0
    %1000 = vmatprep.subr.mxu0 0.0
    %1001 = vmatpush2.msra.mxu0 0.0
    %1002 = vmatprep.subr.mxu0 0.0
    %1003 = vmatpush2.msra.mxu0 0.0
    %1004 = vmatprep.subr.mxu0 0.0
    %1005 = vmatpush2.msra.mxu0 0.0
    %1006 = vmatprep.subr.mxu0 0.0
    %1007 = vmatpush2.msra.mxu0 0.0
    %1008 = vmatprep.subr.mxu0 0.0
    %1009 = vmatpush2.msra.mxu0 0.0
    %1010 = vmatprep.subr.mxu0 0.0
    %1011 = vmatpush2.msra.mxu0 0.0
    %1012 = vmatprep.subr.mxu0 0.0
    %1013 = vmatpush2.msra.mxu0 0.0
    %1014 = vmatprep.subr.mxu0 0.0
    %1015 = vmatpush2.msra.mxu0 0.0
    %1016 = vmatprep.subr.mxu0 0.0
    %1017 = vmatpush2.msra.mxu0 0.0
    %1018 = vmatprep.subr.mxu0 0.0
    %1019 = vmatpush2.msra.mxu0 0.0
    %1020 = vmatprep.subr.mxu0 0.0
    %1021 = vmatpush2.msra.mxu0 0.0
    %1022 = vmatprep.subr.mxu0 0.0
    %1023 = vmatpush2.msra.mxu0 0.0
    %1024 = vmatprep.subr.mxu0 0.0
    %1025 = vmatpush2.msra.mxu0 0.0
    %1026 = vmatprep.subr.mxu0 0.0
    %1027 = vmatpush2.msra.mxu0 0.0
    %1028 = vmatprep.subr.mxu0 0.0
    %1029 = vmatpush2.msra.mxu0 0.0
    %1030 = vmatprep.mubr.f32.mxu0 0.0
    %1031 = vmatmul.mubr.f32.gmra.mxu0 %v959
    %v1032 = vpop.f32.mrf.mxu0
    %v1033 = vadd.f32 0.0, %v1032
    %v1034 = vpop.f32.mrf.mxu0
    %1035 = vmatprep.mubr.f32.mxu0 0.0
    %1036 = vmatmul.mubr.f32.gmra.mxu0 %v962
    %v1037 = vpop.f32.mrf.mxu0
    %v1038 = vadd.f32 0.0, %v1037
    %v1039 = vpop.f32.mrf.mxu0
    %1040 = vdwg.mxu0
    %1043 = vrot.lane.b32.xlu0 %v1033, 16
    %v1044 = vpop.permute.xlu0 %1043
    %1045 = vrot.lane.b32.xlu0 %v1038, 16
    %v1046 = vpop.permute.xlu0 %1045
    %vm1049 = vcmask 195712
    %1050 = vst.msk [vmem:[#allocation3] sm:$0xff] %vm1049, %v1044
    %vm1051 = vcmask 189568
    %1052 = vst.msk [vmem:[#allocation3 + $0x8] sm:$0x3] %vm1051, %v1046
    %1053 = vrot.lane.b32.xlu0 %v401, 104
    %v1054 = vpop.permute.xlu0 %1053
    %1055 = vrot.lane.b32.xlu0 %v406, 104
    %v1056 = vpop.permute.xlu0 %1055
    %1057 = vrot.lane.b32.xlu0 %v401, 72
    %v1058 = vpop.permute.xlu0 %1057
    %1059 = vrot.lane.b32.xlu0 %v406, 72
    %v1060 = vpop.permute.xlu0 %1059
    %v1061 = vsel %vm415, %v1054, 0
    %v1063 = vsel %vm415, %v1056, 0
    %v1065 = vsel %vm415, %v1058, 0
    %v1067 = vsel %vm415, %v1060, 0
    %1069 = vmatprep.subr.mxu0 0.0
    %1070 = vmatpush1.xpose.msra.mxu0 0.0
    %1071 = vmatprep.subr.mxu0 0.0
    %1072 = vmatpush1.xpose.msra.mxu0 0.0
    %1073 = vmatprep.subr.mxu0 0.0
    %1074 = vmatpush1.xpose.msra.mxu0 0.0
    %1075 = vmatprep.subr.mxu0 0.0
    %1076 = vmatpush1.xpose.msra.mxu0 0.0
    %1077 = vmatprep.subr.mxu0 0.0
    %1078 = vmatpush1.xpose.msra.mxu0 0.0
    %1079 = vmatprep.subr.mxu0 0.0
    %1080 = vmatpush1.xpose.msra.mxu0 0.0
    %1081 = vmatprep.subr.mxu0 0.0
    %1082 = vmatpush1.xpose.msra.mxu0 0.0
    %1083 = vmatprep.subr.mxu0 0.0
    %1084 = vmatpush1.xpose.msra.mxu0 0.0
    %1085 = vmatprep.subr.mxu0 0.0
    %1086 = vmatpush1.xpose.msra.mxu0 0.0
    %1087 = vmatprep.subr.mxu0 0.0
    %1088 = vmatpush1.xpose.msra.mxu0 0.0
    %1089 = vmatprep.subr.mxu0 0.0
    %1090 = vmatpush1.xpose.msra.mxu0 0.0
    %1091 = vmatprep.subr.mxu0 0.0
    %1092 = vmatpush1.xpose.msra.mxu0 0.0
    %1093 = vmatprep.subr.mxu0 0.0
    %1094 = vmatpush1.xpose.msra.mxu0 0.0
    %1095 = vmatprep.subr.mxu0 0.0
    %1096 = vmatpush1.xpose.msra.mxu0 0.0
    %1097 = vmatprep.subr.mxu0 0.0
    %1098 = vmatpush1.xpose.msra.mxu0 %v1067
    %1099 = vmatprep.subr.mxu0 0.0
    %1100 = vmatpush1.xpose.msra.mxu0 %v1065
    %1101 = vmatprep.subr.mxu0 0.0
    %1102 = vmatpush2.xpose.msra.mxu0 0.0
    %1103 = vmatprep.subr.mxu0 0.0
    %1104 = vmatpush2.xpose.msra.mxu0 0.0
    %1105 = vmatprep.subr.mxu0 0.0
    %1106 = vmatpush2.xpose.msra.mxu0 0.0
    %1107 = vmatprep.subr.mxu0 0.0
    %1108 = vmatpush2.xpose.msra.mxu0 0.0
    %1109 = vmatprep.subr.mxu0 0.0
    %1110 = vmatpush2.xpose.msra.mxu0 0.0
    %1111 = vmatprep.subr.mxu0 0.0
    %1112 = vmatpush2.xpose.msra.mxu0 0.0
    %1113 = vmatprep.subr.mxu0 0.0
    %1114 = vmatpush2.xpose.msra.mxu0 0.0
    %1115 = vmatprep.subr.mxu0 0.0
    %1116 = vmatpush2.xpose.msra.mxu0 0.0
    %1117 = vmatprep.subr.mxu0 0.0
    %1118 = vmatpush2.xpose.msra.mxu0 0.0
    %1119 = vmatprep.subr.mxu0 0.0
    %1120 = vmatpush2.xpose.msra.mxu0 0.0
    %1121 = vmatprep.subr.mxu0 0.0
    %1122 = vmatpush2.xpose.msra.mxu0 0.0
    %1123 = vmatprep.subr.mxu0 0.0
    %1124 = vmatpush2.xpose.msra.mxu0 0.0
    %1125 = vmatprep.subr.mxu0 0.0
    %1126 = vmatpush2.xpose.msra.mxu0 0.0
    %1127 = vmatprep.subr.mxu0 0.0
    %1128 = vmatpush2.xpose.msra.mxu0 0.0
    %1129 = vmatprep.subr.mxu0 0.0
    %1130 = vmatpush2.xpose.msra.mxu0 0.0
    %1131 = vmatprep.subr.mxu0 0.0
    %1132 = vmatpush2.xpose.msra.mxu0 0.0
    %1133 = vmatprep.mubr.f32.mxu0 0.0
    %1134 = vmatmul.mubr.f32.gmra.mxu0 %v1061
    %v1135 = vpop.f32.mrf.mxu0
    %v1136 = vadd.f32 0.0, %v1135
    %v1137 = vpop.f32.mrf.mxu0
    %1138 = vmatprep.mubr.f32.mxu0 0.0
    %1139 = vmatmul.mubr.f32.gmra.mxu0 %v1063
    %v1140 = vpop.f32.mrf.mxu0
    %v1141 = vadd.f32 0.0, %v1140
    %v1142 = vpop.f32.mrf.mxu0
    %1143 = vdwg.mxu0
    %v1144 = vmul.f32 %v1136, 0.35355338
    %v1145 = vmul.f32 %v1141, 0.35355338
    %v1146 = vadd.f32 %v1144, %v268
    %v1147 = vadd.f32 %v1145, %v269
    %v1148 = vsel %vm503, %v1146, -inf
    %1149 = vmax.xlane.f32.xlu0 %v1148
    %v1150 = vpop.xlane.xlu0 %1149
    %v1151 = vsel %vm507, %v1147, -inf
    %1152 = vmax.xlane.f32.xlu0 %v1151
    %v1153 = vpop.xlane.xlu0 %1152
    %v1154 = vsub.f32 %v1146, %v1150
    %v1155 = vsub.f32 %v1147, %v1153
    %v1156 = vmul.f32 %v1154, 1.442695
    %v1157 = vpow.pop %v1156
    %v1158 = vmul.f32 %v1155, 1.442695
    %v1159 = vpow.pop %v1158
    %v1160 = vsel %vm503, %v1157, 0.0
    %1161 = vadd.xlane.f32.xlu0 %v1160
    %v1162 = vpop.xlane.xlu0 %1161
    %v1163 = vsel %vm507, %v1159, 0.0
    %1164 = vadd.xlane.f32.xlu0 %v1163
    %v1165 = vpop.xlane.xlu0 %1164
    %v1166 = vrcp.pop %v1162
    %v1167 = vrcp.pop %v1165
    %v1168 = vmul.f32 %v1157, %v1166
    %v1169 = vmul.f32 %v1159, %v1167
    %1170 = vrot.lane.b32.xlu0 %v401, 40
    %v1171 = vpop.permute.xlu0 %1170
    %1172 = vrot.lane.b32.xlu0 %v406, 40
    %v1173 = vpop.permute.xlu0 %1172
    %v1176 = vsel %vm503, %v1168, 0
    %v1179 = vsel %vm503, %v1169, 0
    %v1181 = vsel %vm538, %v1173, 0
    %1183 = vmatprep.subr.mxu0 0.0
    %1184 = vmatpush1.msra.mxu0 0.0
    %1185 = vmatprep.subr.mxu0 0.0
    %1186 = vmatpush1.msra.mxu0 0.0
    %1187 = vmatprep.subr.mxu0 0.0
    %1188 = vmatpush1.msra.mxu0 0.0
    %1189 = vmatprep.subr.mxu0 0.0
    %1190 = vmatpush1.msra.mxu0 0.0
    %1191 = vmatprep.subr.mxu0 0.0
    %1192 = vmatpush1.msra.mxu0 0.0
    %1193 = vmatprep.subr.mxu0 0.0
    %1194 = vmatpush1.msra.mxu0 0.0
    %1195 = vmatprep.subr.mxu0 0.0
    %1196 = vmatpush1.msra.mxu0 0.0
    %1197 = vmatprep.subr.mxu0 0.0
    %1198 = vmatpush1.msra.mxu0 0.0
    %1199 = vmatprep.subr.mxu0 0.0
    %1200 = vmatpush1.msra.mxu0 0.0
    %1201 = vmatprep.subr.mxu0 0.0
    %1202 = vmatpush1.msra.mxu0 0.0
    %1203 = vmatprep.subr.mxu0 0.0
    %1204 = vmatpush1.msra.mxu0 0.0
    %1205 = vmatprep.subr.mxu0 0.0
    %1206 = vmatpush1.msra.mxu0 0.0
    %1207 = vmatprep.subr.mxu0 0.0
    %1208 = vmatpush1.msra.mxu0 0.0
    %1209 = vmatprep.subr.mxu0 0.0
    %1210 = vmatpush1.msra.mxu0 0.0
    %1211 = vmatprep.subr.mxu0 0.0
    %1212 = vmatpush1.msra.mxu0 %v1181
    %1213 = vmatprep.subr.mxu0 0.0
    %1214 = vmatpush1.msra.mxu0 %v1171
    %1215 = vmatprep.subr.mxu0 0.0
    %1216 = vmatpush2.msra.mxu0 0.0
    %1217 = vmatprep.subr.mxu0 0.0
    %1218 = vmatpush2.msra.mxu0 0.0
    %1219 = vmatprep.subr.mxu0 0.0
    %1220 = vmatpush2.msra.mxu0 0.0
    %1221 = vmatprep.subr.mxu0 0.0
    %1222 = vmatpush2.msra.mxu0 0.0
    %1223 = vmatprep.subr.mxu0 0.0
    %1224 = vmatpush2.msra.mxu0 0.0
    %1225 = vmatprep.subr.mxu0 0.0
    %1226 = vmatpush2.msra.mxu0 0.0
    %1227 = vmatprep.subr.mxu0 0.0
    %1228 = vmatpush2.msra.mxu0 0.0
    %1229 = vmatprep.subr.mxu0 0.0
    %1230 = vmatpush2.msra.mxu0 0.0
    %1231 = vmatprep.subr.mxu0 0.0
    %1232 = vmatpush2.msra.mxu0 0.0
    %1233 = vmatprep.subr.mxu0 0.0
    %1234 = vmatpush2.msra.mxu0 0.0
    %1235 = vmatprep.subr.mxu0 0.0
    %1236 = vmatpush2.msra.mxu0 0.0
    %1237 = vmatprep.subr.mxu0 0.0
    %1238 = vmatpush2.msra.mxu0 0.0
    %1239 = vmatprep.subr.mxu0 0.0
    %1240 = vmatpush2.msra.mxu0 0.0
    %1241 = vmatprep.subr.mxu0 0.0
    %1242 = vmatpush2.msra.mxu0 0.0
    %1243 = vmatprep.subr.mxu0 0.0
    %1244 = vmatpush2.msra.mxu0 0.0
    %1245 = vmatprep.subr.mxu0 0.0
    %1246 = vmatpush2.msra.mxu0 0.0
    %1247 = vmatprep.mubr.f32.mxu0 0.0
    %1248 = vmatmul.mubr.f32.gmra.mxu0 %v1176
    %v1249 = vpop.f32.mrf.mxu0
    %v1250 = vadd.f32 0.0, %v1249
    %v1251 = vpop.f32.mrf.mxu0
    %1252 = vmatprep.mubr.f32.mxu0 0.0
    %1253 = vmatmul.mubr.f32.gmra.mxu0 %v1179
    %v1254 = vpop.f32.mrf.mxu0
    %v1255 = vadd.f32 0.0, %v1254
    %v1256 = vpop.f32.mrf.mxu0
    %1257 = vdwg.mxu0
    %1260 = vrot.lane.b32.xlu0 %v1250, 24
    %v1261 = vpop.permute.xlu0 %1260
    %1262 = vrot.lane.b32.xlu0 %v1255, 24
    %v1263 = vpop.permute.xlu0 %1262
    %vm1266 = vcmask 261312
    %1267 = vst.msk [vmem:[#allocation3] sm:$0xff] %vm1266, %v1261
    %vm1268 = vcmask 255168
    %1269 = vst.msk [vmem:[#allocation3 + $0x8] sm:$0x3] %vm1268, %v1263
    %v1270 = vld [vmem:[#allocation3] sm:$0xff]
    %v1271 = vld [vmem:[#allocation3 + $0x8] sm:$0x3]
    %v1272 = vld [vmem:[%s21] sm:$0xff]
    %v1273 = vld [vmem:[%s21 + $0x8] sm:$0xff]
    %v1274 = vld [vmem:[%s21 + $0x10] sm:$0xff]
    %v1275 = vld [vmem:[%s21 + $0x18] sm:$0xff]
    %v1276 = vld [vmem:[%s23] sm:$0x1]
    %v1278 = vlaneseq
    %v1279 = vshrl.u32 %v1278, 7
    %v1280 = vsub.s32 0, %v1279
    %v1281 = vrot.slane %v1276, %v1280
    %v1284 = vsel %vm272, %v1270, 0
    %v1287 = vsel %vm272, %v1271, 0
    %1289 = vmatprep.subr.mxu0 0.0
    %1290 = vmatpush1.msra.mxu0 0.0
    %1291 = vmatprep.subr.mxu0 0.0
    %1292 = vmatpush1.msra.mxu0 0.0
    %1293 = vmatprep.subr.mxu0 0.0
    %1294 = vmatpush1.msra.mxu0 0.0
    %1295 = vmatprep.subr.mxu0 0.0
    %1296 = vmatpush1.msra.mxu0 0.0
    %1297 = vmatprep.subr.mxu0 0.0
    %1298 = vmatpush1.msra.mxu0 0.0
    %1299 = vmatprep.subr.mxu0 0.0
    %1300 = vmatpush1.msra.mxu0 0.0
    %1301 = vmatprep.subr.mxu0 0.0
    %1302 = vmatpush1.msra.mxu0 0.0
    %1303 = vmatprep.subr.mxu0 0.0
    %1304 = vmatpush1.msra.mxu0 0.0
    %1305 = vmatprep.subr.mxu0 0.0
    %1306 = vmatpush1.msra.mxu0 0.0
    %1307 = vmatprep.subr.mxu0 0.0
    %1308 = vmatpush1.msra.mxu0 0.0
    %1309 = vmatprep.subr.mxu0 0.0
    %1310 = vmatpush1.msra.mxu0 0.0
    %1311 = vmatprep.subr.mxu0 0.0
    %1312 = vmatpush1.msra.mxu0 0.0
    %1313 = vmatprep.subr.mxu0 0.0
    %1314 = vmatpush1.msra.mxu0 %v1275
    %1315 = vmatprep.subr.mxu0 0.0
    %1316 = vmatpush1.msra.mxu0 %v1274
    %1317 = vmatprep.subr.mxu0 0.0
    %1318 = vmatpush1.msra.mxu0 %v1273
    %1319 = vmatprep.subr.mxu0 0.0
    %1320 = vmatpush1.msra.mxu0 %v1272
    %1321 = vmatprep.subr.mxu0 0.0
    %1322 = vmatpush2.msra.mxu0 0.0
    %1323 = vmatprep.subr.mxu0 0.0
    %1324 = vmatpush2.msra.mxu0 0.0
    %1325 = vmatprep.subr.mxu0 0.0
    %1326 = vmatpush2.msra.mxu0 0.0
    %1327 = vmatprep.subr.mxu0 0.0
    %1328 = vmatpush2.msra.mxu0 0.0
    %1329 = vmatprep.subr.mxu0 0.0
    %1330 = vmatpush2.msra.mxu0 0.0
    %1331 = vmatprep.subr.mxu0 0.0
    %1332 = vmatpush2.msra.mxu0 0.0
    %1333 = vmatprep.subr.mxu0 0.0
    %1334 = vmatpush2.msra.mxu0 0.0
    %1335 = vmatprep.subr.mxu0 0.0
    %1336 = vmatpush2.msra.mxu0 0.0
    %1337 = vmatprep.subr.mxu0 0.0
    %1338 = vmatpush2.msra.mxu0 0.0
    %1339 = vmatprep.subr.mxu0 0.0
    %1340 = vmatpush2.msra.mxu0 0.0
    %1341 = vmatprep.subr.mxu0 0.0
    %1342 = vmatpush2.msra.mxu0 0.0
    %1343 = vmatprep.subr.mxu0 0.0
    %1344 = vmatpush2.msra.mxu0 0.0
    %1345 = vmatprep.subr.mxu0 0.0
    %1346 = vmatpush2.msra.mxu0 0.0
    %1347 = vmatprep.subr.mxu0 0.0
    %1348 = vmatpush2.msra.mxu0 0.0
    %1349 = vmatprep.subr.mxu0 0.0
    %1350 = vmatpush2.msra.mxu0 0.0
    %1351 = vmatprep.subr.mxu0 0.0
    %1352 = vmatpush2.msra.mxu0 0.0
    %1353 = vmatprep.mubr.f32.mxu0 0.0
    %1354 = vmatmul.mubr.f32.gmra.mxu0 %v1284
    %v1355 = vpop.f32.mrf.mxu0
    %v1356 = vadd.f32 %v1281, %v1355
    %v1357 = vpop.f32.mrf.mxu0
    %1358 = vmatprep.mubr.f32.mxu0 0.0
    %1359 = vmatmul.mubr.f32.gmra.mxu0 %v1287
    %v1360 = vpop.f32.mrf.mxu0
    %v1361 = vadd.f32 %v1281, %v1360
    %v1362 = vpop.f32.mrf.mxu0
    %1363 = vdwg.mxu0
    %v1364 = vadd.f32 %v266, %v1356
    %v1365 = vadd.f32 %v267, %v1361
    %v1366 = vld [vmem:[%s25] sm:$0x1]
    %v1367 = vld [vmem:[%s27] sm:$0x1]
    %v1368 = vsel %vm272, %v1364, 0.0
    %1369 = vadd.xlane.f32.xlu0 %v1368
    %v1370 = vpop.xlane.xlu0 %1369
    %v1371 = vsel %vm276, %v1365, 0.0
    %1372 = vadd.xlane.f32.xlu0 %v1371
    %v1373 = vpop.xlane.xlu0 %1372
    %v1374 = vmul.f32 %v1370, %v280
    %v1375 = vmul.f32 %v1373, %v280
    %v1376 = vsub.f32 %v1364, %v1374
    %v1377 = vsub.f32 %v1365, %v1375
    %v1378 = vmul.f32 %v1376, %v1376
    %v1379 = vmul.f32 %v1377, %v1377
    %v1380 = vsel %vm272, %v1378, 0.0
    %1381 = vadd.xlane.f32.xlu0 %v1380
    %v1382 = vpop.xlane.xlu0 %1381
    %v1383 = vsel %vm276, %v1379, 0.0
    %1384 = vadd.xlane.f32.xlu0 %v1383
    %v1385 = vpop.xlane.xlu0 %1384
    %v1386 = vmul.f32 %v1382, %v280
    %v1387 = vmul.f32 %v1385, %v280
    %v1388 = vadd.f32 %v1386, 1e-06
    %v1389 = vadd.f32 %v1387, 1e-06
    %v1390 = vrsqrt.pop %v1388
    %v1391 = vrsqrt.pop %v1389
    %v1392 = vmul.f32 %v1376, %v1390
    %v1393 = vmul.f32 %v1377, %v1391
    %v1395 = vlaneseq
    %v1396 = vshrl.u32 %v1395, 7
    %v1397 = vsub.s32 0, %v1396
    %v1398 = vrot.slane %v1366, %v1397
    %v1400 = vmul.f32 %v1392, %v1398
    %v1401 = vmul.f32 %v1393, %v1398
    %v1403 = vlaneseq
    %v1404 = vshrl.u32 %v1403, 7
    %v1405 = vsub.s32 0, %v1404
    %v1406 = vrot.slane %v1367, %v1405
    %v1408 = vadd.f32 %v1400, %v1406
    %v1409 = vadd.f32 %v1401, %v1406
    %v1410 = vld [vmem:[%s29] sm:$0xff]
    %v1411 = vld [vmem:[%s29 + $0x8] sm:$0xff]
    %v1412 = vld [vmem:[%s29 + $0x10] sm:$0xff]
    %v1413 = vld [vmem:[%s29 + $0x18] sm:$0xff]
    %v1414 = vld [vmem:[%s31] sm:$0x1]
    %v1416 = vlaneseq
    %v1417 = vshrl.u32 %v1416, 7
    %v1418 = vsub.s32 0, %v1417
    %v1419 = vrot.slane %v1414, %v1418
    %v1422 = vsel %vm272, %v1408, 0
    %v1425 = vsel %vm272, %v1409, 0
    %1427 = vmatprep.subr.mxu0 0.0
    %1428 = vmatpush1.msra.mxu0 0.0
    %1429 = vmatprep.subr.mxu0 0.0
    %1430 = vmatpush1.msra.mxu0 0.0
    %1431 = vmatprep.subr.mxu0 0.0
    %1432 = vmatpush1.msra.mxu0 0.0
    %1433 = vmatprep.subr.mxu0 0.0
    %1434 = vmatpush1.msra.mxu0 0.0
    %1435 = vmatprep.subr.mxu0 0.0
    %1436 = vmatpush1.msra.mxu0 0.0
    %1437 = vmatprep.subr.mxu0 0.0
    %1438 = vmatpush1.msra.mxu0 0.0
    %1439 = vmatprep.subr.mxu0 0.0
    %1440 = vmatpush1.msra.mxu0 0.0
    %1441 = vmatprep.subr.mxu0 0.0
    %1442 = vmatpush1.msra.mxu0 0.0
    %1443 = vmatprep.subr.mxu0 0.0
    %1444 = vmatpush1.msra.mxu0 0.0
    %1445 = vmatprep.subr.mxu0 0.0
    %1446 = vmatpush1.msra.mxu0 0.0
    %1447 = vmatprep.subr.mxu0 0.0
    %1448 = vmatpush1.msra.mxu0 0.0
    %1449 = vmatprep.subr.mxu0 0.0
    %1450 = vmatpush1.msra.mxu0 0.0
    %1451 = vmatprep.subr.mxu0 0.0
    %1452 = vmatpush1.msra.mxu0 %v1413
    %1453 = vmatprep.subr.mxu0 0.0
    %1454 = vmatpush1.msra.mxu0 %v1412
    %1455 = vmatprep.subr.mxu0 0.0
    %1456 = vmatpush1.msra.mxu0 %v1411
    %1457 = vmatprep.subr.mxu0 0.0
    %1458 = vmatpush1.msra.mxu0 %v1410
    %1459 = vmatprep.subr.mxu0 0.0
    %1460 = vmatpush2.msra.mxu0 0.0
    %1461 = vmatprep.subr.mxu0 0.0
    %1462 = vmatpush2.msra.mxu0 0.0
    %1463 = vmatprep.subr.mxu0 0.0
    %1464 = vmatpush2.msra.mxu0 0.0
    %1465 = vmatprep.subr.mxu0 0.0
    %1466 = vmatpush2.msra.mxu0 0.0
    %1467 = vmatprep.subr.mxu0 0.0
    %1468 = vmatpush2.msra.mxu0 0.0
    %1469 = vmatprep.subr.mxu0 0.0
    %1470 = vmatpush2.msra.mxu0 0.0
    %1471 = vmatprep.subr.mxu0 0.0
    %1472 = vmatpush2.msra.mxu0 0.0
    %1473 = vmatprep.subr.mxu0 0.0
    %1474 = vmatpush2.msra.mxu0 0.0
    %1475 = vmatprep.subr.mxu0 0.0
    %1476 = vmatpush2.msra.mxu0 0.0
    %1477 = vmatprep.subr.mxu0 0.0
    %1478 = vmatpush2.msra.mxu0 0.0
    %1479 = vmatprep.subr.mxu0 0.0
    %1480 = vmatpush2.msra.mxu0 0.0
    %1481 = vmatprep.subr.mxu0 0.0
    %1482 = vmatpush2.msra.mxu0 0.0
    %1483 = vmatprep.subr.mxu0 0.0
    %1484 = vmatpush2.msra.mxu0 0.0
    %1485 = vmatprep.subr.mxu0 0.0
    %1486 = vmatpush2.msra.mxu0 0.0
    %1487 = vmatprep.subr.mxu0 0.0
    %1488 = vmatpush2.msra.mxu0 0.0
    %1489 = vmatprep.subr.mxu0 0.0
    %1490 = vmatpush2.msra.mxu0 0.0
    %1491 = vmatprep.mubr.f32.mxu0 0.0
    %1492 = vmatmul.mubr.f32.gmra.mxu0 %v1422
    %v1493 = vpop.f32.mrf.mxu0
    %v1494 = vadd.f32 %v1419, %v1493
    %v1495 = vpop.f32.mrf.mxu0
    %1496 = vmatprep.mubr.f32.mxu0 0.0
    %1497 = vmatmul.mubr.f32.gmra.mxu0 %v1425
    %v1498 = vpop.f32.mrf.mxu0
    %v1499 = vadd.f32 %v1419, %v1498
    %v1500 = vpop.f32.mrf.mxu0
    %1501 = vdwg.mxu0
    %v1502 = vmul.f32 %v1494, 0.5
    %v1503 = vmul.f32 %v1499, 0.5
    %v1504 = vmul.f32 %v1494, 0.70710677
    %v1505 = vmul.f32 %v1499, 0.70710677
    %vm1506 = vcmp.ge.f32.partialorder %v1504, 0.0
    %vm1507 = vcmp.ge.f32.partialorder %v1505, 0.0
    %v1508 = vsel %vm1506, 1.0, -1.0
    %v1509 = vsel %vm1507, 1.0, -1.0
    %v1510 = vand.u32 2147483647, %v1504
    %v1511 = vand.u32 2147483647, %v1505
    %v1512 = vmul.f32 %v1510, 0.3275911
    %v1513 = vmul.f32 %v1511, 0.3275911
    %v1514 = vadd.f32 %v1512, 1.0
    %v1515 = vadd.f32 %v1513, 1.0
    %v1516 = vrcp.pop %v1514
    %v1517 = vmul.f32 1.0, %v1516
    %v1518 = vrcp.pop %v1515
    %v1519 = vmul.f32 1.0, %v1518
    %v1520 = vmul.f32 %v1517, 1.0614054
    %v1521 = vmul.f32 %v1519, 1.0614054
    %v1522 = vadd.f32 %v1520, -1.4531521
    %v1523 = vadd.f32 %v1521, -1.4531521
    %v1524 = vmul.f32 %v1522, %v1517
    %v1525 = vmul.f32 %v1523, %v1519
    %v1526 = vadd.f32 %v1524, 1.4214138
    %v1527 = vadd.f32 %v1525, 1.4214138
    %v1528 = vmul.f32 %v1526, %v1517
    %v1529 = vmul.f32 %v1527, %v1519
    %v1530 = vadd.f32 %v1528, -0.28449672
    %v1531 = vadd.f32 %v1529, -0.28449672
    %v1532 = vmul.f32 %v1530, %v1517
    %v1533 = vmul.f32 %v1531, %v1519
    %v1534 = vadd.f32 %v1532, 0.2548296
    %v1535 = vadd.f32 %v1533, 0.2548296
    %v1536 = vmul.f32 %v1534, %v1517
    %v1537 = vmul.f32 %v1535, %v1519
    %v1538 = vsub.f32 0.0, %v1510
    %v1539 = vsub.f32 0.0, %v1511
    %v1540 = vmul.f32 %v1538, %v1510
    %v1541 = vmul.f32 %v1539, %v1511
    %v1542 = vmul.f32 %v1540, 1.442695
    %v1543 = vpow.pop %v1542
    %v1544 = vmul.f32 %v1541, 1.442695
    %v1545 = vpow.pop %v1544
    %v1546 = vmul.f32 %v1536, %v1543
    %v1547 = vmul.f32 %v1537, %v1545
    %v1548 = vsub.f32 1.0, %v1546
    %v1549 = vsub.f32 1.0, %v1547
    %v1550 = vmul.f32 %v1508, %v1548
    %v1551 = vmul.f32 %v1509, %v1549
    %v1552 = vadd.f32 %v1550, 1.0
    %v1553 = vadd.f32 %v1551, 1.0
    %v1554 = vmul.f32 %v1502, %v1552
    %v1555 = vmul.f32 %v1503, %v1553
    %v1556 = vld [vmem:[%s33] sm:$0xff]
    %v1557 = vld [vmem:[%s33 + $0x8] sm:$0xff]
    %v1558 = vld [vmem:[%s33 + $0x10] sm:$0xff]
    %v1559 = vld [vmem:[%s33 + $0x18] sm:$0xff]
    %v1560 = vld [vmem:[%s33 + $0x20] sm:$0xff]
    %v1561 = vld [vmem:[%s33 + $0x28] sm:$0xff]
    %v1562 = vld [vmem:[%s33 + $0x30] sm:$0xff]
    %v1563 = vld [vmem:[%s33 + $0x38] sm:$0xff]
    %v1564 = vld [vmem:[%s33 + $0x40] sm:$0xff]
    %v1565 = vld [vmem:[%s33 + $0x48] sm:$0xff]
    %v1566 = vld [vmem:[%s33 + $0x50] sm:$0xff]
    %v1567 = vld [vmem:[%s33 + $0x58] sm:$0xff]
    %v1568 = vld [vmem:[%s33 + $0x60] sm:$0xff]
    %v1569 = vld [vmem:[%s33 + $0x68] sm:$0xff]
    %v1570 = vld [vmem:[%s33 + $0x70] sm:$0xff]
    %v1571 = vld [vmem:[%s33 + $0x78] sm:$0xff]
    %v1572 = vld [vmem:[%s35] sm:$0x1]
    %v1574 = vlaneseq
    %v1575 = vshrl.u32 %v1574, 7
    %v1576 = vsub.s32 0, %v1575
    %v1577 = vrot.slane %v1572, %v1576
    %1579 = vmatprep.subr.mxu0 0.0
    %1580 = vmatpush1.msra.mxu0 %v1571
    %1581 = vmatprep.subr.mxu0 0.0
    %1582 = vmatpush1.msra.mxu0 %v1570
    %1583 = vmatprep.subr.mxu0 0.0
    %1584 = vmatpush1.msra.mxu0 %v1569
    %1585 = vmatprep.subr.mxu0 0.0
    %1586 = vmatpush1.msra.mxu0 %v1568
    %1587 = vmatprep.subr.mxu0 0.0
    %1588 = vmatpush1.msra.mxu0 %v1567
    %1589 = vmatprep.subr.mxu0 0.0
    %1590 = vmatpush1.msra.mxu0 %v1566
    %1591 = vmatprep.subr.mxu0 0.0
    %1592 = vmatpush1.msra.mxu0 %v1565
    %1593 = vmatprep.subr.mxu0 0.0
    %1594 = vmatpush1.msra.mxu0 %v1564
    %1595 = vmatprep.subr.mxu0 0.0
    %1596 = vmatpush1.msra.mxu0 %v1563
    %1597 = vmatprep.subr.mxu0 0.0
    %1598 = vmatpush1.msra.mxu0 %v1562
    %1599 = vmatprep.subr.mxu0 0.0
    %1600 = vmatpush1.msra.mxu0 %v1561
    %1601 = vmatprep.subr.mxu0 0.0
    %1602 = vmatpush1.msra.mxu0 %v1560
    %1603 = vmatprep.subr.mxu0 0.0
    %1604 = vmatpush1.msra.mxu0 %v1559
    %1605 = vmatprep.subr.mxu0 0.0
    %1606 = vmatpush1.msra.mxu0 %v1558
    %1607 = vmatprep.subr.mxu0 0.0
    %1608 = vmatpush1.msra.mxu0 %v1557
    %1609 = vmatprep.subr.mxu0 0.0
    %1610 = vmatpush1.msra.mxu0 %v1556
    %1611 = vmatprep.subr.mxu0 0.0
    %1612 = vmatpush2.msra.mxu0 0.0
    %1613 = vmatprep.subr.mxu0 0.0
    %1614 = vmatpush2.msra.mxu0 0.0
    %1615 = vmatprep.subr.mxu0 0.0
    %1616 = vmatpush2.msra.mxu0 0.0
    %1617 = vmatprep.subr.mxu0 0.0
    %1618 = vmatpush2.msra.mxu0 0.0
    %1619 = vmatprep.subr.mxu0 0.0
    %1620 = vmatpush2.msra.mxu0 0.0
    %1621 = vmatprep.subr.mxu0 0.0
    %1622 = vmatpush2.msra.mxu0 0.0
    %1623 = vmatprep.subr.mxu0 0.0
    %1624 = vmatpush2.msra.mxu0 0.0
    %1625 = vmatprep.subr.mxu0 0.0
    %1626 = vmatpush2.msra.mxu0 0.0
    %1627 = vmatprep.subr.mxu0 0.0
    %1628 = vmatpush2.msra.mxu0 0.0
    %1629 = vmatprep.subr.mxu0 0.0
    %1630 = vmatpush2.msra.mxu0 0.0
    %1631 = vmatprep.subr.mxu0 0.0
    %1632 = vmatpush2.msra.mxu0 0.0
    %1633 = vmatprep.subr.mxu0 0.0
    %1634 = vmatpush2.msra.mxu0 0.0
    %1635 = vmatprep.subr.mxu0 0.0
    %1636 = vmatpush2.msra.mxu0 0.0
    %1637 = vmatprep.subr.mxu0 0.0
    %1638 = vmatpush2.msra.mxu0 0.0
    %1639 = vmatprep.subr.mxu0 0.0
    %1640 = vmatpush2.msra.mxu0 0.0
    %1641 = vmatprep.subr.mxu0 0.0
    %1642 = vmatpush2.msra.mxu0 0.0
    %1643 = vmatprep.mubr.f32.mxu0 0.0
    %1644 = vmatmul.mubr.f32.gmra.mxu0 %v1554
    %v1645 = vpop.f32.mrf.mxu0
    %v1646 = vadd.f32 %v1577, %v1645
    %v1647 = vpop.f32.mrf.mxu0
    %1648 = vmatprep.mubr.f32.mxu0 0.0
    %1649 = vmatmul.mubr.f32.gmra.mxu0 %v1555
    %v1650 = vpop.f32.mrf.mxu0
    %v1651 = vadd.f32 %v1577, %v1650
    %v1652 = vpop.f32.mrf.mxu0
    %1653 = vdwg.mxu0
    %v1654 = vadd.f32 %v1364, %v1646
    %v1655 = vadd.f32 %v1365, %v1651
    %v1656 = vld [vmem:[%s37] sm:$0x1]
    %v1657 = vld [vmem:[%s39] sm:$0x1]
    %v1658 = vsel %vm272, %v1654, 0.0
    %1659 = vadd.xlane.f32.xlu0 %v1658
    %v1660 = vpop.xlane.xlu0 %1659
    %v1661 = vsel %vm276, %v1655, 0.0
    %1662 = vadd.xlane.f32.xlu0 %v1661
    %v1663 = vpop.xlane.xlu0 %1662
    %v1664 = vmul.f32 %v1660, %v280
    %v1665 = vmul.f32 %v1663, %v280
    %v1666 = vsub.f32 %v1654, %v1664
    %v1667 = vsub.f32 %v1655, %v1665
    %v1668 = vmul.f32 %v1666, %v1666
    %v1669 = vmul.f32 %v1667, %v1667
    %v1670 = vsel %vm272, %v1668, 0.0
    %1671 = vadd.xlane.f32.xlu0 %v1670
    %v1672 = vpop.xlane.xlu0 %1671
    %v1673 = vsel %vm276, %v1669, 0.0
    %1674 = vadd.xlane.f32.xlu0 %v1673
    %v1675 = vpop.xlane.xlu0 %1674
    %v1676 = vmul.f32 %v1672, %v280
    %v1677 = vmul.f32 %v1675, %v280
    %v1678 = vadd.f32 %v1676, 1e-06
    %v1679 = vadd.f32 %v1677, 1e-06
    %v1680 = vrsqrt.pop %v1678
    %v1681 = vrsqrt.pop %v1679
    %v1682 = vmul.f32 %v1666, %v1680
    %v1683 = vmul.f32 %v1667, %v1681
    %v1685 = vlaneseq
    %v1686 = vshrl.u32 %v1685, 7
    %v1687 = vsub.s32 0, %v1686
    %v1688 = vrot.slane %v1656, %v1687
    %v1690 = vmul.f32 %v1682, %v1688
    %v1691 = vmul.f32 %v1683, %v1688
    %v1693 = vlaneseq
    %v1694 = vshrl.u32 %v1693, 7
    %v1695 = vsub.s32 0, %v1694
    %v1696 = vrot.slane %v1657, %v1695
    %v1698 = vadd.f32 %v1690, %v1696
    %v1699 = vadd.f32 %v1691, %v1696
    %v1700 = vld [vmem:[%s41] sm:$0xff]
    %v1701 = vld [vmem:[%s41 + $0x8] sm:$0xff]
    %v1702 = vld [vmem:[%s41 + $0x10] sm:$0xff]
    %v1703 = vld [vmem:[%s41 + $0x18] sm:$0xff]
    %v1704 = vld [vmem:[%s43] sm:$0x1]
    %v1706 = vlaneseq
    %v1707 = vshrl.u32 %v1706, 7
    %v1708 = vsub.s32 0, %v1707
    %v1709 = vrot.slane %v1704, %v1708
    %v1712 = vsel %vm272, %v1698, 0
    %v1715 = vsel %vm272, %v1699, 0
    %1717 = vmatprep.subr.mxu0 0.0
    %1718 = vmatpush1.msra.mxu0 0.0
    %1719 = vmatprep.subr.mxu0 0.0
    %1720 = vmatpush1.msra.mxu0 0.0
    %1721 = vmatprep.subr.mxu0 0.0
    %1722 = vmatpush1.msra.mxu0 0.0
    %1723 = vmatprep.subr.mxu0 0.0
    %1724 = vmatpush1.msra.mxu0 0.0
    %1725 = vmatprep.subr.mxu0 0.0
    %1726 = vmatpush1.msra.mxu0 0.0
    %1727 = vmatprep.subr.mxu0 0.0
    %1728 = vmatpush1.msra.mxu0 0.0
    %1729 = vmatprep.subr.mxu0 0.0
    %1730 = vmatpush1.msra.mxu0 0.0
    %1731 = vmatprep.subr.mxu0 0.0
    %1732 = vmatpush1.msra.mxu0 0.0
    %1733 = vmatprep.subr.mxu0 0.0
    %1734 = vmatpush1.msra.mxu0 0.0
    %1735 = vmatprep.subr.mxu0 0.0
    %1736 = vmatpush1.msra.mxu0 0.0
    %1737 = vmatprep.subr.mxu0 0.0
    %1738 = vmatpush1.msra.mxu0 0.0
    %1739 = vmatprep.subr.mxu0 0.0
    %1740 = vmatpush1.msra.mxu0 0.0
    %1741 = vmatprep.subr.mxu0 0.0
    %1742 = vmatpush1.msra.mxu0 %v1703
    %1743 = vmatprep.subr.mxu0 0.0
    %1744 = vmatpush1.msra.mxu0 %v1702
    %1745 = vmatprep.subr.mxu0 0.0
    %1746 = vmatpush1.msra.mxu0 %v1701
    %1747 = vmatprep.subr.mxu0 0.0
    %1748 = vmatpush1.msra.mxu0 %v1700
    %1749 = vmatprep.subr.mxu0 0.0
    %1750 = vmatpush2.msra.mxu0 0.0
    %1751 = vmatprep.subr.mxu0 0.0
    %1752 = vmatpush2.msra.mxu0 0.0
    %1753 = vmatprep.subr.mxu0 0.0
    %1754 = vmatpush2.msra.mxu0 0.0
    %1755 = vmatprep.subr.mxu0 0.0
    %1756 = vmatpush2.msra.mxu0 0.0
    %1757 = vmatprep.subr.mxu0 0.0
    %1758 = vmatpush2.msra.mxu0 0.0
    %1759 = vmatprep.subr.mxu0 0.0
    %1760 = vmatpush2.msra.mxu0 0.0
    %1761 = vmatprep.subr.mxu0 0.0
    %1762 = vmatpush2.msra.mxu0 0.0
    %1763 = vmatprep.subr.mxu0 0.0
    %1764 = vmatpush2.msra.mxu0 0.0
    %1765 = vmatprep.subr.mxu0 0.0
    %1766 = vmatpush2.msra.mxu0 0.0
    %1767 = vmatprep.subr.mxu0 0.0
    %1768 = vmatpush2.msra.mxu0 0.0
    %1769 = vmatprep.subr.mxu0 0.0
    %1770 = vmatpush2.msra.mxu0 0.0
    %1771 = vmatprep.subr.mxu0 0.0
    %1772 = vmatpush2.msra.mxu0 0.0
    %1773 = vmatprep.subr.mxu0 0.0
    %1774 = vmatpush2.msra.mxu0 0.0
    %1775 = vmatprep.subr.mxu0 0.0
    %1776 = vmatpush2.msra.mxu0 0.0
    %1777 = vmatprep.subr.mxu0 0.0
    %1778 = vmatpush2.msra.mxu0 0.0
    %1779 = vmatprep.subr.mxu0 0.0
    %1780 = vmatpush2.msra.mxu0 0.0
    %1781 = vmatprep.mubr.f32.mxu0 0.0
    %1782 = vmatmul.mubr.f32.gmra.mxu0 %v1712
    %v1783 = vpop.f32.mrf.mxu0
    %v1784 = vadd.f32 %v1709, %v1783
    %v1785 = vpop.f32.mrf.mxu0
    %1786 = vmatprep.mubr.f32.mxu0 0.0
    %1787 = vmatmul.mubr.f32.gmra.mxu0 %v1715
    %v1788 = vpop.f32.mrf.mxu0
    %v1789 = vadd.f32 %v1709, %v1788
    %v1790 = vpop.f32.mrf.mxu0
    %1791 = vdwg.mxu0
    %1794 = vrot.lane.b32.xlu0 %v1784, 96
    %v1795 = vpop.permute.xlu0 %1794
    %1796 = vrot.lane.b32.xlu0 %v1789, 96
    %v1797 = vpop.permute.xlu0 %1796
    %v1798 = vsel %vm415, %v1784, 0
    %v1800 = vsel %vm415, %v1789, 0
    %v1802 = vsel %vm415, %v1795, 0
    %v1804 = vsel %vm415, %v1797, 0
    %1806 = vmatprep.subr.mxu0 0.0
    %1807 = vmatpush1.xpose.msra.mxu0 0.0
    %1808 = vmatprep.subr.mxu0 0.0
    %1809 = vmatpush1.xpose.msra.mxu0 0.0
    %1810 = vmatprep.subr.mxu0 0.0
    %1811 = vmatpush1.xpose.msra.mxu0 0.0
    %1812 = vmatprep.subr.mxu0 0.0
    %1813 = vmatpush1.xpose.msra.mxu0 0.0
    %1814 = vmatprep.subr.mxu0 0.0
    %1815 = vmatpush1.xpose.msra.mxu0 0.0
    %1816 = vmatprep.subr.mxu0 0.0
    %1817 = vmatpush1.xpose.msra.mxu0 0.0
    %1818 = vmatprep.subr.mxu0 0.0
    %1819 = vmatpush1.xpose.msra.mxu0 0.0
    %1820 = vmatprep.subr.mxu0 0.0
    %1821 = vmatpush1.xpose.msra.mxu0 0.0
    %1822 = vmatprep.subr.mxu0 0.0
    %1823 = vmatpush1.xpose.msra.mxu0 0.0
    %1824 = vmatprep.subr.mxu0 0.0
    %1825 = vmatpush1.xpose.msra.mxu0 0.0
    %1826 = vmatprep.subr.mxu0 0.0
    %1827 = vmatpush1.xpose.msra.mxu0 0.0
    %1828 = vmatprep.subr.mxu0 0.0
    %1829 = vmatpush1.xpose.msra.mxu0 0.0
    %1830 = vmatprep.subr.mxu0 0.0
    %1831 = vmatpush1.xpose.msra.mxu0 0.0
    %1832 = vmatprep.subr.mxu0 0.0
    %1833 = vmatpush1.xpose.msra.mxu0 0.0
    %1834 = vmatprep.subr.mxu0 0.0
    %1835 = vmatpush1.xpose.msra.mxu0 %v1804
    %1836 = vmatprep.subr.mxu0 0.0
    %1837 = vmatpush1.xpose.msra.mxu0 %v1802
    %1838 = vmatprep.subr.mxu0 0.0
    %1839 = vmatpush2.xpose.msra.mxu0 0.0
    %1840 = vmatprep.subr.mxu0 0.0
    %1841 = vmatpush2.xpose.msra.mxu0 0.0
    %1842 = vmatprep.subr.mxu0 0.0
    %1843 = vmatpush2.xpose.msra.mxu0 0.0
    %1844 = vmatprep.subr.mxu0 0.0
    %1845 = vmatpush2.xpose.msra.mxu0 0.0
    %1846 = vmatprep.subr.mxu0 0.0
    %1847 = vmatpush2.xpose.msra.mxu0 0.0
    %1848 = vmatprep.subr.mxu0 0.0
    %1849 = vmatpush2.xpose.msra.mxu0 0.0
    %1850 = vmatprep.subr.mxu0 0.0
    %1851 = vmatpush2.xpose.msra.mxu0 0.0
    %1852 = vmatprep.subr.mxu0 0.0
    %1853 = vmatpush2.xpose.msra.mxu0 0.0
    %1854 = vmatprep.subr.mxu0 0.0
    %1855 = vmatpush2.xpose.msra.mxu0 0.0
    %1856 = vmatprep.subr.mxu0 0.0
    %1857 = vmatpush2.xpose.msra.mxu0 0.0
    %1858 = vmatprep.subr.mxu0 0.0
    %1859 = vmatpush2.xpose.msra.mxu0 0.0
    %1860 = vmatprep.subr.mxu0 0.0
    %1861 = vmatpush2.xpose.msra.mxu0 0.0
    %1862 = vmatprep.subr.mxu0 0.0
    %1863 = vmatpush2.xpose.msra.mxu0 0.0
    %1864 = vmatprep.subr.mxu0 0.0
    %1865 = vmatpush2.xpose.msra.mxu0 0.0
    %1866 = vmatprep.subr.mxu0 0.0
    %1867 = vmatpush2.xpose.msra.mxu0 0.0
    %1868 = vmatprep.subr.mxu0 0.0
    %1869 = vmatpush2.xpose.msra.mxu0 0.0
    %1870 = vmatprep.mubr.f32.mxu0 0.0
    %1871 = vmatmul.mubr.f32.gmra.mxu0 %v1798
    %v1872 = vpop.f32.mrf.mxu0
    %v1873 = vadd.f32 0.0, %v1872
    %v1874 = vpop.f32.mrf.mxu0
    %1875 = vmatprep.mubr.f32.mxu0 0.0
    %1876 = vmatmul.mubr.f32.gmra.mxu0 %v1800
    %v1877 = vpop.f32.mrf.mxu0
    %v1878 = vadd.f32 0.0, %v1877
    %v1879 = vpop.f32.mrf.mxu0
    %1880 = vdwg.mxu0
    %v1881 = vmul.f32 %v1873, 0.35355338
    %v1882 = vmul.f32 %v1878, 0.35355338
    %v1883 = vadd.f32 %v1881, %v268
    %v1884 = vadd.f32 %v1882, %v269
    %v1885 = vsel %vm503, %v1883, -inf
    %1886 = vmax.xlane.f32.xlu0 %v1885
    %v1887 = vpop.xlane.xlu0 %1886
    %v1888 = vsel %vm507, %v1884, -inf
    %1889 = vmax.xlane.f32.xlu0 %v1888
    %v1890 = vpop.xlane.xlu0 %1889
    %v1891 = vsub.f32 %v1883, %v1887
    %v1892 = vsub.f32 %v1884, %v1890
    %v1893 = vmul.f32 %v1891, 1.442695
    %v1894 = vpow.pop %v1893
    %v1895 = vmul.f32 %v1892, 1.442695
    %v1896 = vpow.pop %v1895
    %v1897 = vsel %vm503, %v1894, 0.0
    %1898 = vadd.xlane.f32.xlu0 %v1897
    %v1899 = vpop.xlane.xlu0 %1898
    %v1900 = vsel %vm507, %v1896, 0.0
    %1901 = vadd.xlane.f32.xlu0 %v1900
    %v1902 = vpop.xlane.xlu0 %1901
    %v1903 = vrcp.pop %v1899
    %v1904 = vrcp.pop %v1902
    %v1905 = vmul.f32 %v1894, %v1903
    %v1906 = vmul.f32 %v1896, %v1904
    %1907 = vrot.lane.b32.xlu0 %v1784, 64
    %v1908 = vpop.permute.xlu0 %1907
    %1909 = vrot.lane.b32.xlu0 %v1789, 64
    %v1910 = vpop.permute.xlu0 %1909
    %v1913 = vsel %vm503, %v1905, 0
    %v1916 = vsel %vm503, %v1906, 0
    %v1918 = vsel %vm538, %v1910, 0
    %1920 = vmatprep.subr.mxu0 0.0
    %1921 = vmatpush1.msra.mxu0 0.0
    %1922 = vmatprep.subr.mxu0 0.0
    %1923 = vmatpush1.msra.mxu0 0.0
    %1924 = vmatprep.subr.mxu0 0.0
    %1925 = vmatpush1.msra.mxu0 0.0
    %1926 = vmatprep.subr.mxu0 0.0
    %1927 = vmatpush1.msra.mxu0 0.0
    %1928 = vmatprep.subr.mxu0 0.0
    %1929 = vmatpush1.msra.mxu0 0.0
    %1930 = vmatprep.subr.mxu0 0.0
    %1931 = vmatpush1.msra.mxu0 0.0
    %1932 = vmatprep.subr.mxu0 0.0
    %1933 = vmatpush1.msra.mxu0 0.0
    %1934 = vmatprep.subr.mxu0 0.0
    %1935 = vmatpush1.msra.mxu0 0.0
    %1936 = vmatprep.subr.mxu0 0.0
    %1937 = vmatpush1.msra.mxu0 0.0
    %1938 = vmatprep.subr.mxu0 0.0
    %1939 = vmatpush1.msra.mxu0 0.0
    %1940 = vmatprep.subr.mxu0 0.0
    %1941 = vmatpush1.msra.mxu0 0.0
    %1942 = vmatprep.subr.mxu0 0.0
    %1943 = vmatpush1.msra.mxu0 0.0
    %1944 = vmatprep.subr.mxu0 0.0
    %1945 = vmatpush1.msra.mxu0 0.0
    %1946 = vmatprep.subr.mxu0 0.0
    %1947 = vmatpush1.msra.mxu0 0.0
    %1948 = vmatprep.subr.mxu0 0.0
    %1949 = vmatpush1.msra.mxu0 %v1918
    %1950 = vmatprep.subr.mxu0 0.0
    %1951 = vmatpush1.msra.mxu0 %v1908
    %1952 = vmatprep.subr.mxu0 0.0
    %1953 = vmatpush2.msra.mxu0 0.0
    %1954 = vmatprep.subr.mxu0 0.0
    %1955 = vmatpush2.msra.mxu0 0.0
    %1956 = vmatprep.subr.mxu0 0.0
    %1957 = vmatpush2.msra.mxu0 0.0
    %1958 = vmatprep.subr.mxu0 0.0
    %1959 = vmatpush2.msra.mxu0 0.0
    %1960 = vmatprep.subr.mxu0 0.0
    %1961 = vmatpush2.msra.mxu0 0.0
    %1962 = vmatprep.subr.mxu0 0.0
    %1963 = vmatpush2.msra.mxu0 0.0
    %1964 = vmatprep.subr.mxu0 0.0
    %1965 = vmatpush2.msra.mxu0 0.0
    %1966 = vmatprep.subr.mxu0 0.0
    %1967 = vmatpush2.msra.mxu0 0.0
    %1968 = vmatprep.subr.mxu0 0.0
    %1969 = vmatpush2.msra.mxu0 0.0
    %1970 = vmatprep.subr.mxu0 0.0
    %1971 = vmatpush2.msra.mxu0 0.0
    %1972 = vmatprep.subr.mxu0 0.0
    %1973 = vmatpush2.msra.mxu0 0.0
    %1974 = vmatprep.subr.mxu0 0.0
    %1975 = vmatpush2.msra.mxu0 0.0
    %1976 = vmatprep.subr.mxu0 0.0
    %1977 = vmatpush2.msra.mxu0 0.0
    %1978 = vmatprep.subr.mxu0 0.0
    %1979 = vmatpush2.msra.mxu0 0.0
    %1980 = vmatprep.subr.mxu0 0.0
    %1981 = vmatpush2.msra.mxu0 0.0
    %1982 = vmatprep.subr.mxu0 0.0
    %1983 = vmatpush2.msra.mxu0 0.0
    %1984 = vmatprep.mubr.f32.mxu0 0.0
    %1985 = vmatmul.mubr.f32.gmra.mxu0 %v1913
    %v1986 = vpop.f32.mrf.mxu0
    %v1987 = vadd.f32 0.0, %v1986
    %v1988 = vpop.f32.mrf.mxu0
    %1989 = vmatprep.mubr.f32.mxu0 0.0
    %1990 = vmatmul.mubr.f32.gmra.mxu0 %v1916
    %v1991 = vpop.f32.mrf.mxu0
    %v1992 = vadd.f32 0.0, %v1991
    %v1993 = vpop.f32.mrf.mxu0
    %1994 = vdwg.mxu0
    %1995 = vst.msk [vmem:[#allocation3] sm:$0xff] %vm415, %v1987
    %1996 = vst.msk [vmem:[#allocation3 + $0x8] sm:$0x3] %vm617, %v1992
    %1997 = vrot.lane.b32.xlu0 %v1784, 120
    %v1998 = vpop.permute.xlu0 %1997
    %1999 = vrot.lane.b32.xlu0 %v1789, 120
    %v2000 = vpop.permute.xlu0 %1999
    %2001 = vrot.lane.b32.xlu0 %v1784, 88
    %v2002 = vpop.permute.xlu0 %2001
    %2003 = vrot.lane.b32.xlu0 %v1789, 88
    %v2004 = vpop.permute.xlu0 %2003
    %v2005 = vsel %vm415, %v1998, 0
    %v2007 = vsel %vm415, %v2000, 0
    %v2009 = vsel %vm415, %v2002, 0
    %v2011 = vsel %vm415, %v2004, 0
    %2013 = vmatprep.subr.mxu0 0.0
    %2014 = vmatpush1.xpose.msra.mxu0 0.0
    %2015 = vmatprep.subr.mxu0 0.0
    %2016 = vmatpush1.xpose.msra.mxu0 0.0
    %2017 = vmatprep.subr.mxu0 0.0
    %2018 = vmatpush1.xpose.msra.mxu0 0.0
    %2019 = vmatprep.subr.mxu0 0.0
    %2020 = vmatpush1.xpose.msra.mxu0 0.0
    %2021 = vmatprep.subr.mxu0 0.0
    %2022 = vmatpush1.xpose.msra.mxu0 0.0
    %2023 = vmatprep.subr.mxu0 0.0
    %2024 = vmatpush1.xpose.msra.mxu0 0.0
    %2025 = vmatprep.subr.mxu0 0.0
    %2026 = vmatpush1.xpose.msra.mxu0 0.0
    %2027 = vmatprep.subr.mxu0 0.0
    %2028 = vmatpush1.xpose.msra.mxu0 0.0
    %2029 = vmatprep.subr.mxu0 0.0
    %2030 = vmatpush1.xpose.msra.mxu0 0.0
    %2031 = vmatprep.subr.mxu0 0.0
    %2032 = vmatpush1.xpose.msra.mxu0 0.0
    %2033 = vmatprep.subr.mxu0 0.0
    %2034 = vmatpush1.xpose.msra.mxu0 0.0
    %2035 = vmatprep.subr.mxu0 0.0
    %2036 = vmatpush1.xpose.msra.mxu0 0.0
    %2037 = vmatprep.subr.mxu0 0.0
    %2038 = vmatpush1.xpose.msra.mxu0 0.0
    %2039 = vmatprep.subr.mxu0 0.0
    %2040 = vmatpush1.xpose.msra.mxu0 0.0
    %2041 = vmatprep.subr.mxu0 0.0
    %2042 = vmatpush1.xpose.msra.mxu0 %v2011
    %2043 = vmatprep.subr.mxu0 0.0
    %2044 = vmatpush1.xpose.msra.mxu0 %v2009
    %2045 = vmatprep.subr.mxu0 0.0
    %2046 = vmatpush2.xpose.msra.mxu0 0.0
    %2047 = vmatprep.subr.mxu0 0.0
    %2048 = vmatpush2.xpose.msra.mxu0 0.0
    %2049 = vmatprep.subr.mxu0 0.0
    %2050 = vmatpush2.xpose.msra.mxu0 0.0
    %2051 = vmatprep.subr.mxu0 0.0
    %2052 = vmatpush2.xpose.msra.mxu0 0.0
    %2053 = vmatprep.subr.mxu0 0.0
    %2054 = vmatpush2.xpose.msra.mxu0 0.0
    %2055 = vmatprep.subr.mxu0 0.0
    %2056 = vmatpush2.xpose.msra.mxu0 0.0
    %2057 = vmatprep.subr.mxu0 0.0
    %2058 = vmatpush2.xpose.msra.mxu0 0.0
    %2059 = vmatprep.subr.mxu0 0.0
    %2060 = vmatpush2.xpose.msra.mxu0 0.0
    %2061 = vmatprep.subr.mxu0 0.0
    %2062 = vmatpush2.xpose.msra.mxu0 0.0
    %2063 = vmatprep.subr.mxu0 0.0
    %2064 = vmatpush2.xpose.msra.mxu0 0.0
    %2065 = vmatprep.subr.mxu0 0.0
    %2066 = vmatpush2.xpose.msra.mxu0 0.0
    %2067 = vmatprep.subr.mxu0 0.0
    %2068 = vmatpush2.xpose.msra.mxu0 0.0
    %2069 = vmatprep.subr.mxu0 0.0
    %2070 = vmatpush2.xpose.msra.mxu0 0.0
    %2071 = vmatprep.subr.mxu0 0.0
    %2072 = vmatpush2.xpose.msra.mxu0 0.0
    %2073 = vmatprep.subr.mxu0 0.0
    %2074 = vmatpush2.xpose.msra.mxu0 0.0
    %2075 = vmatprep.subr.mxu0 0.0
    %2076 = vmatpush2.xpose.msra.mxu0 0.0
    %2077 = vmatprep.mubr.f32.mxu0 0.0
    %2078 = vmatmul.mubr.f32.gmra.mxu0 %v2005
    %v2079 = vpop.f32.mrf.mxu0
    %v2080 = vadd.f32 0.0, %v2079
    %v2081 = vpop.f32.mrf.mxu0
    %2082 = vmatprep.mubr.f32.mxu0 0.0
    %2083 = vmatmul.mubr.f32.gmra.mxu0 %v2007
    %v2084 = vpop.f32.mrf.mxu0
    %v2085 = vadd.f32 0.0, %v2084
    %v2086 = vpop.f32.mrf.mxu0
    %2087 = vdwg.mxu0
    %v2088 = vmul.f32 %v2080, 0.35355338
    %v2089 = vmul.f32 %v2085, 0.35355338
    %v2090 = vadd.f32 %v2088, %v268
    %v2091 = vadd.f32 %v2089, %v269
    %v2092 = vsel %vm503, %v2090, -inf
    %2093 = vmax.xlane.f32.xlu0 %v2092
    %v2094 = vpop.xlane.xlu0 %2093
    %v2095 = vsel %vm507, %v2091, -inf
    %2096 = vmax.xlane.f32.xlu0 %v2095
    %v2097 = vpop.xlane.xlu0 %2096
    %v2098 = vsub.f32 %v2090, %v2094
    %v2099 = vsub.f32 %v2091, %v2097
    %v2100 = vmul.f32 %v2098, 1.442695
    %v2101 = vpow.pop %v2100
    %v2102 = vmul.f32 %v2099, 1.442695
    %v2103 = vpow.pop %v2102
    %v2104 = vsel %vm503, %v2101, 0.0
    %2105 = vadd.xlane.f32.xlu0 %v2104
    %v2106 = vpop.xlane.xlu0 %2105
    %v2107 = vsel %vm507, %v2103, 0.0
    %2108 = vadd.xlane.f32.xlu0 %v2107
    %v2109 = vpop.xlane.xlu0 %2108
    %v2110 = vrcp.pop %v2106
    %v2111 = vrcp.pop %v2109
    %v2112 = vmul.f32 %v2101, %v2110
    %v2113 = vmul.f32 %v2103, %v2111
    %2114 = vrot.lane.b32.xlu0 %v1784, 56
    %v2115 = vpop.permute.xlu0 %2114
    %2116 = vrot.lane.b32.xlu0 %v1789, 56
    %v2117 = vpop.permute.xlu0 %2116
    %v2120 = vsel %vm503, %v2112, 0
    %v2123 = vsel %vm503, %v2113, 0
    %v2125 = vsel %vm538, %v2117, 0
    %2127 = vmatprep.subr.mxu0 0.0
    %2128 = vmatpush1.msra.mxu0 0.0
    %2129 = vmatprep.subr.mxu0 0.0
    %2130 = vmatpush1.msra.mxu0 0.0
    %2131 = vmatprep.subr.mxu0 0.0
    %2132 = vmatpush1.msra.mxu0 0.0
    %2133 = vmatprep.subr.mxu0 0.0
    %2134 = vmatpush1.msra.mxu0 0.0
    %2135 = vmatprep.subr.mxu0 0.0
    %2136 = vmatpush1.msra.mxu0 0.0
    %2137 = vmatprep.subr.mxu0 0.0
    %2138 = vmatpush1.msra.mxu0 0.0
    %2139 = vmatprep.subr.mxu0 0.0
    %2140 = vmatpush1.msra.mxu0 0.0
    %2141 = vmatprep.subr.mxu0 0.0
    %2142 = vmatpush1.msra.mxu0 0.0
    %2143 = vmatprep.subr.mxu0 0.0
    %2144 = vmatpush1.msra.mxu0 0.0
    %2145 = vmatprep.subr.mxu0 0.0
    %2146 = vmatpush1.msra.mxu0 0.0
    %2147 = vmatprep.subr.mxu0 0.0
    %2148 = vmatpush1.msra.mxu0 0.0
    %2149 = vmatprep.subr.mxu0 0.0
    %2150 = vmatpush1.msra.mxu0 0.0
    %2151 = vmatprep.subr.mxu0 0.0
    %2152 = vmatpush1.msra.mxu0 0.0
    %2153 = vmatprep.subr.mxu0 0.0
    %2154 = vmatpush1.msra.mxu0 0.0
    %2155 = vmatprep.subr.mxu0 0.0
    %2156 = vmatpush1.msra.mxu0 %v2125
    %2157 = vmatprep.subr.mxu0 0.0
    %2158 = vmatpush1.msra.mxu0 %v2115
    %2159 = vmatprep.subr.mxu0 0.0
    %2160 = vmatpush2.msra.mxu0 0.0
    %2161 = vmatprep.subr.mxu0 0.0
    %2162 = vmatpush2.msra.mxu0 0.0
    %2163 = vmatprep.subr.mxu0 0.0
    %2164 = vmatpush2.msra.mxu0 0.0
    %2165 = vmatprep.subr.mxu0 0.0
    %2166 = vmatpush2.msra.mxu0 0.0
    %2167 = vmatprep.subr.mxu0 0.0
    %2168 = vmatpush2.msra.mxu0 0.0
    %2169 = vmatprep.subr.mxu0 0.0
    %2170 = vmatpush2.msra.mxu0 0.0
    %2171 = vmatprep.subr.mxu0 0.0
    %2172 = vmatpush2.msra.mxu0 0.0
    %2173 = vmatprep.subr.mxu0 0.0
    %2174 = vmatpush2.msra.mxu0 0.0
    %2175 = vmatprep.subr.mxu0 0.0
    %2176 = vmatpush2.msra.mxu0 0.0
    %2177 = vmatprep.subr.mxu0 0.0
    %2178 = vmatpush2.msra.mxu0 0.0
    %2179 = vmatprep.subr.mxu0 0.0
    %2180 = vmatpush2.msra.mxu0 0.0
    %2181 = vmatprep.subr.mxu0 0.0
    %2182 = vmatpush2.msra.mxu0 0.0
    %2183 = vmatprep.subr.mxu0 0.0
    %2184 = vmatpush2.msra.mxu0 0.0
    %2185 = vmatprep.subr.mxu0 0.0
    %2186 = vmatpush2.msra.mxu0 0.0
    %2187 = vmatprep.subr.mxu0 0.0
    %2188 = vmatpush2.msra.mxu0 0.0
    %2189 = vmatprep.subr.mxu0 0.0
    %2190 = vmatpush2.msra.mxu0 0.0
    %2191 = vmatprep.mubr.f32.mxu0 0.0
    %2192 = vmatmul.mubr.f32.gmra.mxu0 %v2120
    %v2193 = vpop.f32.mrf.mxu0
    %v2194 = vadd.f32 0.0, %v2193
    %v2195 = vpop.f32.mrf.mxu0
    %2196 = vmatprep.mubr.f32.mxu0 0.0
    %2197 = vmatmul.mubr.f32.gmra.mxu0 %v2123
    %v2198 = vpop.f32.mrf.mxu0
    %v2199 = vadd.f32 0.0, %v2198
    %v2200 = vpop.f32.mrf.mxu0
    %2201 = vdwg.mxu0
    %2204 = vrot.lane.b32.xlu0 %v2194, 8
    %v2205 = vpop.permute.xlu0 %2204
    %2206 = vrot.lane.b32.xlu0 %v2199, 8
    %v2207 = vpop.permute.xlu0 %2206
    %2210 = vst.msk [vmem:[#allocation3] sm:$0xff] %vm832, %v2205
    %2211 = vst.msk [vmem:[#allocation3 + $0x8] sm:$0x3] %vm834, %v2207
    %2212 = vrot.lane.b32.xlu0 %v1784, 112
    %v2213 = vpop.permute.xlu0 %2212
    %2214 = vrot.lane.b32.xlu0 %v1789, 112
    %v2215 = vpop.permute.xlu0 %2214
    %2216 = vrot.lane.b32.xlu0 %v1784, 80
    %v2217 = vpop.permute.xlu0 %2216
    %2218 = vrot.lane.b32.xlu0 %v1789, 80
    %v2219 = vpop.permute.xlu0 %2218
    %v2220 = vsel %vm415, %v2213, 0
    %v2222 = vsel %vm415, %v2215, 0
    %v2224 = vsel %vm415, %v2217, 0
    %v2226 = vsel %vm415, %v2219, 0
    %2228 = vmatprep.subr.mxu0 0.0
    %2229 = vmatpush1.xpose.msra.mxu0 0.0
    %2230 = vmatprep.subr.mxu0 0.0
    %2231 = vmatpush1.xpose.msra.mxu0 0.0
    %2232 = vmatprep.subr.mxu0 0.0
    %2233 = vmatpush1.xpose.msra.mxu0 0.0
    %2234 = vmatprep.subr.mxu0 0.0
    %2235 = vmatpush1.xpose.msra.mxu0 0.0
    %2236 = vmatprep.subr.mxu0 0.0
    %2237 = vmatpush1.xpose.msra.mxu0 0.0
    %2238 = vmatprep.subr.mxu0 0.0
    %2239 = vmatpush1.xpose.msra.mxu0 0.0
    %2240 = vmatprep.subr.mxu0 0.0
    %2241 = vmatpush1.xpose.msra.mxu0 0.0
    %2242 = vmatprep.subr.mxu0 0.0
    %2243 = vmatpush1.xpose.msra.mxu0 0.0
    %2244 = vmatprep.subr.mxu0 0.0
    %2245 = vmatpush1.xpose.msra.mxu0 0.0
    %2246 = vmatprep.subr.mxu0 0.0
    %2247 = vmatpush1.xpose.msra.mxu0 0.0
    %2248 = vmatprep.subr.mxu0 0.0
    %2249 = vmatpush1.xpose.msra.mxu0 0.0
    %2250 = vmatprep.subr.mxu0 0.0
    %2251 = vmatpush1.xpose.msra.mxu0 0.0
    %2252 = vmatprep.subr.mxu0 0.0
    %2253 = vmatpush1.xpose.msra.mxu0 0.0
    %2254 = vmatprep.subr.mxu0 0.0
    %2255 = vmatpush1.xpose.msra.mxu0 0.0
    %2256 = vmatprep.subr.mxu0 0.0
    %2257 = vmatpush1.xpose.msra.mxu0 %v2226
    %2258 = vmatprep.subr.mxu0 0.0
    %2259 = vmatpush1.xpose.msra.mxu0 %v2224
    %2260 = vmatprep.subr.mxu0 0.0
    %2261 = vmatpush2.xpose.msra.mxu0 0.0
    %2262 = vmatprep.subr.mxu0 0.0
    %2263 = vmatpush2.xpose.msra.mxu0 0.0
    %2264 = vmatprep.subr.mxu0 0.0
    %2265 = vmatpush2.xpose.msra.mxu0 0.0
    %2266 = vmatprep.subr.mxu0 0.0
    %2267 = vmatpush2.xpose.msra.mxu0 0.0
    %2268 = vmatprep.subr.mxu0 0.0
    %2269 = vmatpush2.xpose.msra.mxu0 0.0
    %2270 = vmatprep.subr.mxu0 0.0
    %2271 = vmatpush2.xpose.msra.mxu0 0.0
    %2272 = vmatprep.subr.mxu0 0.0
    %2273 = vmatpush2.xpose.msra.mxu0 0.0
    %2274 = vmatprep.subr.mxu0 0.0
    %2275 = vmatpush2.xpose.msra.mxu0 0.0
    %2276 = vmatprep.subr.mxu0 0.0
    %2277 = vmatpush2.xpose.msra.mxu0 0.0
    %2278 = vmatprep.subr.mxu0 0.0
    %2279 = vmatpush2.xpose.msra.mxu0 0.0
    %2280 = vmatprep.subr.mxu0 0.0
    %2281 = vmatpush2.xpose.msra.mxu0 0.0
    %2282 = vmatprep.subr.mxu0 0.0
    %2283 = vmatpush2.xpose.msra.mxu0 0.0
    %2284 = vmatprep.subr.mxu0 0.0
    %2285 = vmatpush2.xpose.msra.mxu0 0.0
    %2286 = vmatprep.subr.mxu0 0.0
    %2287 = vmatpush2.xpose.msra.mxu0 0.0
    %2288 = vmatprep.subr.mxu0 0.0
    %2289 = vmatpush2.xpose.msra.mxu0 0.0
    %2290 = vmatprep.subr.mxu0 0.0
    %2291 = vmatpush2.xpose.msra.mxu0 0.0
    %2292 = vmatprep.mubr.f32.mxu0 0.0
    %2293 = vmatmul.mubr.f32.gmra.mxu0 %v2220
    %v2294 = vpop.f32.mrf.mxu0
    %v2295 = vadd.f32 0.0, %v2294
    %v2296 = vpop.f32.mrf.mxu0
    %2297 = vmatprep.mubr.f32.mxu0 0.0
    %2298 = vmatmul.mubr.f32.gmra.mxu0 %v2222
    %v2299 = vpop.f32.mrf.mxu0
    %v2300 = vadd.f32 0.0, %v2299
    %v2301 = vpop.f32.mrf.mxu0
    %2302 = vdwg.mxu0
    %v2303 = vmul.f32 %v2295, 0.35355338
    %v2304 = vmul.f32 %v2300, 0.35355338
    %v2305 = vadd.f32 %v2303, %v268
    %v2306 = vadd.f32 %v2304, %v269
    %v2307 = vsel %vm503, %v2305, -inf
    %2308 = vmax.xlane.f32.xlu0 %v2307
    %v2309 = vpop.xlane.xlu0 %2308
    %v2310 = vsel %vm507, %v2306, -inf
    %2311 = vmax.xlane.f32.xlu0 %v2310
    %v2312 = vpop.xlane.xlu0 %2311
    %v2313 = vsub.f32 %v2305, %v2309
    %v2314 = vsub.f32 %v2306, %v2312
    %v2315 = vmul.f32 %v2313, 1.442695
    %v2316 = vpow.pop %v2315
    %v2317 = vmul.f32 %v2314, 1.442695
    %v2318 = vpow.pop %v2317
    %v2319 = vsel %vm503, %v2316, 0.0
    %2320 = vadd.xlane.f32.xlu0 %v2319
    %v2321 = vpop.xlane.xlu0 %2320
    %v2322 = vsel %vm507, %v2318, 0.0
    %2323 = vadd.xlane.f32.xlu0 %v2322
    %v2324 = vpop.xlane.xlu0 %2323
    %v2325 = vrcp.pop %v2321
    %v2326 = vrcp.pop %v2324
    %v2327 = vmul.f32 %v2316, %v2325
    %v2328 = vmul.f32 %v2318, %v2326
    %2329 = vrot.lane.b32.xlu0 %v1784, 48
    %v2330 = vpop.permute.xlu0 %2329
    %2331 = vrot.lane.b32.xlu0 %v1789, 48
    %v2332 = vpop.permute.xlu0 %2331
    %v2335 = vsel %vm503, %v2327, 0
    %v2338 = vsel %vm503, %v2328, 0
    %v2340 = vsel %vm538, %v2332, 0
    %2342 = vmatprep.subr.mxu0 0.0
    %2343 = vmatpush1.msra.mxu0 0.0
    %2344 = vmatprep.subr.mxu0 0.0
    %2345 = vmatpush1.msra.mxu0 0.0
    %2346 = vmatprep.subr.mxu0 0.0
    %2347 = vmatpush1.msra.mxu0 0.0
    %2348 = vmatprep.subr.mxu0 0.0
    %2349 = vmatpush1.msra.mxu0 0.0
    %2350 = vmatprep.subr.mxu0 0.0
    %2351 = vmatpush1.msra.mxu0 0.0
    %2352 = vmatprep.subr.mxu0 0.0
    %2353 = vmatpush1.msra.mxu0 0.0
    %2354 = vmatprep.subr.mxu0 0.0
    %2355 = vmatpush1.msra.mxu0 0.0
    %2356 = vmatprep.subr.mxu0 0.0
    %2357 = vmatpush1.msra.mxu0 0.0
    %2358 = vmatprep.subr.mxu0 0.0
    %2359 = vmatpush1.msra.mxu0 0.0
    %2360 = vmatprep.subr.mxu0 0.0
    %2361 = vmatpush1.msra.mxu0 0.0
    %2362 = vmatprep.subr.mxu0 0.0
    %2363 = vmatpush1.msra.mxu0 0.0
    %2364 = vmatprep.subr.mxu0 0.0
    %2365 = vmatpush1.msra.mxu0 0.0
    %2366 = vmatprep.subr.mxu0 0.0
    %2367 = vmatpush1.msra.mxu0 0.0
    %2368 = vmatprep.subr.mxu0 0.0
    %2369 = vmatpush1.msra.mxu0 0.0
    %2370 = vmatprep.subr.mxu0 0.0
    %2371 = vmatpush1.msra.mxu0 %v2340
    %2372 = vmatprep.subr.mxu0 0.0
    %2373 = vmatpush1.msra.mxu0 %v2330
    %2374 = vmatprep.subr.mxu0 0.0
    %2375 = vmatpush2.msra.mxu0 0.0
    %2376 = vmatprep.subr.mxu0 0.0
    %2377 = vmatpush2.msra.mxu0 0.0
    %2378 = vmatprep.subr.mxu0 0.0
    %2379 = vmatpush2.msra.mxu0 0.0
    %2380 = vmatprep.subr.mxu0 0.0
    %2381 = vmatpush2.msra.mxu0 0.0
    %2382 = vmatprep.subr.mxu0 0.0
    %2383 = vmatpush2.msra.mxu0 0.0
    %2384 = vmatprep.subr.mxu0 0.0
    %2385 = vmatpush2.msra.mxu0 0.0
    %2386 = vmatprep.subr.mxu0 0.0
    %2387 = vmatpush2.msra.mxu0 0.0
    %2388 = vmatprep.subr.mxu0 0.0
    %2389 = vmatpush2.msra.mxu0 0.0
    %2390 = vmatprep.subr.mxu0 0.0
    %2391 = vmatpush2.msra.mxu0 0.0
    %2392 = vmatprep.subr.mxu0 0.0
    %2393 = vmatpush2.msra.mxu0 0.0
    %2394 = vmatprep.subr.mxu0 0.0
    %2395 = vmatpush2.msra.mxu0 0.0
    %2396 = vmatprep.subr.mxu0 0.0
    %2397 = vmatpush2.msra.mxu0 0.0
    %2398 = vmatprep.subr.mxu0 0.0
    %2399 = vmatpush2.msra.mxu0 0.0
    %2400 = vmatprep.subr.mxu0 0.0
    %2401 = vmatpush2.msra.mxu0 0.0
    %2402 = vmatprep.subr.mxu0 0.0
    %2403 = vmatpush2.msra.mxu0 0.0
    %2404 = vmatprep.subr.mxu0 0.0
    %2405 = vmatpush2.msra.mxu0 0.0
    %2406 = vmatprep.mubr.f32.mxu0 0.0
    %2407 = vmatmul.mubr.f32.gmra.mxu0 %v2335
    %v2408 = vpop.f32.mrf.mxu0
    %v2409 = vadd.f32 0.0, %v2408
    %v2410 = vpop.f32.mrf.mxu0
    %2411 = vmatprep.mubr.f32.mxu0 0.0
    %2412 = vmatmul.mubr.f32.gmra.mxu0 %v2338
    %v2413 = vpop.f32.mrf.mxu0
    %v2414 = vadd.f32 0.0, %v2413
    %v2415 = vpop.f32.mrf.mxu0
    %2416 = vdwg.mxu0
    %2419 = vrot.lane.b32.xlu0 %v2409, 16
    %v2420 = vpop.permute.xlu0 %2419
    %2421 = vrot.lane.b32.xlu0 %v2414, 16
    %v2422 = vpop.permute.xlu0 %2421
    %2425 = vst.msk [vmem:[#allocation3] sm:$0xff] %vm1049, %v2420
    %2426 = vst.msk [vmem:[#allocation3 + $0x8] sm:$0x3] %vm1051, %v2422
    %2427 = vrot.lane.b32.xlu0 %v1784, 104
    %v2428 = vpop.permute.xlu0 %2427
    %2429 = vrot.lane.b32.xlu0 %v1789, 104
    %v2430 = vpop.permute.xlu0 %2429
    %2431 = vrot.lane.b32.xlu0 %v1784, 72
    %v2432 = vpop.permute.xlu0 %2431
    %2433 = vrot.lane.b32.xlu0 %v1789, 72
    %v2434 = vpop.permute.xlu0 %2433
    %v2435 = vsel %vm415, %v2428, 0
    %v2437 = vsel %vm415, %v2430, 0
    %v2439 = vsel %vm415, %v2432, 0
    %v2441 = vsel %vm415, %v2434, 0
    %2443 = vmatprep.subr.mxu0 0.0
    %2444 = vmatpush1.xpose.msra.mxu0 0.0
    %2445 = vmatprep.subr.mxu0 0.0
    %2446 = vmatpush1.xpose.msra.mxu0 0.0
    %2447 = vmatprep.subr.mxu0 0.0
    %2448 = vmatpush1.xpose.msra.mxu0 0.0
    %2449 = vmatprep.subr.mxu0 0.0
    %2450 = vmatpush1.xpose.msra.mxu0 0.0
    %2451 = vmatprep.subr.mxu0 0.0
    %2452 = vmatpush1.xpose.msra.mxu0 0.0
    %2453 = vmatprep.subr.mxu0 0.0
    %2454 = vmatpush1.xpose.msra.mxu0 0.0
    %2455 = vmatprep.subr.mxu0 0.0
    %2456 = vmatpush1.xpose.msra.mxu0 0.0
    %2457 = vmatprep.subr.mxu0 0.0
    %2458 = vmatpush1.xpose.msra.mxu0 0.0
    %2459 = vmatprep.subr.mxu0 0.0
    %2460 = vmatpush1.xpose.msra.mxu0 0.0
    %2461 = vmatprep.subr.mxu0 0.0
    %2462 = vmatpush1.xpose.msra.mxu0 0.0
    %2463 = vmatprep.subr.mxu0 0.0
    %2464 = vmatpush1.xpose.msra.mxu0 0.0
    %2465 = vmatprep.subr.mxu0 0.0
    %2466 = vmatpush1.xpose.msra.mxu0 0.0
    %2467 = vmatprep.subr.mxu0 0.0
    %2468 = vmatpush1.xpose.msra.mxu0 0.0
    %2469 = vmatprep.subr.mxu0 0.0
    %2470 = vmatpush1.xpose.msra.mxu0 0.0
    %2471 = vmatprep.subr.mxu0 0.0
    %2472 = vmatpush1.xpose.msra.mxu0 %v2441
    %2473 = vmatprep.subr.mxu0 0.0
    %2474 = vmatpush1.xpose.msra.mxu0 %v2439
    %2475 = vmatprep.subr.mxu0 0.0
    %2476 = vmatpush2.xpose.msra.mxu0 0.0
    %2477 = vmatprep.subr.mxu0 0.0
    %2478 = vmatpush2.xpose.msra.mxu0 0.0
    %2479 = vmatprep.subr.mxu0 0.0
    %2480 = vmatpush2.xpose.msra.mxu0 0.0
    %2481 = vmatprep.subr.mxu0 0.0
    %2482 = vmatpush2.xpose.msra.mxu0 0.0
    %2483 = vmatprep.subr.mxu0 0.0
    %2484 = vmatpush2.xpose.msra.mxu0 0.0
    %2485 = vmatprep.subr.mxu0 0.0
    %2486 = vmatpush2.xpose.msra.mxu0 0.0
    %2487 = vmatprep.subr.mxu0 0.0
    %2488 = vmatpush2.xpose.msra.mxu0 0.0
    %2489 = vmatprep.subr.mxu0 0.0
    %2490 = vmatpush2.xpose.msra.mxu0 0.0
    %2491 = vmatprep.subr.mxu0 0.0
    %2492 = vmatpush2.xpose.msra.mxu0 0.0
    %2493 = vmatprep.subr.mxu0 0.0
    %2494 = vmatpush2.xpose.msra.mxu0 0.0
    %2495 = vmatprep.subr.mxu0 0.0
    %2496 = vmatpush2.xpose.msra.mxu0 0.0
    %2497 = vmatprep.subr.mxu0 0.0
    %2498 = vmatpush2.xpose.msra.mxu0 0.0
    %2499 = vmatprep.subr.mxu0 0.0
    %2500 = vmatpush2.xpose.msra.mxu0 0.0
    %2501 = vmatprep.subr.mxu0 0.0
    %2502 = vmatpush2.xpose.msra.mxu0 0.0
    %2503 = vmatprep.subr.mxu0 0.0
    %2504 = vmatpush2.xpose.msra.mxu0 0.0
    %2505 = vmatprep.subr.mxu0 0.0
    %2506 = vmatpush2.xpose.msra.mxu0 0.0
    %2507 = vmatprep.mubr.f32.mxu0 0.0
    %2508 = vmatmul.mubr.f32.gmra.mxu0 %v2435
    %v2509 = vpop.f32.mrf.mxu0
    %v2510 = vadd.f32 0.0, %v2509
    %v2511 = vpop.f32.mrf.mxu0
    %2512 = vmatprep.mubr.f32.mxu0 0.0
    %2513 = vmatmul.mubr.f32.gmra.mxu0 %v2437
    %v2514 = vpop.f32.mrf.mxu0
    %v2515 = vadd.f32 0.0, %v2514
    %v2516 = vpop.f32.mrf.mxu0
    %2517 = vdwg.mxu0
    %v2518 = vmul.f32 %v2510, 0.35355338
    %v2519 = vmul.f32 %v2515, 0.35355338
    %v2520 = vadd.f32 %v2518, %v268
    %v2521 = vadd.f32 %v2519, %v269
    %v2522 = vsel %vm503, %v2520, -inf
    %2523 = vmax.xlane.f32.xlu0 %v2522
    %v2524 = vpop.xlane.xlu0 %2523
    %v2525 = vsel %vm507, %v2521, -inf
    %2526 = vmax.xlane.f32.xlu0 %v2525
    %v2527 = vpop.xlane.xlu0 %2526
    %v2528 = vsub.f32 %v2520, %v2524
    %v2529 = vsub.f32 %v2521, %v2527
    %v2530 = vmul.f32 %v2528, 1.442695
    %v2531 = vpow.pop %v2530
    %v2532 = vmul.f32 %v2529, 1.442695
    %v2533 = vpow.pop %v2532
    %v2534 = vsel %vm503, %v2531, 0.0
    %2535 = vadd.xlane.f32.xlu0 %v2534
    %v2536 = vpop.xlane.xlu0 %2535
    %v2537 = vsel %vm507, %v2533, 0.0
    %2538 = vadd.xlane.f32.xlu0 %v2537
    %v2539 = vpop.xlane.xlu0 %2538
    %v2540 = vrcp.pop %v2536
    %v2541 = vrcp.pop %v2539
    %v2542 = vmul.f32 %v2531, %v2540
    %v2543 = vmul.f32 %v2533, %v2541
    %2544 = vrot.lane.b32.xlu0 %v1784, 40
    %v2545 = vpop.permute.xlu0 %2544
    %2546 = vrot.lane.b32.xlu0 %v1789, 40
    %v2547 = vpop.permute.xlu0 %2546
    %v2550 = vsel %vm503, %v2542, 0
    %v2553 = vsel %vm503, %v2543, 0
    %v2555 = vsel %vm538, %v2547, 0
    %2557 = vmatprep.subr.mxu0 0.0
    %2558 = vmatpush1.msra.mxu0 0.0
    %2559 = vmatprep.subr.mxu0 0.0
    %2560 = vmatpush1.msra.mxu0 0.0
    %2561 = vmatprep.subr.mxu0 0.0
    %2562 = vmatpush1.msra.mxu0 0.0
    %2563 = vmatprep.subr.mxu0 0.0
    %2564 = vmatpush1.msra.mxu0 0.0
    %2565 = vmatprep.subr.mxu0 0.0
    %2566 = vmatpush1.msra.mxu0 0.0
    %2567 = vmatprep.subr.mxu0 0.0
    %2568 = vmatpush1.msra.mxu0 0.0
    %2569 = vmatprep.subr.mxu0 0.0
    %2570 = vmatpush1.msra.mxu0 0.0
    %2571 = vmatprep.subr.mxu0 0.0
    %2572 = vmatpush1.msra.mxu0 0.0
    %2573 = vmatprep.subr.mxu0 0.0
    %2574 = vmatpush1.msra.mxu0 0.0
    %2575 = vmatprep.subr.mxu0 0.0
    %2576 = vmatpush1.msra.mxu0 0.0
    %2577 = vmatprep.subr.mxu0 0.0
    %2578 = vmatpush1.msra.mxu0 0.0
    %2579 = vmatprep.subr.mxu0 0.0
    %2580 = vmatpush1.msra.mxu0 0.0
    %2581 = vmatprep.subr.mxu0 0.0
    %2582 = vmatpush1.msra.mxu0 0.0
    %2583 = vmatprep.subr.mxu0 0.0
    %2584 = vmatpush1.msra.mxu0 0.0
    %2585 = vmatprep.subr.mxu0 0.0
    %2586 = vmatpush1.msra.mxu0 %v2555
    %2587 = vmatprep.subr.mxu0 0.0
    %2588 = vmatpush1.msra.mxu0 %v2545
    %2589 = vmatprep.subr.mxu0 0.0
    %2590 = vmatpush2.msra.mxu0 0.0
    %2591 = vmatprep.subr.mxu0 0.0
    %2592 = vmatpush2.msra.mxu0 0.0
    %2593 = vmatprep.subr.mxu0 0.0
    %2594 = vmatpush2.msra.mxu0 0.0
    %2595 = vmatprep.subr.mxu0 0.0
    %2596 = vmatpush2.msra.mxu0 0.0
    %2597 = vmatprep.subr.mxu0 0.0
    %2598 = vmatpush2.msra.mxu0 0.0
    %2599 = vmatprep.subr.mxu0 0.0
    %2600 = vmatpush2.msra.mxu0 0.0
    %2601 = vmatprep.subr.mxu0 0.0
    %2602 = vmatpush2.msra.mxu0 0.0
    %2603 = vmatprep.subr.mxu0 0.0
    %2604 = vmatpush2.msra.mxu0 0.0
    %2605 = vmatprep.subr.mxu0 0.0
    %2606 = vmatpush2.msra.mxu0 0.0
    %2607 = vmatprep.subr.mxu0 0.0
    %2608 = vmatpush2.msra.mxu0 0.0
    %2609 = vmatprep.subr.mxu0 0.0
    %2610 = vmatpush2.msra.mxu0 0.0
    %2611 = vmatprep.subr.mxu0 0.0
    %2612 = vmatpush2.msra.mxu0 0.0
    %2613 = vmatprep.subr.mxu0 0.0
    %2614 = vmatpush2.msra.mxu0 0.0
    %2615 = vmatprep.subr.mxu0 0.0
    %2616 = vmatpush2.msra.mxu0 0.0
    %2617 = vmatprep.subr.mxu0 0.0
    %2618 = vmatpush2.msra.mxu0 0.0
    %2619 = vmatprep.subr.mxu0 0.0
    %2620 = vmatpush2.msra.mxu0 0.0
    %2621 = vmatprep.mubr.f32.mxu0 0.0
    %2622 = vmatmul.mubr.f32.gmra.mxu0 %v2550
    %v2623 = vpop.f32.mrf.mxu0
    %v2624 = vadd.f32 0.0, %v2623
    %v2625 = vpop.f32.mrf.mxu0
    %2626 = vmatprep.mubr.f32.mxu0 0.0
    %2627 = vmatmul.mubr.f32.gmra.mxu0 %v2553
    %v2628 = vpop.f32.mrf.mxu0
    %v2629 = vadd.f32 0.0, %v2628
    %v2630 = vpop.f32.mrf.mxu0
    %2631 = vdwg.mxu0
    %2634 = vrot.lane.b32.xlu0 %v2624, 24
    %v2635 = vpop.permute.xlu0 %2634
    %2636 = vrot.lane.b32.xlu0 %v2629, 24
    %v2637 = vpop.permute.xlu0 %2636
    %2640 = vst.msk [vmem:[#allocation3] sm:$0xff] %vm1266, %v2635
    %2641 = vst.msk [vmem:[#allocation3 + $0x8] sm:$0x3] %vm1268, %v2637
    %v2642 = vld [vmem:[#allocation3] sm:$0xff]
    %v2643 = vld [vmem:[#allocation3 + $0x8] sm:$0x3]
    %v2644 = vld [vmem:[%s45] sm:$0xff]
    %v2645 = vld [vmem:[%s45 + $0x8] sm:$0xff]
    %v2646 = vld [vmem:[%s45 + $0x10] sm:$0xff]
    %v2647 = vld [vmem:[%s45 + $0x18] sm:$0xff]
    %v2648 = vld [vmem:[%s47] sm:$0x1]
    %v2650 = vlaneseq
    %v2651 = vshrl.u32 %v2650, 7
    %v2652 = vsub.s32 0, %v2651
    %v2653 = vrot.slane %v2648, %v2652
    %v2656 = vsel %vm272, %v2642, 0
    %v2659 = vsel %vm272, %v2643, 0
    %2661 = vmatprep.subr.mxu0 0.0
    %2662 = vmatpush1.msra.mxu0 0.0
    %2663 = vmatprep.subr.mxu0 0.0
    %2664 = vmatpush1.msra.mxu0 0.0
    %2665 = vmatprep.subr.mxu0 0.0
    %2666 = vmatpush1.msra.mxu0 0.0
    %2667 = vmatprep.subr.mxu0 0.0
    %2668 = vmatpush1.msra.mxu0 0.0
    %2669 = vmatprep.subr.mxu0 0.0
    %2670 = vmatpush1.msra.mxu0 0.0
    %2671 = vmatprep.subr.mxu0 0.0
    %2672 = vmatpush1.msra.mxu0 0.0
    %2673 = vmatprep.subr.mxu0 0.0
    %2674 = vmatpush1.msra.mxu0 0.0
    %2675 = vmatprep.subr.mxu0 0.0
    %2676 = vmatpush1.msra.mxu0 0.0
    %2677 = vmatprep.subr.mxu0 0.0
    %2678 = vmatpush1.msra.mxu0 0.0
    %2679 = vmatprep.subr.mxu0 0.0
    %2680 = vmatpush1.msra.mxu0 0.0
    %2681 = vmatprep.subr.mxu0 0.0
    %2682 = vmatpush1.msra.mxu0 0.0
    %2683 = vmatprep.subr.mxu0 0.0
    %2684 = vmatpush1.msra.mxu0 0.0
    %2685 = vmatprep.subr.mxu0 0.0
    %2686 = vmatpush1.msra.mxu0 %v2647
    %2687 = vmatprep.subr.mxu0 0.0
    %2688 = vmatpush1.msra.mxu0 %v2646
    %2689 = vmatprep.subr.mxu0 0.0
    %2690 = vmatpush1.msra.mxu0 %v2645
    %2691 = vmatprep.subr.mxu0 0.0
    %2692 = vmatpush1.msra.mxu0 %v2644
    %2693 = vmatprep.subr.mxu0 0.0
    %2694 = vmatpush2.msra.mxu0 0.0
    %2695 = vmatprep.subr.mxu0 0.0
    %2696 = vmatpush2.msra.mxu0 0.0
    %2697 = vmatprep.subr.mxu0 0.0
    %2698 = vmatpush2.msra.mxu0 0.0
    %2699 = vmatprep.subr.mxu0 0.0
    %2700 = vmatpush2.msra.mxu0 0.0
    %2701 = vmatprep.subr.mxu0 0.0
    %2702 = vmatpush2.msra.mxu0 0.0
    %2703 = vmatprep.subr.mxu0 0.0
    %2704 = vmatpush2.msra.mxu0 0.0
    %2705 = vmatprep.subr.mxu0 0.0
    %2706 = vmatpush2.msra.mxu0 0.0
    %2707 = vmatprep.subr.mxu0 0.0
    %2708 = vmatpush2.msra.mxu0 0.0
    %2709 = vmatprep.subr.mxu0 0.0
    %2710 = vmatpush2.msra.mxu0 0.0
    %2711 = vmatprep.subr.mxu0 0.0
    %2712 = vmatpush2.msra.mxu0 0.0
    %2713 = vmatprep.subr.mxu0 0.0
    %2714 = vmatpush2.msra.mxu0 0.0
    %2715 = vmatprep.subr.mxu0 0.0
    %2716 = vmatpush2.msra.mxu0 0.0
    %2717 = vmatprep.subr.mxu0 0.0
    %2718 = vmatpush2.msra.mxu0 0.0
    %2719 = vmatprep.subr.mxu0 0.0
    %2720 = vmatpush2.msra.mxu0 0.0
    %2721 = vmatprep.subr.mxu0 0.0
    %2722 = vmatpush2.msra.mxu0 0.0
    %2723 = vmatprep.subr.mxu0 0.0
    %2724 = vmatpush2.msra.mxu0 0.0
    %2725 = vmatprep.mubr.f32.mxu0 0.0
    %2726 = vmatmul.mubr.f32.gmra.mxu0 %v2656
    %v2727 = vpop.f32.mrf.mxu0
    %v2728 = vadd.f32 %v2653, %v2727
    %v2729 = vpop.f32.mrf.mxu0
    %2730 = vmatprep.mubr.f32.mxu0 0.0
    %2731 = vmatmul.mubr.f32.gmra.mxu0 %v2659
    %v2732 = vpop.f32.mrf.mxu0
    %v2733 = vadd.f32 %v2653, %v2732
    %v2734 = vpop.f32.mrf.mxu0
    %2735 = vdwg.mxu0
    %v2736 = vadd.f32 %v1654, %v2728
    %v2737 = vadd.f32 %v1655, %v2733
    %v2738 = vld [vmem:[%s49] sm:$0x1]
    %v2739 = vld [vmem:[%s51] sm:$0x1]
    %v2740 = vsel %vm272, %v2736, 0.0
    %2741 = vadd.xlane.f32.xlu0 %v2740
    %v2742 = vpop.xlane.xlu0 %2741
    %v2743 = vsel %vm276, %v2737, 0.0
    %2744 = vadd.xlane.f32.xlu0 %v2743
    %v2745 = vpop.xlane.xlu0 %2744
    %v2746 = vmul.f32 %v2742, %v280
    %v2747 = vmul.f32 %v2745, %v280
    %v2748 = vsub.f32 %v2736, %v2746
    %v2749 = vsub.f32 %v2737, %v2747
    %v2750 = vmul.f32 %v2748, %v2748
    %v2751 = vmul.f32 %v2749, %v2749
    %v2752 = vsel %vm272, %v2750, 0.0
    %2753 = vadd.xlane.f32.xlu0 %v2752
    %v2754 = vpop.xlane.xlu0 %2753
    %v2755 = vsel %vm276, %v2751, 0.0
    %2756 = vadd.xlane.f32.xlu0 %v2755
    %v2757 = vpop.xlane.xlu0 %2756
    %v2758 = vmul.f32 %v2754, %v280
    %v2759 = vmul.f32 %v2757, %v280
    %v2760 = vadd.f32 %v2758, 1e-06
    %v2761 = vadd.f32 %v2759, 1e-06
    %v2762 = vrsqrt.pop %v2760
    %v2763 = vrsqrt.pop %v2761
    %v2764 = vmul.f32 %v2748, %v2762
    %v2765 = vmul.f32 %v2749, %v2763
    %v2767 = vlaneseq
    %v2768 = vshrl.u32 %v2767, 7
    %v2769 = vsub.s32 0, %v2768
    %v2770 = vrot.slane %v2738, %v2769
    %v2772 = vmul.f32 %v2764, %v2770
    %v2773 = vmul.f32 %v2765, %v2770
    %v2775 = vlaneseq
    %v2776 = vshrl.u32 %v2775, 7
    %v2777 = vsub.s32 0, %v2776
    %v2778 = vrot.slane %v2739, %v2777
    %v2780 = vadd.f32 %v2772, %v2778
    %v2781 = vadd.f32 %v2773, %v2778
    %v2782 = vld [vmem:[%s53] sm:$0xff]
    %v2783 = vld [vmem:[%s53 + $0x8] sm:$0xff]
    %v2784 = vld [vmem:[%s53 + $0x10] sm:$0xff]
    %v2785 = vld [vmem:[%s53 + $0x18] sm:$0xff]
    %v2786 = vld [vmem:[%s55] sm:$0x1]
    %v2788 = vlaneseq
    %v2789 = vshrl.u32 %v2788, 7
    %v2790 = vsub.s32 0, %v2789
    %v2791 = vrot.slane %v2786, %v2790
    %v2794 = vsel %vm272, %v2780, 0
    %v2797 = vsel %vm272, %v2781, 0
    %2799 = vmatprep.subr.mxu0 0.0
    %2800 = vmatpush1.msra.mxu0 0.0
    %2801 = vmatprep.subr.mxu0 0.0
    %2802 = vmatpush1.msra.mxu0 0.0
    %2803 = vmatprep.subr.mxu0 0.0
    %2804 = vmatpush1.msra.mxu0 0.0
    %2805 = vmatprep.subr.mxu0 0.0
    %2806 = vmatpush1.msra.mxu0 0.0
    %2807 = vmatprep.subr.mxu0 0.0
    %2808 = vmatpush1.msra.mxu0 0.0
    %2809 = vmatprep.subr.mxu0 0.0
    %2810 = vmatpush1.msra.mxu0 0.0
    %2811 = vmatprep.subr.mxu0 0.0
    %2812 = vmatpush1.msra.mxu0 0.0
    %2813 = vmatprep.subr.mxu0 0.0
    %2814 = vmatpush1.msra.mxu0 0.0
    %2815 = vmatprep.subr.mxu0 0.0
    %2816 = vmatpush1.msra.mxu0 0.0
    %2817 = vmatprep.subr.mxu0 0.0
    %2818 = vmatpush1.msra.mxu0 0.0
    %2819 = vmatprep.subr.mxu0 0.0
    %2820 = vmatpush1.msra.mxu0 0.0
    %2821 = vmatprep.subr.mxu0 0.0
    %2822 = vmatpush1.msra.mxu0 0.0
    %2823 = vmatprep.subr.mxu0 0.0
    %2824 = vmatpush1.msra.mxu0 %v2785
    %2825 = vmatprep.subr.mxu0 0.0
    %2826 = vmatpush1.msra.mxu0 %v2784
    %2827 = vmatprep.subr.mxu0 0.0
    %2828 = vmatpush1.msra.mxu0 %v2783
    %2829 = vmatprep.subr.mxu0 0.0
    %2830 = vmatpush1.msra.mxu0 %v2782
    %2831 = vmatprep.subr.mxu0 0.0
    %2832 = vmatpush2.msra.mxu0 0.0
    %2833 = vmatprep.subr.mxu0 0.0
    %2834 = vmatpush2.msra.mxu0 0.0
    %2835 = vmatprep.subr.mxu0 0.0
    %2836 = vmatpush2.msra.mxu0 0.0
    %2837 = vmatprep.subr.mxu0 0.0
    %2838 = vmatpush2.msra.mxu0 0.0
    %2839 = vmatprep.subr.mxu0 0.0
    %2840 = vmatpush2.msra.mxu0 0.0
    %2841 = vmatprep.subr.mxu0 0.0
    %2842 = vmatpush2.msra.mxu0 0.0
    %2843 = vmatprep.subr.mxu0 0.0
    %2844 = vmatpush2.msra.mxu0 0.0
    %2845 = vmatprep.subr.mxu0 0.0
    %2846 = vmatpush2.msra.mxu0 0.0
    %2847 = vmatprep.subr.mxu0 0.0
    %2848 = vmatpush2.msra.mxu0 0.0
    %2849 = vmatprep.subr.mxu0 0.0
    %2850 = vmatpush2.msra.mxu0 0.0
    %2851 = vmatprep.subr.mxu0 0.0
    %2852 = vmatpush2.msra.mxu0 0.0
    %2853 = vmatprep.subr.mxu0 0.0
    %2854 = vmatpush2.msra.mxu0 0.0
    %2855 = vmatprep.subr.mxu0 0.0
    %2856 = vmatpush2.msra.mxu0 0.0
    %2857 = vmatprep.subr.mxu0 0.0
    %2858 = vmatpush2.msra.mxu0 0.0
    %2859 = vmatprep.subr.mxu0 0.0
    %2860 = vmatpush2.msra.mxu0 0.0
    %2861 = vmatprep.subr.mxu0 0.0
    %2862 = vmatpush2.msra.mxu0 0.0
    %2863 = vmatprep.mubr.f32.mxu0 0.0
    %2864 = vmatmul.mubr.f32.gmra.mxu0 %v2794
    %v2865 = vpop.f32.mrf.mxu0
    %v2866 = vadd.f32 %v2791, %v2865
    %v2867 = vpop.f32.mrf.mxu0
    %2868 = vmatprep.mubr.f32.mxu0 0.0
    %2869 = vmatmul.mubr.f32.gmra.mxu0 %v2797
    %v2870 = vpop.f32.mrf.mxu0
    %v2871 = vadd.f32 %v2791, %v2870
    %v2872 = vpop.f32.mrf.mxu0
    %2873 = vdwg.mxu0
    %v2874 = vmul.f32 %v2866, 0.5
    %v2875 = vmul.f32 %v2871, 0.5
    %v2876 = vmul.f32 %v2866, 0.70710677
    %v2877 = vmul.f32 %v2871, 0.70710677
    %vm2878 = vcmp.ge.f32.partialorder %v2876, 0.0
    %vm2879 = vcmp.ge.f32.partialorder %v2877, 0.0
    %v2880 = vsel %vm2878, 1.0, -1.0
    %v2881 = vsel %vm2879, 1.0, -1.0
    %v2882 = vand.u32 2147483647, %v2876
    %v2883 = vand.u32 2147483647, %v2877
    %v2884 = vmul.f32 %v2882, 0.3275911
    %v2885 = vmul.f32 %v2883, 0.3275911
    %v2886 = vadd.f32 %v2884, 1.0
    %v2887 = vadd.f32 %v2885, 1.0
    %v2888 = vrcp.pop %v2886
    %v2889 = vmul.f32 1.0, %v2888
    %v2890 = vrcp.pop %v2887
    %v2891 = vmul.f32 1.0, %v2890
    %v2892 = vmul.f32 %v2889, 1.0614054
    %v2893 = vmul.f32 %v2891, 1.0614054
    %v2894 = vadd.f32 %v2892, -1.4531521
    %v2895 = vadd.f32 %v2893, -1.4531521
    %v2896 = vmul.f32 %v2894, %v2889
    %v2897 = vmul.f32 %v2895, %v2891
    %v2898 = vadd.f32 %v2896, 1.4214138
    %v2899 = vadd.f32 %v2897, 1.4214138
    %v2900 = vmul.f32 %v2898, %v2889
    %v2901 = vmul.f32 %v2899, %v2891
    %v2902 = vadd.f32 %v2900, -0.28449672
    %v2903 = vadd.f32 %v2901, -0.28449672
    %v2904 = vmul.f32 %v2902, %v2889
    %v2905 = vmul.f32 %v2903, %v2891
    %v2906 = vadd.f32 %v2904, 0.2548296
    %v2907 = vadd.f32 %v2905, 0.2548296
    %v2908 = vmul.f32 %v2906, %v2889
    %v2909 = vmul.f32 %v2907, %v2891
    %v2910 = vsub.f32 0.0, %v2882
    %v2911 = vsub.f32 0.0, %v2883
    %v2912 = vmul.f32 %v2910, %v2882
    %v2913 = vmul.f32 %v2911, %v2883
    %v2914 = vmul.f32 %v2912, 1.442695
    %v2915 = vpow.pop %v2914
    %v2916 = vmul.f32 %v2913, 1.442695
    %v2917 = vpow.pop %v2916
    %v2918 = vmul.f32 %v2908, %v2915
    %v2919 = vmul.f32 %v2909, %v2917
    %v2920 = vsub.f32 1.0, %v2918
    %v2921 = vsub.f32 1.0, %v2919
    %v2922 = vmul.f32 %v2880, %v2920
    %v2923 = vmul.f32 %v2881, %v2921
    %v2924 = vadd.f32 %v2922, 1.0
    %v2925 = vadd.f32 %v2923, 1.0
    %v2926 = vmul.f32 %v2874, %v2924
    %v2927 = vmul.f32 %v2875, %v2925
    %v2928 = vld [vmem:[%s57] sm:$0xff]
    %v2929 = vld [vmem:[%s57 + $0x8] sm:$0xff]
    %v2930 = vld [vmem:[%s57 + $0x10] sm:$0xff]
    %v2931 = vld [vmem:[%s57 + $0x18] sm:$0xff]
    %v2932 = vld [vmem:[%s57 + $0x20] sm:$0xff]
    %v2933 = vld [vmem:[%s57 + $0x28] sm:$0xff]
    %v2934 = vld [vmem:[%s57 + $0x30] sm:$0xff]
    %v2935 = vld [vmem:[%s57 + $0x38] sm:$0xff]
    %v2936 = vld [vmem:[%s57 + $0x40] sm:$0xff]
    %v2937 = vld [vmem:[%s57 + $0x48] sm:$0xff]
    %v2938 = vld [vmem:[%s57 + $0x50] sm:$0xff]
    %v2939 = vld [vmem:[%s57 + $0x58] sm:$0xff]
    %v2940 = vld [vmem:[%s57 + $0x60] sm:$0xff]
    %v2941 = vld [vmem:[%s57 + $0x68] sm:$0xff]
    %v2942 = vld [vmem:[%s57 + $0x70] sm:$0xff]
    %v2943 = vld [vmem:[%s57 + $0x78] sm:$0xff]
    %v2944 = vld [vmem:[%s59] sm:$0x1]
    %v2946 = vlaneseq
    %v2947 = vshrl.u32 %v2946, 7
    %v2948 = vsub.s32 0, %v2947
    %v2949 = vrot.slane %v2944, %v2948
    %2951 = vmatprep.subr.mxu0 0.0
    %2952 = vmatpush1.msra.mxu0 %v2943
    %2953 = vmatprep.subr.mxu0 0.0
    %2954 = vmatpush1.msra.mxu0 %v2942
    %2955 = vmatprep.subr.mxu0 0.0
    %2956 = vmatpush1.msra.mxu0 %v2941
    %2957 = vmatprep.subr.mxu0 0.0
    %2958 = vmatpush1.msra.mxu0 %v2940
    %2959 = vmatprep.subr.mxu0 0.0
    %2960 = vmatpush1.msra.mxu0 %v2939
    %2961 = vmatprep.subr.mxu0 0.0
    %2962 = vmatpush1.msra.mxu0 %v2938
    %2963 = vmatprep.subr.mxu0 0.0
    %2964 = vmatpush1.msra.mxu0 %v2937
    %2965 = vmatprep.subr.mxu0 0.0
    %2966 = vmatpush1.msra.mxu0 %v2936
    %2967 = vmatprep.subr.mxu0 0.0
    %2968 = vmatpush1.msra.mxu0 %v2935
    %2969 = vmatprep.subr.mxu0 0.0
    %2970 = vmatpush1.msra.mxu0 %v2934
    %2971 = vmatprep.subr.mxu0 0.0
    %2972 = vmatpush1.msra.mxu0 %v2933
    %2973 = vmatprep.subr.mxu0 0.0
    %2974 = vmatpush1.msra.mxu0 %v2932
    %2975 = vmatprep.subr.mxu0 0.0
    %2976 = vmatpush1.msra.mxu0 %v2931
    %2977 = vmatprep.subr.mxu0 0.0
    %2978 = vmatpush1.msra.mxu0 %v2930
    %2979 = vmatprep.subr.mxu0 0.0
    %2980 = vmatpush1.msra.mxu0 %v2929
    %2981 = vmatprep.subr.mxu0 0.0
    %2982 = vmatpush1.msra.mxu0 %v2928
    %2983 = vmatprep.subr.mxu0 0.0
    %2984 = vmatpush2.msra.mxu0 0.0
    %2985 = vmatprep.subr.mxu0 0.0
    %2986 = vmatpush2.msra.mxu0 0.0
    %2987 = vmatprep.subr.mxu0 0.0
    %2988 = vmatpush2.msra.mxu0 0.0
    %2989 = vmatprep.subr.mxu0 0.0
    %2990 = vmatpush2.msra.mxu0 0.0
    %2991 = vmatprep.subr.mxu0 0.0
    %2992 = vmatpush2.msra.mxu0 0.0
    %2993 = vmatprep.subr.mxu0 0.0
    %2994 = vmatpush2.msra.mxu0 0.0
    %2995 = vmatprep.subr.mxu0 0.0
    %2996 = vmatpush2.msra.mxu0 0.0
    %2997 = vmatprep.subr.mxu0 0.0
    %2998 = vmatpush2.msra.mxu0 0.0
    %2999 = vmatprep.subr.mxu0 0.0
    %3000 = vmatpush2.msra.mxu0 0.0
    %3001 = vmatprep.subr.mxu0 0.0
    %3002 = vmatpush2.msra.mxu0 0.0
    %3003 = vmatprep.subr.mxu0 0.0
    %3004 = vmatpush2.msra.mxu0 0.0
    %3005 = vmatprep.subr.mxu0 0.0
    %3006 = vmatpush2.msra.mxu0 0.0
    %3007 = vmatprep.subr.mxu0 0.0
    %3008 = vmatpush2.msra.mxu0 0.0
    %3009 = vmatprep.subr.mxu0 0.0
    %3010 = vmatpush2.msra.mxu0 0.0
    %3011 = vmatprep.subr.mxu0 0.0
    %3012 = vmatpush2.msra.mxu0 0.0
    %3013 = vmatprep.subr.mxu0 0.0
    %3014 = vmatpush2.msra.mxu0 0.0
    %3015 = vmatprep.mubr.f32.mxu0 0.0
    %3016 = vmatmul.mubr.f32.gmra.mxu0 %v2926
    %v3017 = vpop.f32.mrf.mxu0
    %v3018 = vadd.f32 %v2949, %v3017
    %v3019 = vpop.f32.mrf.mxu0
    %3020 = vmatprep.mubr.f32.mxu0 0.0
    %3021 = vmatmul.mubr.f32.gmra.mxu0 %v2927
    %v3022 = vpop.f32.mrf.mxu0
    %v3023 = vadd.f32 %v2949, %v3022
    %v3024 = vpop.f32.mrf.mxu0
    %3025 = vdwg.mxu0
    %v3026 = vadd.f32 %v2736, %v3018
    %v3027 = vadd.f32 %v2737, %v3023
    %v3028 = vld [vmem:[%s61] sm:$0x1]
    %v3029 = vld [vmem:[%s63] sm:$0x1]
    %v3030 = vsel %vm272, %v3026, 0.0
    %3031 = vadd.xlane.f32.xlu0 %v3030
    %v3032 = vpop.xlane.xlu0 %3031
    %v3033 = vsel %vm276, %v3027, 0.0
    %3034 = vadd.xlane.f32.xlu0 %v3033
    %v3035 = vpop.xlane.xlu0 %3034
    %v3036 = vmul.f32 %v3032, %v280
    %v3037 = vmul.f32 %v3035, %v280
    %v3038 = vsub.f32 %v3026, %v3036
    %v3039 = vsub.f32 %v3027, %v3037
    %v3040 = vmul.f32 %v3038, %v3038
    %v3041 = vmul.f32 %v3039, %v3039
    %v3042 = vsel %vm272, %v3040, 0.0
    %3043 = vadd.xlane.f32.xlu0 %v3042
    %v3044 = vpop.xlane.xlu0 %3043
    %v3045 = vsel %vm276, %v3041, 0.0
    %3046 = vadd.xlane.f32.xlu0 %v3045
    %v3047 = vpop.xlane.xlu0 %3046
    %v3048 = vmul.f32 %v3044, %v280
    %v3049 = vmul.f32 %v3047, %v280
    %v3050 = vadd.f32 %v3048, 1e-06
    %v3051 = vadd.f32 %v3049, 1e-06
    %v3052 = vrsqrt.pop %v3050
    %v3053 = vrsqrt.pop %v3051
    %v3054 = vmul.f32 %v3038, %v3052
    %v3055 = vmul.f32 %v3039, %v3053
    %v3057 = vlaneseq
    %v3058 = vshrl.u32 %v3057, 7
    %v3059 = vsub.s32 0, %v3058
    %v3060 = vrot.slane %v3028, %v3059
    %v3062 = vmul.f32 %v3054, %v3060
    %v3063 = vmul.f32 %v3055, %v3060
    %v3065 = vlaneseq
    %v3066 = vshrl.u32 %v3065, 7
    %v3067 = vsub.s32 0, %v3066
    %v3068 = vrot.slane %v3029, %v3067
    %v3070 = vadd.f32 %v3062, %v3068
    %v3071 = vadd.f32 %v3063, %v3068
    %v3072 = vld [vmem:[%s65] sm:$0xff]
    %v3073 = vld [vmem:[%s65 + $0x8] sm:$0xff]
    %v3074 = vld [vmem:[%s65 + $0x10] sm:$0xff]
    %v3075 = vld [vmem:[%s65 + $0x18] sm:$0xff]
    %v3076 = vld [vmem:[%s67] sm:$0x1]
    %v3078 = vlaneseq
    %v3079 = vshrl.u32 %v3078, 7
    %v3080 = vsub.s32 0, %v3079
    %v3081 = vrot.slane %v3076, %v3080
    %v3084 = vsel %vm272, %v3070, 0
    %v3087 = vsel %vm272, %v3071, 0
    %3089 = vmatprep.subr.mxu0 0.0
    %3090 = vmatpush1.msra.mxu0 0.0
    %3091 = vmatprep.subr.mxu0 0.0
    %3092 = vmatpush1.msra.mxu0 0.0
    %3093 = vmatprep.subr.mxu0 0.0
    %3094 = vmatpush1.msra.mxu0 0.0
    %3095 = vmatprep.subr.mxu0 0.0
    %3096 = vmatpush1.msra.mxu0 0.0
    %3097 = vmatprep.subr.mxu0 0.0
    %3098 = vmatpush1.msra.mxu0 0.0
    %3099 = vmatprep.subr.mxu0 0.0
    %3100 = vmatpush1.msra.mxu0 0.0
    %3101 = vmatprep.subr.mxu0 0.0
    %3102 = vmatpush1.msra.mxu0 0.0
    %3103 = vmatprep.subr.mxu0 0.0
    %3104 = vmatpush1.msra.mxu0 0.0
    %3105 = vmatprep.subr.mxu0 0.0
    %3106 = vmatpush1.msra.mxu0 0.0
    %3107 = vmatprep.subr.mxu0 0.0
    %3108 = vmatpush1.msra.mxu0 0.0
    %3109 = vmatprep.subr.mxu0 0.0
    %3110 = vmatpush1.msra.mxu0 0.0
    %3111 = vmatprep.subr.mxu0 0.0
    %3112 = vmatpush1.msra.mxu0 0.0
    %3113 = vmatprep.subr.mxu0 0.0
    %3114 = vmatpush1.msra.mxu0 %v3075
    %3115 = vmatprep.subr.mxu0 0.0
    %3116 = vmatpush1.msra.mxu0 %v3074
    %3117 = vmatprep.subr.mxu0 0.0
    %3118 = vmatpush1.msra.mxu0 %v3073
    %3119 = vmatprep.subr.mxu0 0.0
    %3120 = vmatpush1.msra.mxu0 %v3072
    %3121 = vmatprep.subr.mxu0 0.0
    %3122 = vmatpush2.msra.mxu0 0.0
    %3123 = vmatprep.subr.mxu0 0.0
    %3124 = vmatpush2.msra.mxu0 0.0
    %3125 = vmatprep.subr.mxu0 0.0
    %3126 = vmatpush2.msra.mxu0 0.0
    %3127 = vmatprep.subr.mxu0 0.0
    %3128 = vmatpush2.msra.mxu0 0.0
    %3129 = vmatprep.subr.mxu0 0.0
    %3130 = vmatpush2.msra.mxu0 0.0
    %3131 = vmatprep.subr.mxu0 0.0
    %3132 = vmatpush2.msra.mxu0 0.0
    %3133 = vmatprep.subr.mxu0 0.0
    %3134 = vmatpush2.msra.mxu0 0.0
    %3135 = vmatprep.subr.mxu0 0.0
    %3136 = vmatpush2.msra.mxu0 0.0
    %3137 = vmatprep.subr.mxu0 0.0
    %3138 = vmatpush2.msra.mxu0 0.0
    %3139 = vmatprep.subr.mxu0 0.0
    %3140 = vmatpush2.msra.mxu0 0.0
    %3141 = vmatprep.subr.mxu0 0.0
    %3142 = vmatpush2.msra.mxu0 0.0
    %3143 = vmatprep.subr.mxu0 0.0
    %3144 = vmatpush2.msra.mxu0 0.0
    %3145 = vmatprep.subr.mxu0 0.0
    %3146 = vmatpush2.msra.mxu0 0.0
    %3147 = vmatprep.subr.mxu0 0.0
    %3148 = vmatpush2.msra.mxu0 0.0
    %3149 = vmatprep.subr.mxu0 0.0
    %3150 = vmatpush2.msra.mxu0 0.0
    %3151 = vmatprep.subr.mxu0 0.0
    %3152 = vmatpush2.msra.mxu0 0.0
    %3153 = vmatprep.mubr.f32.mxu0 0.0
    %3154 = vmatmul.mubr.f32.gmra.mxu0 %v3084
    %v3155 = vpop.f32.mrf.mxu0
    %v3156 = vadd.f32 %v3081, %v3155
    %v3157 = vpop.f32.mrf.mxu0
    %3158 = vmatprep.mubr.f32.mxu0 0.0
    %3159 = vmatmul.mubr.f32.gmra.mxu0 %v3087
    %v3160 = vpop.f32.mrf.mxu0
    %v3161 = vpop.f32.mrf.mxu0
    %3162 = vdwg.mxu0
    %vm3163 = vcmask 73728
    %3164 = vst.msk [vmem:[#allocation4] sm:$0x1] %vm3163, %v3156
    %vm3165 = vcmask 78853
    %3166 = vst.msk [vmem:[#allocation4 - $0x4] sm:$0x20] %vm3165, %v3156
    // Predicated region
    $region138: #{tpu_custom_call.1} parent=1 // pred_check
      _
    $region139: #{tpu_custom_call.1} parent=1 // pred_check_branch
      %3168 = sbr.rel (0) target = $region141
    $region140: #{tpu_custom_call.1} parent=1 // pred_region
      %s3170 = ssub.s32 32, 32
      %3171 = vsyncadd [#allocation5], %s3170
      %s3173 = sshll.u32 [#allocation4], 4
      %s3174 = int_to_ptr.vmem [resolvable:$true] %s3173
      %3176 = dma.vmem_to_hbm [thread:$0]  %s3174, 32, %s69, [#allocation5]
    $region141: #{tpu_custom_call.1} parent=1 // pred_fallthru
      _
    // Predicated region
    $region142: #{tpu_custom_call.1} parent=1 // pred_check
      _
    $region143: #{tpu_custom_call.1} parent=1 // pred_check_branch
      %3178 = sbr.rel (0) target = $region145
    $region144: #{tpu_custom_call.1} parent=1 // pred_region
      %3179 = dma.done [#allocation5], 32
    $region145: #{tpu_custom_call.1} parent=1 // pred_fallthru
      _
    %3180 = vsyncpa [#allocation5], 1

</llo_original>
